<compile_context>
chip_gen: v7x
topology: tpu7x:2x2x1
jax: 0.10.0
libtpu: 0.0.40
codegen_flags: <defaults>
</compile_context>

<pallas_src>
import jax
import jax.numpy as jnp
from jax.experimental import pallas as pl
from jax.experimental.pallas import tpu as pltpu

# Sizes implied by the module (358 symptom ids are hard-coded in LabelAttn.forward)
N_SYM = 358
EMBED_SIZE = 32
ATTN_DIM = 16
LABEL_NUM = 8
BATCH = 2


def disease_inference_kernel(mask_ref,      # (B, N, E) int8   VMEM
                             embed_ref,     # (N, E)    f32    VMEM
                             wp_ref,        # (E, A)    f32    VMEM
                             bp_ref,        # (1, A)    f32    VMEM
                             ws_ref,        # (A, L)    f32    VMEM
                             bs_ref,        # (1, L)    f32    VMEM
                             label_ref,     # (B,)      int32  SMEM
                             ncorrect_ref,  # (1, 1)    int32  VMEM out
                             loss_ref):     # (1, 1)    f32    VMEM out
    B = mask_ref.shape[0]
    L = ws_ref.shape[1]

    idx_row = jax.lax.broadcasted_iota(jnp.int32, (1, L), 1)      # (1, L)

    n_correct = jnp.int32(0)
    loss_sum = jnp.float32(0.0)

    # B is tiny & static -> fully unrolled.  Weights stay resident in VMEM and are
    # simply re-read each iteration (cheap vld; keeps vreg pressure down).
    for b in range(B):
        # x_embed = mask * Embedding(arange(N))                       (N, E)
        xe = mask_ref[b].astype(jnp.float32) * embed_ref[...]

        # Z = tanh(Linear_proj(x_embed))                              (N, A)
        z = jnp.tanh(
            jnp.dot(xe, wp_ref[...], preferred_element_type=jnp.float32)
            + bp_ref[...])

        # scores = Linear_score(Z)                                    (N, L)
        s = (jnp.dot(z, ws_ref[...], preferred_element_type=jnp.float32)
             + bs_ref[...])

        # softmax over the symptom axis (torch dim=1 of (B, N, L))
        s_max = jnp.max(s, axis=0, keepdims=True)                    # (1, L)
        e = jnp.exp(s - s_max)                                       # (N, L)
        attn = e / jnp.sum(e, axis=0, keepdims=True)                 # (N, L)

        # disease_ = sum_E(A^T @ x_embed) == A^T @ (sum_E x_embed)   (1, L)
        xsum = jnp.sum(xe, axis=1, keepdims=True)                    # (N, 1)
        dis = jnp.sum(attn * xsum, axis=0, keepdims=True)            # (1, L)

        # ---- fused epilogue: cross-entropy + argmax / correct count ----
        lbl = label_ref[b]
        m0 = jnp.max(dis)
        lse = jnp.log(jnp.sum(jnp.exp(dis - m0))) + m0
        picked = jnp.sum(jnp.where(idx_row == lbl, dis, 0.0))
        loss_sum = loss_sum + (lse - picked)

        pred = jnp.min(jnp.where(dis == m0, idx_row, L))   # first index of the max
        n_correct = n_correct + (pred == lbl).astype(jnp.int32)

    ncorrect_ref[...] = jnp.reshape(n_correct, (1, 1))
    loss_ref[...] = jnp.reshape(loss_sum / B, (1, 1))      # CrossEntropyLoss mean


@jax.jit
def disease_inference_forward(label, mask, params):
    """Same semantics as DiseaseInference.forward: (num_correct, mean CE loss)."""
    embed_w, wp, bp, ws, bs = params
    a_dim = wp.shape[1]
    l_dim = ws.shape[1]

    vmem = pl.BlockSpec(memory_space=pltpu.MemorySpace.VMEM)
    smem = pl.BlockSpec(memory_space=pltpu.MemorySpace.SMEM)

    # NOTE: total VMEM here is ~0.1 MiB, so one un-gridded invocation is fine on
    # every generation.  If B were scaled up substantially, tile the batch with a
    # grid=(B // tb,) "parallel" axis (and check the mask block against the scoped
    # VMEM limit, esp. on v7x's 64 MiB VMEM) instead of going back to per-example.
    ncorrect, loss = pl.pallas_call(
        disease_inference_kernel,
        out_shape=(
            jax.ShapeDtypeStruct((1, 1), jnp.int32),
            jax.ShapeDtypeStruct((1, 1), jnp.float32),
        ),
        in_specs=[vmem, vmem, vmem, vmem, vmem, vmem, smem],
        out_specs=(vmem, vmem),
    )(mask, embed_w, wp, bp.reshape(1, a_dim), ws, bs.reshape(1, l_dim),
      label.astype(jnp.int32))

    return ncorrect[0, 0], loss[0, 0]


def init_params(key):
    k1, k2, k3, k4, k5 = jax.random.split(key, 5)
    embed_w = jax.random.normal(k1, (N_SYM, EMBED_SIZE), jnp.float32) * 0.1
    wp = jax.random.normal(k2, (EMBED_SIZE, ATTN_DIM), jnp.float32) * 0.1
    bp = jax.random.normal(k3, (ATTN_DIM,), jnp.float32) * 0.01
    ws = jax.random.normal(k4, (ATTN_DIM, LABEL_NUM), jnp.float32) * 0.1
    bs = jax.random.normal(k5, (LABEL_NUM,), jnp.float32) * 0.01
    return embed_w, wp, bp, ws, bs


if __name__ == "__main__":
    key = jax.random.PRNGKey(0)
    kp, km, kl = jax.random.split(key, 3)

    params = init_params(kp)
    # mask_matrix: (B, 358, embed_size) of 0/1 — passed as int8 (kernel casts to f32)
    mask = jax.random.bernoulli(
        km, p=0.5, shape=(BATCH, N_SYM, EMBED_SIZE)).astype(jnp.int8)
    label = jax.random.randint(kl, (BATCH,), 0, LABEL_NUM, dtype=jnp.int32)

    output, loss = disease_inference_forward(label, mask, params)
    jax.block_until_ready((output, loss))
    print("KERNEL_OK")
</pallas_src>

<mosaic_0001>
module attributes {stable_mosaic.version = 11 : i64} {
  func.func @disease_inference_kernel(%arg0: memref<2x358x32xi8, #tpu.memory_space<vmem>>, %arg1: memref<358x32xf32, #tpu.memory_space<vmem>>, %arg2: memref<32x16xf32, #tpu.memory_space<vmem>>, %arg3: memref<1x16xf32, #tpu.memory_space<vmem>>, %arg4: memref<16x8xf32, #tpu.memory_space<vmem>>, %arg5: memref<1x8xf32, #tpu.memory_space<vmem>>, %arg6: memref<2xi32, #tpu.memory_space<smem>>, %arg7: memref<1x1xi32, #tpu.memory_space<vmem>>, %arg8: memref<1x1xf32, #tpu.memory_space<vmem>>) attributes {dimension_semantics = [], scalar_prefetch = 0 : i64, scratch_operands = 0 : i64, tpu.core_type = #tpu.core_type<tc>} {
    %0 = tpu.iota {dimensions = array<i32: 1>} : vector<1x8xi32>
    %c0 = arith.constant 0 : index
    %c0_0 = arith.constant 0 : index
    %c0_1 = arith.constant 0 : index
    %1 = vector.load %arg0[%c0, %c0_0, %c0_1] : memref<2x358x32xi8, #tpu.memory_space<vmem>>, vector<1x358x32xi8>
    %2 = vector.shape_cast %1 : vector<1x358x32xi8> to vector<358x32xi8>
    %3 = arith.sitofp %2 : vector<358x32xi8> to vector<358x32xf32>
    %c0_2 = arith.constant 0 : index
    %c0_3 = arith.constant 0 : index
    %4 = vector.load %arg1[%c0_2, %c0_3] : memref<358x32xf32, #tpu.memory_space<vmem>>, vector<358x32xf32>
    %5 = arith.mulf %3, %4 : vector<358x32xf32>
    %c0_4 = arith.constant 0 : index
    %c0_5 = arith.constant 0 : index
    %6 = vector.load %arg2[%c0_4, %c0_5] : memref<32x16xf32, #tpu.memory_space<vmem>>, vector<32x16xf32>
    %cst = arith.constant dense<0.000000e+00> : vector<358x16xf32>
    %7 = tpu.matmul %5, %6, %cst {dimension_numbers = #tpu.dot_dimension_numbers<[1], [0], [0], [1], [0, 0, 1, 1], [], []>} : vector<358x32xf32>, vector<32x16xf32>, vector<358x16xf32> -> vector<358x16xf32>
    %c0_6 = arith.constant 0 : index
    %c0_7 = arith.constant 0 : index
    %8 = vector.load %arg3[%c0_6, %c0_7] : memref<1x16xf32, #tpu.memory_space<vmem>>, vector<1x16xf32>
    %9 = vector.broadcast %8 : vector<1x16xf32> to vector<358x16xf32>
    %10 = arith.addf %7, %9 : vector<358x16xf32>
    %11 = math.tanh %10 : vector<358x16xf32>
    %c0_8 = arith.constant 0 : index
    %c0_9 = arith.constant 0 : index
    %12 = vector.load %arg4[%c0_8, %c0_9] : memref<16x8xf32, #tpu.memory_space<vmem>>, vector<16x8xf32>
    %cst_10 = arith.constant dense<0.000000e+00> : vector<358x8xf32>
    %13 = tpu.matmul %11, %12, %cst_10 {dimension_numbers = #tpu.dot_dimension_numbers<[1], [0], [0], [1], [0, 0, 1, 1], [], []>} : vector<358x16xf32>, vector<16x8xf32>, vector<358x8xf32> -> vector<358x8xf32>
    %c0_11 = arith.constant 0 : index
    %c0_12 = arith.constant 0 : index
    %14 = vector.load %arg5[%c0_11, %c0_12] : memref<1x8xf32, #tpu.memory_space<vmem>>, vector<1x8xf32>
    %15 = vector.broadcast %14 : vector<1x8xf32> to vector<358x8xf32>
    %16 = arith.addf %13, %15 : vector<358x8xf32>
    %cst_13 = arith.constant dense<0xFF800000> : vector<8xf32>
    %17 = vector.multi_reduction <maximumf>, %16, %cst_13 [0] : vector<358x8xf32> to vector<8xf32>
    %18 = vector.shape_cast %17 : vector<8xf32> to vector<1x8xf32>
    %19 = vector.broadcast %18 : vector<1x8xf32> to vector<358x8xf32>
    %20 = arith.subf %16, %19 : vector<358x8xf32>
    %21 = math.exp %20 : vector<358x8xf32>
    %cst_14 = arith.constant dense<0.000000e+00> : vector<8xf32>
    %22 = vector.multi_reduction <add>, %21, %cst_14 [0] : vector<358x8xf32> to vector<8xf32>
    %23 = vector.shape_cast %22 : vector<8xf32> to vector<1x8xf32>
    %24 = vector.broadcast %23 : vector<1x8xf32> to vector<358x8xf32>
    %25 = arith.divf %21, %24 : vector<358x8xf32>
    %cst_15 = arith.constant dense<0.000000e+00> : vector<358xf32>
    %26 = vector.multi_reduction <add>, %5, %cst_15 [1] : vector<358x32xf32> to vector<358xf32>
    %27 = vector.shape_cast %26 : vector<358xf32> to vector<358x1xf32>
    %28 = vector.broadcast %27 : vector<358x1xf32> to vector<358x8xf32>
    %29 = arith.mulf %25, %28 : vector<358x8xf32>
    %cst_16 = arith.constant dense<0.000000e+00> : vector<8xf32>
    %30 = vector.multi_reduction <add>, %29, %cst_16 [0] : vector<358x8xf32> to vector<8xf32>
    %31 = vector.shape_cast %30 : vector<8xf32> to vector<1x8xf32>
    %c0_17 = arith.constant 0 : index
    %32 = memref.load %arg6[%c0_17] : memref<2xi32, #tpu.memory_space<smem>>
    %33 = vector.shape_cast %31 : vector<1x8xf32> to vector<1x1x8xf32>
    %cst_18 = arith.constant dense<0xFF800000> : vector<1xf32>
    %34 = vector.multi_reduction <maximumf>, %33, %cst_18 [1, 2] : vector<1x1x8xf32> to vector<1xf32>
    %35 = vector.shape_cast %34 : vector<1xf32> to vector<1x1x1xf32>
    %36 = vector.extract %35[0, 0, 0] : f32 from vector<1x1x1xf32>
    %37 = vector.broadcast %36 : f32 to vector<1x8xf32>
    %38 = arith.subf %31, %37 : vector<1x8xf32>
    %39 = math.exp %38 : vector<1x8xf32>
    %40 = vector.shape_cast %39 : vector<1x8xf32> to vector<1x1x8xf32>
    %cst_19 = arith.constant dense<0.000000e+00> : vector<1xf32>
    %41 = vector.multi_reduction <add>, %40, %cst_19 [1, 2] : vector<1x1x8xf32> to vector<1xf32>
    %42 = vector.shape_cast %41 : vector<1xf32> to vector<1x1x1xf32>
    %43 = vector.extract %42[0, 0, 0] : f32 from vector<1x1x1xf32>
    %44 = math.log %43 : f32
    %45 = arith.addf %44, %36 : f32
    %46 = vector.broadcast %32 : i32 to vector<1x8xi32>
    %47 = arith.cmpi eq, %0, %46 : vector<1x8xi32>
    %cst_20 = arith.constant 0.000000e+00 : f32
    %48 = vector.broadcast %cst_20 : f32 to vector<1x8xf32>
    %49 = arith.select %47, %31, %48 : vector<1x8xi1>, vector<1x8xf32>
    %50 = vector.shape_cast %49 : vector<1x8xf32> to vector<1x1x8xf32>
    %cst_21 = arith.constant dense<0.000000e+00> : vector<1xf32>
    %51 = vector.multi_reduction <add>, %50, %cst_21 [1, 2] : vector<1x1x8xf32> to vector<1xf32>
    %52 = vector.shape_cast %51 : vector<1xf32> to vector<1x1x1xf32>
    %53 = vector.extract %52[0, 0, 0] : f32 from vector<1x1x1xf32>
    %54 = arith.subf %45, %53 : f32
    %cst_22 = arith.constant 0.000000e+00 : f32
    %55 = arith.addf %cst_22, %54 : f32
    %56 = vector.broadcast %36 : f32 to vector<1x8xf32>
    %57 = arith.cmpf oeq, %31, %56 : vector<1x8xf32>
    %c8_i32 = arith.constant 8 : i32
    %58 = vector.broadcast %c8_i32 : i32 to vector<1x8xi32>
    %59 = arith.select %57, %0, %58 : vector<1x8xi1>, vector<1x8xi32>
    %60 = vector.shape_cast %59 : vector<1x8xi32> to vector<1x1x8xi32>
    %cst_23 = arith.constant dense<2147483647> : vector<1xi32>
    %61 = vector.multi_reduction <minsi>, %60, %cst_23 [1, 2] : vector<1x1x8xi32> to vector<1xi32>
    %62 = vector.shape_cast %61 : vector<1xi32> to vector<1x1x1xi32>
    %63 = vector.extract %62[0, 0, 0] : i32 from vector<1x1x1xi32>
    %64 = arith.cmpi eq, %63, %32 : i32
    %65 = arith.extui %64 : i1 to i32
    %c0_i32 = arith.constant 0 : i32
    %66 = arith.addi %c0_i32, %65 : i32
    %c1 = arith.constant 1 : index
    %c0_24 = arith.constant 0 : index
    %c0_25 = arith.constant 0 : index
    %67 = vector.load %arg0[%c1, %c0_24, %c0_25] : memref<2x358x32xi8, #tpu.memory_space<vmem>>, vector<1x358x32xi8>
    %68 = vector.shape_cast %67 : vector<1x358x32xi8> to vector<358x32xi8>
    %69 = arith.sitofp %68 : vector<358x32xi8> to vector<358x32xf32>
    %c0_26 = arith.constant 0 : index
    %c0_27 = arith.constant 0 : index
    %70 = vector.load %arg1[%c0_26, %c0_27] : memref<358x32xf32, #tpu.memory_space<vmem>>, vector<358x32xf32>
    %71 = arith.mulf %69, %70 : vector<358x32xf32>
    %c0_28 = arith.constant 0 : index
    %c0_29 = arith.constant 0 : index
    %72 = vector.load %arg2[%c0_28, %c0_29] : memref<32x16xf32, #tpu.memory_space<vmem>>, vector<32x16xf32>
    %cst_30 = arith.constant dense<0.000000e+00> : vector<358x16xf32>
    %73 = tpu.matmul %71, %72, %cst_30 {dimension_numbers = #tpu.dot_dimension_numbers<[1], [0], [0], [1], [0, 0, 1, 1], [], []>} : vector<358x32xf32>, vector<32x16xf32>, vector<358x16xf32> -> vector<358x16xf32>
    %c0_31 = arith.constant 0 : index
    %c0_32 = arith.constant 0 : index
    %74 = vector.load %arg3[%c0_31, %c0_32] : memref<1x16xf32, #tpu.memory_space<vmem>>, vector<1x16xf32>
    %75 = vector.broadcast %74 : vector<1x16xf32> to vector<358x16xf32>
    %76 = arith.addf %73, %75 : vector<358x16xf32>
    %77 = math.tanh %76 : vector<358x16xf32>
    %c0_33 = arith.constant 0 : index
    %c0_34 = arith.constant 0 : index
    %78 = vector.load %arg4[%c0_33, %c0_34] : memref<16x8xf32, #tpu.memory_space<vmem>>, vector<16x8xf32>
    %cst_35 = arith.constant dense<0.000000e+00> : vector<358x8xf32>
    %79 = tpu.matmul %77, %78, %cst_35 {dimension_numbers = #tpu.dot_dimension_numbers<[1], [0], [0], [1], [0, 0, 1, 1], [], []>} : vector<358x16xf32>, vector<16x8xf32>, vector<358x8xf32> -> vector<358x8xf32>
    %c0_36 = arith.constant 0 : index
    %c0_37 = arith.constant 0 : index
    %80 = vector.load %arg5[%c0_36, %c0_37] : memref<1x8xf32, #tpu.memory_space<vmem>>, vector<1x8xf32>
    %81 = vector.broadcast %80 : vector<1x8xf32> to vector<358x8xf32>
    %82 = arith.addf %79, %81 : vector<358x8xf32>
    %cst_38 = arith.constant dense<0xFF800000> : vector<8xf32>
    %83 = vector.multi_reduction <maximumf>, %82, %cst_38 [0] : vector<358x8xf32> to vector<8xf32>
    %84 = vector.shape_cast %83 : vector<8xf32> to vector<1x8xf32>
    %85 = vector.broadcast %84 : vector<1x8xf32> to vector<358x8xf32>
    %86 = arith.subf %82, %85 : vector<358x8xf32>
    %87 = math.exp %86 : vector<358x8xf32>
    %cst_39 = arith.constant dense<0.000000e+00> : vector<8xf32>
    %88 = vector.multi_reduction <add>, %87, %cst_39 [0] : vector<358x8xf32> to vector<8xf32>
    %89 = vector.shape_cast %88 : vector<8xf32> to vector<1x8xf32>
    %90 = vector.broadcast %89 : vector<1x8xf32> to vector<358x8xf32>
    %91 = arith.divf %87, %90 : vector<358x8xf32>
    %cst_40 = arith.constant dense<0.000000e+00> : vector<358xf32>
    %92 = vector.multi_reduction <add>, %71, %cst_40 [1] : vector<358x32xf32> to vector<358xf32>
    %93 = vector.shape_cast %92 : vector<358xf32> to vector<358x1xf32>
    %94 = vector.broadcast %93 : vector<358x1xf32> to vector<358x8xf32>
    %95 = arith.mulf %91, %94 : vector<358x8xf32>
    %cst_41 = arith.constant dense<0.000000e+00> : vector<8xf32>
    %96 = vector.multi_reduction <add>, %95, %cst_41 [0] : vector<358x8xf32> to vector<8xf32>
    %97 = vector.shape_cast %96 : vector<8xf32> to vector<1x8xf32>
    %c1_42 = arith.constant 1 : index
    %98 = memref.load %arg6[%c1_42] : memref<2xi32, #tpu.memory_space<smem>>
    %99 = vector.shape_cast %97 : vector<1x8xf32> to vector<1x1x8xf32>
    %cst_43 = arith.constant dense<0xFF800000> : vector<1xf32>
    %100 = vector.multi_reduction <maximumf>, %99, %cst_43 [1, 2] : vector<1x1x8xf32> to vector<1xf32>
    %101 = vector.shape_cast %100 : vector<1xf32> to vector<1x1x1xf32>
    %102 = vector.extract %101[0, 0, 0] : f32 from vector<1x1x1xf32>
    %103 = vector.broadcast %102 : f32 to vector<1x8xf32>
    %104 = arith.subf %97, %103 : vector<1x8xf32>
    %105 = math.exp %104 : vector<1x8xf32>
    %106 = vector.shape_cast %105 : vector<1x8xf32> to vector<1x1x8xf32>
    %cst_44 = arith.constant dense<0.000000e+00> : vector<1xf32>
    %107 = vector.multi_reduction <add>, %106, %cst_44 [1, 2] : vector<1x1x8xf32> to vector<1xf32>
    %108 = vector.shape_cast %107 : vector<1xf32> to vector<1x1x1xf32>
    %109 = vector.extract %108[0, 0, 0] : f32 from vector<1x1x1xf32>
    %110 = math.log %109 : f32
    %111 = arith.addf %110, %102 : f32
    %112 = vector.broadcast %98 : i32 to vector<1x8xi32>
    %113 = arith.cmpi eq, %0, %112 : vector<1x8xi32>
    %cst_45 = arith.constant 0.000000e+00 : f32
    %114 = vector.broadcast %cst_45 : f32 to vector<1x8xf32>
    %115 = arith.select %113, %97, %114 : vector<1x8xi1>, vector<1x8xf32>
    %116 = vector.shape_cast %115 : vector<1x8xf32> to vector<1x1x8xf32>
    %cst_46 = arith.constant dense<0.000000e+00> : vector<1xf32>
    %117 = vector.multi_reduction <add>, %116, %cst_46 [1, 2] : vector<1x1x8xf32> to vector<1xf32>
    %118 = vector.shape_cast %117 : vector<1xf32> to vector<1x1x1xf32>
    %119 = vector.extract %118[0, 0, 0] : f32 from vector<1x1x1xf32>
    %120 = arith.subf %111, %119 : f32
    %121 = arith.addf %55, %120 : f32
    %122 = vector.broadcast %102 : f32 to vector<1x8xf32>
    %123 = arith.cmpf oeq, %97, %122 : vector<1x8xf32>
    %c8_i32_47 = arith.constant 8 : i32
    %124 = vector.broadcast %c8_i32_47 : i32 to vector<1x8xi32>
    %125 = arith.select %123, %0, %124 : vector<1x8xi1>, vector<1x8xi32>
    %126 = vector.shape_cast %125 : vector<1x8xi32> to vector<1x1x8xi32>
    %cst_48 = arith.constant dense<2147483647> : vector<1xi32>
    %127 = vector.multi_reduction <minsi>, %126, %cst_48 [1, 2] : vector<1x1x8xi32> to vector<1xi32>
    %128 = vector.shape_cast %127 : vector<1xi32> to vector<1x1x1xi32>
    %129 = vector.extract %128[0, 0, 0] : i32 from vector<1x1x1xi32>
    %130 = arith.cmpi eq, %129, %98 : i32
    %131 = arith.extui %130 : i1 to i32
    %132 = arith.addi %66, %131 : i32
    %133 = vector.broadcast %132 : i32 to vector<1x1xi32>
    %c0_49 = arith.constant 0 : index
    %c0_50 = arith.constant 0 : index
    %134 = vector.load %arg7[%c0_49, %c0_50] : memref<1x1xi32, #tpu.memory_space<vmem>>, vector<1x1xi32>
    tpu.vector_store %arg7[%c0_49, %c0_50], %133 {strides = array<i32>} : memref<1x1xi32, #tpu.memory_space<vmem>>, vector<1x1xi32>,
    %cst_51 = arith.constant 2.000000e+00 : f32
    %135 = arith.divf %121, %cst_51 : f32
    %136 = vector.broadcast %135 : f32 to vector<1x1xf32>
    %c0_52 = arith.constant 0 : index
    %c0_53 = arith.constant 0 : index
    %137 = vector.load %arg8[%c0_52, %c0_53] : memref<1x1xf32, #tpu.memory_space<vmem>>, vector<1x1xf32>
    tpu.vector_store %arg8[%c0_52, %c0_53], %136 {strides = array<i32>} : memref<1x1xf32, #tpu.memory_space<vmem>>, vector<1x1xf32>,
    return
  }
}

</mosaic_0001>

<llo_original>
// kernel: disease_inference_forward.1
$region0: #{disease_inference_forward.1}
  #allocation0 [shape = 'u32[]', space=smem, size = 0x4, offset = 0x4, fixed_abs, tag = 'smem constant byte address 0x4 - core index']
  #allocation1 [shape = 'u32[144,128]{1,0:T(1,128)}', space=vmem, size = 0x12000, scoped, tag = 'internal scratch']
  %s0 = inlined_call_operand.vmem [shape: s8[2,358,32], index: 0, kind: input, shape index: {}]
  %s1 = inlined_call_operand.vmem [shape: f32[358,32], index: 1, kind: input, shape index: {}]
  %s2 = inlined_call_operand.vmem [shape: f32[32,16], index: 2, kind: input, shape index: {}]
  %s3 = inlined_call_operand.vmem [shape: f32[1,16], index: 3, kind: input, shape index: {}]
  %s4 = inlined_call_operand.vmem [shape: f32[16,8], index: 4, kind: input, shape index: {}]
  %s5 = inlined_call_operand.vmem [shape: f32[1,8], index: 5, kind: input, shape index: {}]
  %s6 = inlined_call_operand.vmem [shape: s32[2], index: 6, kind: input, shape index: {}]
  %s7 = inlined_call_operand.hbm [shape: s32[1,1], index: 7, kind: output, shape index: {0}]
  %s8 = inlined_call_operand.hbm [shape: f32[1,1], index: 8, kind: output, shape index: {1}]
  %9 = xla_tuple %s7, %s8
  %s10 = sld [smem:[#allocation0]]
  $region50: #{disease_inference_forward.1} parent=0
    _
  %s12 = ssub.s32 1, %s10
  %s13 = scalar_select 0, %s12, %s10
  $region1: #{disease_inference_forward.1} parent=0
    #allocation2 [shape = 'u8[512]{0}', space=smem, size = 0x200, scoped, tag = 'input window, operand 6, single buffered']
    #allocation3 [shape = 's32[1]{0}', space=sflag, size = 0x4, scoped, tag = 'scoped memory for disease_inference_forward.1']
    #allocation4 [shape = 's32[1]{0}', space=sflag, size = 0x4, scoped, tag = 'scoped memory for disease_inference_forward.1']
    #allocation5 [shape = 'u8[512]{0}', space=vmem, size = 0x400, scoped, tag = 'output window, operand 0, single buffered']
    #allocation6 [shape = 'u8[512]{0}', space=vmem, size = 0x400, scoped, tag = 'output window, operand 1, single buffered']
    #allocation7 [shape = 's32[1]{0}', space=sflag, size = 0x4, scoped, tag = 'scoped memory for disease_inference_forward.1']
    %14 = vsyncpa [#allocation4], 0
    %15 = vsyncpa [#allocation3], 0
    %16 = vsyncpa [#allocation7], 0
    // Predicated region
    $region2: #{disease_inference_forward.1} parent=1 // pred_check
      _
    $region3: #{disease_inference_forward.1} parent=1 // pred_check_branch
      %18 = sbr.rel (0) target = $region5
    $region4: #{disease_inference_forward.1} parent=1 // pred_region
      _
    $region5: #{disease_inference_forward.1} parent=1 // pred_fallthru
      _
    // Predicated region
    $region6: #{disease_inference_forward.1} parent=1 // pred_check
      _
    $region7: #{disease_inference_forward.1} parent=1 // pred_check_branch
      %20 = sbr.rel (0) target = $region9
    $region8: #{disease_inference_forward.1} parent=1 // pred_region
      _
    $region9: #{disease_inference_forward.1} parent=1 // pred_fallthru
      _
    // Predicated region
    $region10: #{disease_inference_forward.1} parent=1 // pred_check
      _
    $region11: #{disease_inference_forward.1} parent=1 // pred_check_branch
      %22 = sbr.rel (0) target = $region13
    $region12: #{disease_inference_forward.1} parent=1 // pred_region
      _
    $region13: #{disease_inference_forward.1} parent=1 // pred_fallthru
      _
    // Predicated region
    $region14: #{disease_inference_forward.1} parent=1 // pred_check
      _
    $region15: #{disease_inference_forward.1} parent=1 // pred_check_branch
      %24 = sbr.rel (0) target = $region17
    $region16: #{disease_inference_forward.1} parent=1 // pred_region
      _
    $region17: #{disease_inference_forward.1} parent=1 // pred_fallthru
      _
    // Predicated region
    $region18: #{disease_inference_forward.1} parent=1 // pred_check
      _
    $region19: #{disease_inference_forward.1} parent=1 // pred_check_branch
      %26 = sbr.rel (0) target = $region21
    $region20: #{disease_inference_forward.1} parent=1 // pred_region
      _
    $region21: #{disease_inference_forward.1} parent=1 // pred_fallthru
      _
    // Predicated region
    $region22: #{disease_inference_forward.1} parent=1 // pred_check
      _
    $region23: #{disease_inference_forward.1} parent=1 // pred_check_branch
      %28 = sbr.rel (0) target = $region25
    $region24: #{disease_inference_forward.1} parent=1 // pred_region
      _
    $region25: #{disease_inference_forward.1} parent=1 // pred_fallthru
      _
    // Predicated region
    $region26: #{disease_inference_forward.1} parent=1 // pred_check
      _
    $region27: #{disease_inference_forward.1} parent=1 // pred_check_branch
      %30 = sbr.rel (0) target = $region29
    $region28: #{disease_inference_forward.1} parent=1 // pred_region
      %s32 = ssub.s32 16, 16
      %33 = vsyncadd [#allocation4], %s32
      %s35 = sshll.u32 %s6, 4
      %s36 = int_to_ptr.vmem [resolvable:$true] %s35
      %38 = dma.vmem_to_smem %s36, 16, [#allocation2], [#allocation4]
    $region29: #{disease_inference_forward.1} parent=1 // pred_fallthru
      _
    // Predicated region
    $region30: #{disease_inference_forward.1} parent=1 // pred_check
      _
    $region31: #{disease_inference_forward.1} parent=1 // pred_check_branch
      %40 = sbr.rel (0) target = $region33
    $region32: #{disease_inference_forward.1} parent=1 // pred_region
      %41 = dma.done [#allocation4], 16
    $region33: #{disease_inference_forward.1} parent=1 // pred_fallthru
      _
    %42 = sfence
    %v43 = vlaneseq
    %v44 = vand.u32 %v43, 127
    %v45 = vld [vmem:[%s0] sm:$0x3]
    %v46 = vld [vmem:[%s0 + $0x2] sm:$0x3]
    %v47 = vld [vmem:[%s0 + $0x4] sm:$0x3]
    %v48 = vld [vmem:[%s0 + $0x6] sm:$0x3]
    %v49 = vld [vmem:[%s0 + $0x8] sm:$0x3]
    %v50 = vld [vmem:[%s0 + $0xa] sm:$0x3]
    %v51 = vld [vmem:[%s0 + $0xc] sm:$0x3]
    %v52 = vld [vmem:[%s0 + $0xe] sm:$0x3]
    %v53 = vld [vmem:[%s0 + $0x10] sm:$0x3]
    %v54 = vld [vmem:[%s0 + $0x12] sm:$0x3]
    %v55 = vld [vmem:[%s0 + $0x14] sm:$0x3]
    %v56 = vld [vmem:[%s0 + $0x16] sm:$0x3]
    %v57 = vld [vmem:[%s0 + $0x18] sm:$0x3]
    %v58 = vld [vmem:[%s0 + $0x1a] sm:$0x3]
    %v59 = vld [vmem:[%s0 + $0x1c] sm:$0x3]
    %v60 = vld [vmem:[%s0 + $0x1e] sm:$0x3]
    %v61 = vld [vmem:[%s0 + $0x20] sm:$0x3]
    %v62 = vld [vmem:[%s0 + $0x22] sm:$0x3]
    %v63 = vld [vmem:[%s0 + $0x24] sm:$0x3]
    %v64 = vld [vmem:[%s0 + $0x26] sm:$0x3]
    %v65 = vld [vmem:[%s0 + $0x28] sm:$0x3]
    %v66 = vld [vmem:[%s0 + $0x2a] sm:$0x3]
    %v67 = vld [vmem:[%s0 + $0x2c] sm:$0x3]
    %v68 = vld [vmem:[%s0 + $0x2e] sm:$0x3]
    %v69 = vld [vmem:[%s0 + $0x30] sm:$0x3]
    %v70 = vld [vmem:[%s0 + $0x32] sm:$0x3]
    %v71 = vld [vmem:[%s0 + $0x34] sm:$0x3]
    %v72 = vld [vmem:[%s0 + $0x36] sm:$0x3]
    %v73 = vld [vmem:[%s0 + $0x38] sm:$0x3]
    %v74 = vld [vmem:[%s0 + $0x3a] sm:$0x3]
    %v75 = vld [vmem:[%s0 + $0x3c] sm:$0x3]
    %v76 = vld [vmem:[%s0 + $0x3e] sm:$0x3]
    %v77 = vld [vmem:[%s0 + $0x40] sm:$0x3]
    %v78 = vld [vmem:[%s0 + $0x42] sm:$0x3]
    %v79 = vld [vmem:[%s0 + $0x44] sm:$0x3]
    %v80 = vld [vmem:[%s0 + $0x46] sm:$0x3]
    %v81 = vld [vmem:[%s0 + $0x48] sm:$0x3]
    %v82 = vld [vmem:[%s0 + $0x4a] sm:$0x3]
    %v83 = vld [vmem:[%s0 + $0x4c] sm:$0x3]
    %v84 = vld [vmem:[%s0 + $0x4e] sm:$0x3]
    %v85 = vld [vmem:[%s0 + $0x50] sm:$0x3]
    %v86 = vld [vmem:[%s0 + $0x52] sm:$0x3]
    %v87 = vld [vmem:[%s0 + $0x54] sm:$0x3]
    %v88 = vld [vmem:[%s0 + $0x56] sm:$0x3]
    %v89 = vld [vmem:[%s0 + $0x58] sm:$0x3]
    %v90 = vunpack.c.0.s8 %v45
    %v91 = vunpack.c.0.s8 %v46
    %v92 = vunpack.c.0.s8 %v47
    %v93 = vunpack.c.0.s8 %v48
    %v94 = vunpack.c.0.s8 %v49
    %v95 = vunpack.c.0.s8 %v50
    %v96 = vunpack.c.0.s8 %v51
    %v97 = vunpack.c.0.s8 %v52
    %v98 = vunpack.c.0.s8 %v53
    %v99 = vunpack.c.0.s8 %v54
    %v100 = vunpack.c.0.s8 %v55
    %v101 = vunpack.c.0.s8 %v56
    %v102 = vunpack.c.0.s8 %v57
    %v103 = vunpack.c.0.s8 %v58
    %v104 = vunpack.c.0.s8 %v59
    %v105 = vunpack.c.0.s8 %v60
    %v106 = vunpack.c.0.s8 %v61
    %v107 = vunpack.c.0.s8 %v62
    %v108 = vunpack.c.0.s8 %v63
    %v109 = vunpack.c.0.s8 %v64
    %v110 = vunpack.c.0.s8 %v65
    %v111 = vunpack.c.0.s8 %v66
    %v112 = vunpack.c.0.s8 %v67
    %v113 = vunpack.c.0.s8 %v68
    %v114 = vunpack.c.0.s8 %v69
    %v115 = vunpack.c.0.s8 %v70
    %v116 = vunpack.c.0.s8 %v71
    %v117 = vunpack.c.0.s8 %v72
    %v118 = vunpack.c.0.s8 %v73
    %v119 = vunpack.c.0.s8 %v74
    %v120 = vunpack.c.0.s8 %v75
    %v121 = vunpack.c.0.s8 %v76
    %v122 = vunpack.c.0.s8 %v77
    %v123 = vunpack.c.0.s8 %v78
    %v124 = vunpack.c.0.s8 %v79
    %v125 = vunpack.c.0.s8 %v80
    %v126 = vunpack.c.0.s8 %v81
    %v127 = vunpack.c.0.s8 %v82
    %v128 = vunpack.c.0.s8 %v83
    %v129 = vunpack.c.0.s8 %v84
    %v130 = vunpack.c.0.s8 %v85
    %v131 = vunpack.c.0.s8 %v86
    %v132 = vunpack.c.0.s8 %v87
    %v133 = vunpack.c.0.s8 %v88
    %v134 = vunpack.c.0.s8 %v89
    %v135 = vcvt.s32.f32 %v90
    %v136 = vcvt.s32.f32 %v91
    %v137 = vcvt.s32.f32 %v92
    %v138 = vcvt.s32.f32 %v93
    %v139 = vcvt.s32.f32 %v94
    %v140 = vcvt.s32.f32 %v95
    %v141 = vcvt.s32.f32 %v96
    %v142 = vcvt.s32.f32 %v97
    %v143 = vcvt.s32.f32 %v98
    %v144 = vcvt.s32.f32 %v99
    %v145 = vcvt.s32.f32 %v100
    %v146 = vcvt.s32.f32 %v101
    %v147 = vcvt.s32.f32 %v102
    %v148 = vcvt.s32.f32 %v103
    %v149 = vcvt.s32.f32 %v104
    %v150 = vcvt.s32.f32 %v105
    %v151 = vcvt.s32.f32 %v106
    %v152 = vcvt.s32.f32 %v107
    %v153 = vcvt.s32.f32 %v108
    %v154 = vcvt.s32.f32 %v109
    %v155 = vcvt.s32.f32 %v110
    %v156 = vcvt.s32.f32 %v111
    %v157 = vcvt.s32.f32 %v112
    %v158 = vcvt.s32.f32 %v113
    %v159 = vcvt.s32.f32 %v114
    %v160 = vcvt.s32.f32 %v115
    %v161 = vcvt.s32.f32 %v116
    %v162 = vcvt.s32.f32 %v117
    %v163 = vcvt.s32.f32 %v118
    %v164 = vcvt.s32.f32 %v119
    %v165 = vcvt.s32.f32 %v120
    %v166 = vcvt.s32.f32 %v121
    %v167 = vcvt.s32.f32 %v122
    %v168 = vcvt.s32.f32 %v123
    %v169 = vcvt.s32.f32 %v124
    %v170 = vcvt.s32.f32 %v125
    %v171 = vcvt.s32.f32 %v126
    %v172 = vcvt.s32.f32 %v127
    %v173 = vcvt.s32.f32 %v128
    %v174 = vcvt.s32.f32 %v129
    %v175 = vcvt.s32.f32 %v130
    %v176 = vcvt.s32.f32 %v131
    %v177 = vcvt.s32.f32 %v132
    %v178 = vcvt.s32.f32 %v133
    %v179 = vcvt.s32.f32 %v134
    %v180 = vld [vmem:[%s1] sm:$0xff]
    %v181 = vld [vmem:[%s1 + $0x8] sm:$0xff]
    %v182 = vld [vmem:[%s1 + $0x10] sm:$0xff]
    %v183 = vld [vmem:[%s1 + $0x18] sm:$0xff]
    %v184 = vld [vmem:[%s1 + $0x20] sm:$0xff]
    %v185 = vld [vmem:[%s1 + $0x28] sm:$0xff]
    %v186 = vld [vmem:[%s1 + $0x30] sm:$0xff]
    %v187 = vld [vmem:[%s1 + $0x38] sm:$0xff]
    %v188 = vld [vmem:[%s1 + $0x40] sm:$0xff]
    %v189 = vld [vmem:[%s1 + $0x48] sm:$0xff]
    %v190 = vld [vmem:[%s1 + $0x50] sm:$0xff]
    %v191 = vld [vmem:[%s1 + $0x58] sm:$0xff]
    %v192 = vld [vmem:[%s1 + $0x60] sm:$0xff]
    %v193 = vld [vmem:[%s1 + $0x68] sm:$0xff]
    %v194 = vld [vmem:[%s1 + $0x70] sm:$0xff]
    %v195 = vld [vmem:[%s1 + $0x78] sm:$0xff]
    %v196 = vld [vmem:[%s1 + $0x80] sm:$0xff]
    %v197 = vld [vmem:[%s1 + $0x88] sm:$0xff]
    %v198 = vld [vmem:[%s1 + $0x90] sm:$0xff]
    %v199 = vld [vmem:[%s1 + $0x98] sm:$0xff]
    %v200 = vld [vmem:[%s1 + $0xa0] sm:$0xff]
    %v201 = vld [vmem:[%s1 + $0xa8] sm:$0xff]
    %v202 = vld [vmem:[%s1 + $0xb0] sm:$0xff]
    %v203 = vld [vmem:[%s1 + $0xb8] sm:$0xff]
    %v204 = vld [vmem:[%s1 + $0xc0] sm:$0xff]
    %v205 = vld [vmem:[%s1 + $0xc8] sm:$0xff]
    %v206 = vld [vmem:[%s1 + $0xd0] sm:$0xff]
    %v207 = vld [vmem:[%s1 + $0xd8] sm:$0xff]
    %v208 = vld [vmem:[%s1 + $0xe0] sm:$0xff]
    %v209 = vld [vmem:[%s1 + $0xe8] sm:$0xff]
    %v210 = vld [vmem:[%s1 + $0xf0] sm:$0xff]
    %v211 = vld [vmem:[%s1 + $0xf8] sm:$0xff]
    %v212 = vld [vmem:[%s1 + $0x100] sm:$0xff]
    %v213 = vld [vmem:[%s1 + $0x108] sm:$0xff]
    %v214 = vld [vmem:[%s1 + $0x110] sm:$0xff]
    %v215 = vld [vmem:[%s1 + $0x118] sm:$0xff]
    %v216 = vld [vmem:[%s1 + $0x120] sm:$0xff]
    %v217 = vld [vmem:[%s1 + $0x128] sm:$0xff]
    %v218 = vld [vmem:[%s1 + $0x130] sm:$0xff]
    %v219 = vld [vmem:[%s1 + $0x138] sm:$0xff]
    %v220 = vld [vmem:[%s1 + $0x140] sm:$0xff]
    %v221 = vld [vmem:[%s1 + $0x148] sm:$0xff]
    %v222 = vld [vmem:[%s1 + $0x150] sm:$0xff]
    %v223 = vld [vmem:[%s1 + $0x158] sm:$0xff]
    %v224 = vld [vmem:[%s1 + $0x160] sm:$0x3f]
    %v225 = vmul.f32 %v135, %v180
    %v226 = vmul.f32 %v136, %v181
    %v227 = vmul.f32 %v137, %v182
    %v228 = vmul.f32 %v138, %v183
    %v229 = vmul.f32 %v139, %v184
    %v230 = vmul.f32 %v140, %v185
    %v231 = vmul.f32 %v141, %v186
    %v232 = vmul.f32 %v142, %v187
    %v233 = vmul.f32 %v143, %v188
    %v234 = vmul.f32 %v144, %v189
    %v235 = vmul.f32 %v145, %v190
    %v236 = vmul.f32 %v146, %v191
    %v237 = vmul.f32 %v147, %v192
    %v238 = vmul.f32 %v148, %v193
    %v239 = vmul.f32 %v149, %v194
    %v240 = vmul.f32 %v150, %v195
    %v241 = vmul.f32 %v151, %v196
    %v242 = vmul.f32 %v152, %v197
    %v243 = vmul.f32 %v153, %v198
    %v244 = vmul.f32 %v154, %v199
    %v245 = vmul.f32 %v155, %v200
    %v246 = vmul.f32 %v156, %v201
    %v247 = vmul.f32 %v157, %v202
    %v248 = vmul.f32 %v158, %v203
    %v249 = vmul.f32 %v159, %v204
    %v250 = vmul.f32 %v160, %v205
    %v251 = vmul.f32 %v161, %v206
    %v252 = vmul.f32 %v162, %v207
    %v253 = vmul.f32 %v163, %v208
    %v254 = vmul.f32 %v164, %v209
    %v255 = vmul.f32 %v165, %v210
    %v256 = vmul.f32 %v166, %v211
    %v257 = vmul.f32 %v167, %v212
    %v258 = vmul.f32 %v168, %v213
    %v259 = vmul.f32 %v169, %v214
    %v260 = vmul.f32 %v170, %v215
    %v261 = vmul.f32 %v171, %v216
    %v262 = vmul.f32 %v172, %v217
    %v263 = vmul.f32 %v173, %v218
    %v264 = vmul.f32 %v174, %v219
    %v265 = vmul.f32 %v175, %v220
    %v266 = vmul.f32 %v176, %v221
    %v267 = vmul.f32 %v177, %v222
    %v268 = vmul.f32 %v178, %v223
    %v269 = vmul.f32 %v179, %v224
    %v270 = vld [vmem:[%s2] sm:$0xff]
    %v271 = vld [vmem:[%s2 + $0x8] sm:$0xff]
    %v272 = vld [vmem:[%s2 + $0x10] sm:$0xff]
    %v273 = vld [vmem:[%s2 + $0x18] sm:$0xff]
    %v274 = vld [vmem:[%s3] sm:$0x1]
    %v276 = vlaneseq
    %v277 = vshrl.u32 %v276, 7
    %v278 = vsub.s32 0, %v277
    %v279 = vrot.slane %v274, %v278
    %vm281 = vcmask 261120
    %v283 = vsel %vm281, %v225, 0
    %v286 = vsel %vm281, %v226, 0
    %v289 = vsel %vm281, %v227, 0
    %v292 = vsel %vm281, %v228, 0
    %v295 = vsel %vm281, %v229, 0
    %v298 = vsel %vm281, %v230, 0
    %v301 = vsel %vm281, %v231, 0
    %v304 = vsel %vm281, %v232, 0
    %v307 = vsel %vm281, %v233, 0
    %v310 = vsel %vm281, %v234, 0
    %v313 = vsel %vm281, %v235, 0
    %v316 = vsel %vm281, %v236, 0
    %v319 = vsel %vm281, %v237, 0
    %v322 = vsel %vm281, %v238, 0
    %v325 = vsel %vm281, %v239, 0
    %v328 = vsel %vm281, %v240, 0
    %v331 = vsel %vm281, %v241, 0
    %v334 = vsel %vm281, %v242, 0
    %v337 = vsel %vm281, %v243, 0
    %v340 = vsel %vm281, %v244, 0
    %v343 = vsel %vm281, %v245, 0
    %v346 = vsel %vm281, %v246, 0
    %v349 = vsel %vm281, %v247, 0
    %v352 = vsel %vm281, %v248, 0
    %v355 = vsel %vm281, %v249, 0
    %v358 = vsel %vm281, %v250, 0
    %v361 = vsel %vm281, %v251, 0
    %v364 = vsel %vm281, %v252, 0
    %v367 = vsel %vm281, %v253, 0
    %v370 = vsel %vm281, %v254, 0
    %v373 = vsel %vm281, %v255, 0
    %v376 = vsel %vm281, %v256, 0
    %v379 = vsel %vm281, %v257, 0
    %v382 = vsel %vm281, %v258, 0
    %v385 = vsel %vm281, %v259, 0
    %v388 = vsel %vm281, %v260, 0
    %v391 = vsel %vm281, %v261, 0
    %v394 = vsel %vm281, %v262, 0
    %v397 = vsel %vm281, %v263, 0
    %v400 = vsel %vm281, %v264, 0
    %v403 = vsel %vm281, %v265, 0
    %v406 = vsel %vm281, %v266, 0
    %v409 = vsel %vm281, %v267, 0
    %v412 = vsel %vm281, %v268, 0
    %v415 = vsel %vm281, %v269, 0
    %417 = vmatprep.subr.mxu0 0.0
    %418 = vmatpush1.msra.mxu0 %v270
    %419 = vmatprep.subr.mxu0 0.0
    %420 = vmatpush1.msra.mxu0 %v271
    %421 = vmatprep.subr.mxu0 0.0
    %422 = vmatpush1.msra.mxu0 %v272
    %423 = vmatprep.subr.mxu0 0.0
    %424 = vmatpush1.msra.mxu0 %v273
    %425 = vmatprep.subr.mxu0 0.0
    %426 = vmatpush1.msra.mxu0 0.0
    %427 = vmatprep.subr.mxu0 0.0
    %428 = vmatpush1.msra.mxu0 0.0
    %429 = vmatprep.subr.mxu0 0.0
    %430 = vmatpush1.msra.mxu0 0.0
    %431 = vmatprep.subr.mxu0 0.0
    %432 = vmatpush1.msra.mxu0 0.0
    %433 = vmatprep.subr.mxu0 0.0
    %434 = vmatpush1.msra.mxu0 0.0
    %435 = vmatprep.subr.mxu0 0.0
    %436 = vmatpush1.msra.mxu0 0.0
    %437 = vmatprep.subr.mxu0 0.0
    %438 = vmatpush1.msra.mxu0 0.0
    %439 = vmatprep.subr.mxu0 0.0
    %440 = vmatpush1.msra.mxu0 0.0
    %441 = vmatprep.subr.mxu0 0.0
    %442 = vmatpush1.msra.mxu0 0.0
    %443 = vmatprep.subr.mxu0 0.0
    %444 = vmatpush1.msra.mxu0 0.0
    %445 = vmatprep.subr.mxu0 0.0
    %446 = vmatpush1.msra.mxu0 0.0
    %447 = vmatprep.subr.mxu0 0.0
    %448 = vmatpush1.msra.mxu0 0.0
    %449 = vmatprep.subr.mxu0 0.0
    %450 = vmatpush1.msra.mxu0 0.0
    %451 = vmatprep.subr.mxu0 0.0
    %452 = vmatpush1.msra.mxu0 0.0
    %453 = vmatprep.subr.mxu0 0.0
    %454 = vmatpush1.msra.mxu0 0.0
    %455 = vmatprep.subr.mxu0 0.0
    %456 = vmatpush1.msra.mxu0 0.0
    %457 = vmatprep.subr.mxu0 0.0
    %458 = vmatpush1.msra.mxu0 0.0
    %459 = vmatprep.subr.mxu0 0.0
    %460 = vmatpush1.msra.mxu0 0.0
    %461 = vmatprep.subr.mxu0 0.0
    %462 = vmatpush1.msra.mxu0 0.0
    %463 = vmatprep.subr.mxu0 0.0
    %464 = vmatpush1.msra.mxu0 0.0
    %465 = vmatprep.subr.mxu0 0.0
    %466 = vmatpush1.msra.mxu0 0.0
    %467 = vmatprep.subr.mxu0 0.0
    %468 = vmatpush1.msra.mxu0 0.0
    %469 = vmatprep.subr.mxu0 0.0
    %470 = vmatpush1.msra.mxu0 0.0
    %471 = vmatprep.subr.mxu0 0.0
    %472 = vmatpush1.msra.mxu0 0.0
    %473 = vmatprep.subr.mxu0 0.0
    %474 = vmatpush1.msra.mxu0 0.0
    %475 = vmatprep.subr.mxu0 0.0
    %476 = vmatpush1.msra.mxu0 0.0
    %477 = vmatprep.subr.mxu0 0.0
    %478 = vmatpush1.msra.mxu0 0.0
    %479 = vmatprep.subr.mxu0 0.0
    %480 = vmatpush1.msra.mxu0 0.0
    %481 = vmatprep.mubr.f32.mxu0 0.0
    %482 = vmatmul.mubr.f32.gmra.mrb[0].mxu0 %v283
    %v483 = vpop.f32.mrb[0].mxu0
    %v484 = vadd.f32 %v279, %v483
    %v485 = vpop.f32.mrb[0].mxu0
    %486 = vmatprep.mubr.f32.mxu0 0.0
    %487 = vmatmul.mubr.f32.gmra.mrb[0].mxu0 %v286
    %v488 = vpop.f32.mrb[0].mxu0
    %v489 = vadd.f32 %v279, %v488
    %v490 = vpop.f32.mrb[0].mxu0
    %491 = vmatprep.mubr.f32.mxu0 0.0
    %492 = vmatmul.mubr.f32.gmra.mrb[0].mxu0 %v289
    %v493 = vpop.f32.mrb[0].mxu0
    %v494 = vadd.f32 %v279, %v493
    %v495 = vpop.f32.mrb[0].mxu0
    %496 = vmatprep.mubr.f32.mxu0 0.0
    %497 = vmatmul.mubr.f32.gmra.mrb[0].mxu0 %v292
    %v498 = vpop.f32.mrb[0].mxu0
    %v499 = vadd.f32 %v279, %v498
    %v500 = vpop.f32.mrb[0].mxu0
    %501 = vmatprep.mubr.f32.mxu0 0.0
    %502 = vmatmul.mubr.f32.gmra.mrb[0].mxu0 %v295
    %v503 = vpop.f32.mrb[0].mxu0
    %v504 = vadd.f32 %v279, %v503
    %v505 = vpop.f32.mrb[0].mxu0
    %506 = vmatprep.mubr.f32.mxu0 0.0
    %507 = vmatmul.mubr.f32.gmra.mrb[0].mxu0 %v298
    %v508 = vpop.f32.mrb[0].mxu0
    %v509 = vadd.f32 %v279, %v508
    %v510 = vpop.f32.mrb[0].mxu0
    %511 = vmatprep.mubr.f32.mxu0 0.0
    %512 = vmatmul.mubr.f32.gmra.mrb[0].mxu0 %v301
    %v513 = vpop.f32.mrb[0].mxu0
    %v514 = vadd.f32 %v279, %v513
    %v515 = vpop.f32.mrb[0].mxu0
    %516 = vmatprep.mubr.f32.mxu0 0.0
    %517 = vmatmul.mubr.f32.gmra.mrb[0].mxu0 %v304
    %v518 = vpop.f32.mrb[0].mxu0
    %v519 = vadd.f32 %v279, %v518
    %v520 = vpop.f32.mrb[0].mxu0
    %521 = vmatprep.mubr.f32.mxu0 0.0
    %522 = vmatmul.mubr.f32.gmra.mrb[0].mxu0 %v307
    %v523 = vpop.f32.mrb[0].mxu0
    %v524 = vadd.f32 %v279, %v523
    %v525 = vpop.f32.mrb[0].mxu0
    %526 = vmatprep.mubr.f32.mxu0 0.0
    %527 = vmatmul.mubr.f32.gmra.mrb[0].mxu0 %v310
    %v528 = vpop.f32.mrb[0].mxu0
    %v529 = vadd.f32 %v279, %v528
    %v530 = vpop.f32.mrb[0].mxu0
    %531 = vmatprep.mubr.f32.mxu0 0.0
    %532 = vmatmul.mubr.f32.gmra.mrb[0].mxu0 %v313
    %v533 = vpop.f32.mrb[0].mxu0
    %v534 = vadd.f32 %v279, %v533
    %v535 = vpop.f32.mrb[0].mxu0
    %536 = vmatprep.mubr.f32.mxu0 0.0
    %537 = vmatmul.mubr.f32.gmra.mrb[0].mxu0 %v316
    %v538 = vpop.f32.mrb[0].mxu0
    %v539 = vadd.f32 %v279, %v538
    %v540 = vpop.f32.mrb[0].mxu0
    %541 = vmatprep.mubr.f32.mxu0 0.0
    %542 = vmatmul.mubr.f32.gmra.mrb[0].mxu0 %v319
    %v543 = vpop.f32.mrb[0].mxu0
    %v544 = vadd.f32 %v279, %v543
    %v545 = vpop.f32.mrb[0].mxu0
    %546 = vmatprep.mubr.f32.mxu0 0.0
    %547 = vmatmul.mubr.f32.gmra.mrb[0].mxu0 %v322
    %v548 = vpop.f32.mrb[0].mxu0
    %v549 = vadd.f32 %v279, %v548
    %v550 = vpop.f32.mrb[0].mxu0
    %551 = vmatprep.mubr.f32.mxu0 0.0
    %552 = vmatmul.mubr.f32.gmra.mrb[0].mxu0 %v325
    %v553 = vpop.f32.mrb[0].mxu0
    %v554 = vadd.f32 %v279, %v553
    %v555 = vpop.f32.mrb[0].mxu0
    %556 = vmatprep.mubr.f32.mxu0 0.0
    %557 = vmatmul.mubr.f32.gmra.mrb[0].mxu0 %v328
    %v558 = vpop.f32.mrb[0].mxu0
    %v559 = vadd.f32 %v279, %v558
    %v560 = vpop.f32.mrb[0].mxu0
    %561 = vmatprep.mubr.f32.mxu0 0.0
    %562 = vmatmul.mubr.f32.gmra.mrb[0].mxu0 %v331
    %v563 = vpop.f32.mrb[0].mxu0
    %v564 = vadd.f32 %v279, %v563
    %v565 = vpop.f32.mrb[0].mxu0
    %566 = vmatprep.mubr.f32.mxu0 0.0
    %567 = vmatmul.mubr.f32.gmra.mrb[0].mxu0 %v334
    %v568 = vpop.f32.mrb[0].mxu0
    %v569 = vadd.f32 %v279, %v568
    %v570 = vpop.f32.mrb[0].mxu0
    %571 = vmatprep.mubr.f32.mxu0 0.0
    %572 = vmatmul.mubr.f32.gmra.mrb[0].mxu0 %v337
    %v573 = vpop.f32.mrb[0].mxu0
    %v574 = vadd.f32 %v279, %v573
    %v575 = vpop.f32.mrb[0].mxu0
    %576 = vmatprep.mubr.f32.mxu0 0.0
    %577 = vmatmul.mubr.f32.gmra.mrb[0].mxu0 %v340
    %v578 = vpop.f32.mrb[0].mxu0
    %v579 = vadd.f32 %v279, %v578
    %v580 = vpop.f32.mrb[0].mxu0
    %581 = vmatprep.mubr.f32.mxu0 0.0
    %582 = vmatmul.mubr.f32.gmra.mrb[0].mxu0 %v343
    %v583 = vpop.f32.mrb[0].mxu0
    %v584 = vadd.f32 %v279, %v583
    %v585 = vpop.f32.mrb[0].mxu0
    %586 = vmatprep.mubr.f32.mxu0 0.0
    %587 = vmatmul.mubr.f32.gmra.mrb[0].mxu0 %v346
    %v588 = vpop.f32.mrb[0].mxu0
    %v589 = vadd.f32 %v279, %v588
    %v590 = vpop.f32.mrb[0].mxu0
    %591 = vmatprep.mubr.f32.mxu0 0.0
    %592 = vmatmul.mubr.f32.gmra.mrb[0].mxu0 %v349
    %v593 = vpop.f32.mrb[0].mxu0
    %v594 = vadd.f32 %v279, %v593
    %v595 = vpop.f32.mrb[0].mxu0
    %596 = vmatprep.mubr.f32.mxu0 0.0
    %597 = vmatmul.mubr.f32.gmra.mrb[0].mxu0 %v352
    %v598 = vpop.f32.mrb[0].mxu0
    %v599 = vadd.f32 %v279, %v598
    %v600 = vpop.f32.mrb[0].mxu0
    %601 = vmatprep.mubr.f32.mxu0 0.0
    %602 = vmatmul.mubr.f32.gmra.mrb[0].mxu0 %v355
    %v603 = vpop.f32.mrb[0].mxu0
    %v604 = vadd.f32 %v279, %v603
    %v605 = vpop.f32.mrb[0].mxu0
    %606 = vmatprep.mubr.f32.mxu0 0.0
    %607 = vmatmul.mubr.f32.gmra.mrb[0].mxu0 %v358
    %v608 = vpop.f32.mrb[0].mxu0
    %v609 = vadd.f32 %v279, %v608
    %v610 = vpop.f32.mrb[0].mxu0
    %611 = vmatprep.mubr.f32.mxu0 0.0
    %612 = vmatmul.mubr.f32.gmra.mrb[0].mxu0 %v361
    %v613 = vpop.f32.mrb[0].mxu0
    %v614 = vadd.f32 %v279, %v613
    %v615 = vpop.f32.mrb[0].mxu0
    %616 = vmatprep.mubr.f32.mxu0 0.0
    %617 = vmatmul.mubr.f32.gmra.mrb[0].mxu0 %v364
    %v618 = vpop.f32.mrb[0].mxu0
    %v619 = vadd.f32 %v279, %v618
    %v620 = vpop.f32.mrb[0].mxu0
    %621 = vmatprep.mubr.f32.mxu0 0.0
    %622 = vmatmul.mubr.f32.gmra.mrb[0].mxu0 %v367
    %v623 = vpop.f32.mrb[0].mxu0
    %v624 = vadd.f32 %v279, %v623
    %v625 = vpop.f32.mrb[0].mxu0
    %626 = vmatprep.mubr.f32.mxu0 0.0
    %627 = vmatmul.mubr.f32.gmra.mrb[0].mxu0 %v370
    %v628 = vpop.f32.mrb[0].mxu0
    %v629 = vadd.f32 %v279, %v628
    %v630 = vpop.f32.mrb[0].mxu0
    %631 = vmatprep.mubr.f32.mxu0 0.0
    %632 = vmatmul.mubr.f32.gmra.mrb[0].mxu0 %v373
    %v633 = vpop.f32.mrb[0].mxu0
    %v634 = vadd.f32 %v279, %v633
    %v635 = vpop.f32.mrb[0].mxu0
    %636 = vmatprep.mubr.f32.mxu0 0.0
    %637 = vmatmul.mubr.f32.gmra.mrb[0].mxu0 %v376
    %v638 = vpop.f32.mrb[0].mxu0
    %v639 = vadd.f32 %v279, %v638
    %v640 = vpop.f32.mrb[0].mxu0
    %641 = vmatprep.mubr.f32.mxu0 0.0
    %642 = vmatmul.mubr.f32.gmra.mrb[0].mxu0 %v379
    %v643 = vpop.f32.mrb[0].mxu0
    %v644 = vadd.f32 %v279, %v643
    %v645 = vpop.f32.mrb[0].mxu0
    %646 = vmatprep.mubr.f32.mxu0 0.0
    %647 = vmatmul.mubr.f32.gmra.mrb[0].mxu0 %v382
    %v648 = vpop.f32.mrb[0].mxu0
    %v649 = vadd.f32 %v279, %v648
    %v650 = vpop.f32.mrb[0].mxu0
    %651 = vmatprep.mubr.f32.mxu0 0.0
    %652 = vmatmul.mubr.f32.gmra.mrb[0].mxu0 %v385
    %v653 = vpop.f32.mrb[0].mxu0
    %v654 = vadd.f32 %v279, %v653
    %v655 = vpop.f32.mrb[0].mxu0
    %656 = vmatprep.mubr.f32.mxu0 0.0
    %657 = vmatmul.mubr.f32.gmra.mrb[0].mxu0 %v388
    %v658 = vpop.f32.mrb[0].mxu0
    %v659 = vadd.f32 %v279, %v658
    %v660 = vpop.f32.mrb[0].mxu0
    %661 = vmatprep.mubr.f32.mxu0 0.0
    %662 = vmatmul.mubr.f32.gmra.mrb[0].mxu0 %v391
    %v663 = vpop.f32.mrb[0].mxu0
    %v664 = vadd.f32 %v279, %v663
    %v665 = vpop.f32.mrb[0].mxu0
    %666 = vmatprep.mubr.f32.mxu0 0.0
    %667 = vmatmul.mubr.f32.gmra.mrb[0].mxu0 %v394
    %v668 = vpop.f32.mrb[0].mxu0
    %v669 = vadd.f32 %v279, %v668
    %v670 = vpop.f32.mrb[0].mxu0
    %671 = vmatprep.mubr.f32.mxu0 0.0
    %672 = vmatmul.mubr.f32.gmra.mrb[0].mxu0 %v397
    %v673 = vpop.f32.mrb[0].mxu0
    %v674 = vadd.f32 %v279, %v673
    %v675 = vpop.f32.mrb[0].mxu0
    %676 = vmatprep.mubr.f32.mxu0 0.0
    %677 = vmatmul.mubr.f32.gmra.mrb[0].mxu0 %v400
    %v678 = vpop.f32.mrb[0].mxu0
    %v679 = vadd.f32 %v279, %v678
    %v680 = vpop.f32.mrb[0].mxu0
    %681 = vmatprep.mubr.f32.mxu0 0.0
    %682 = vmatmul.mubr.f32.gmra.mrb[0].mxu0 %v403
    %v683 = vpop.f32.mrb[0].mxu0
    %v684 = vadd.f32 %v279, %v683
    %v685 = vpop.f32.mrb[0].mxu0
    %686 = vmatprep.mubr.f32.mxu0 0.0
    %687 = vmatmul.mubr.f32.gmra.mrb[0].mxu0 %v406
    %v688 = vpop.f32.mrb[0].mxu0
    %v689 = vadd.f32 %v279, %v688
    %v690 = vpop.f32.mrb[0].mxu0
    %691 = vmatprep.mubr.f32.mxu0 0.0
    %692 = vmatmul.mubr.f32.gmra.mrb[0].mxu0 %v409
    %v693 = vpop.f32.mrb[0].mxu0
    %v694 = vadd.f32 %v279, %v693
    %v695 = vpop.f32.mrb[0].mxu0
    %696 = vmatprep.mubr.f32.mxu0 0.0
    %697 = vmatmul.mubr.f32.gmra.mrb[0].mxu0 %v412
    %v698 = vpop.f32.mrb[0].mxu0
    %v699 = vadd.f32 %v279, %v698
    %v700 = vpop.f32.mrb[0].mxu0
    %701 = vmatprep.mubr.f32.mxu0 0.0
    %702 = vmatmul.mubr.f32.gmra.mrb[0].mxu0 %v415
    %v703 = vpop.f32.mrb[0].mxu0
    %v704 = vadd.f32 %v279, %v703
    %v705 = vpop.f32.mrb[0].mxu0
    %706 = vdwg.mxu0
    %v707 = vtanh.pop %v484
    %v708 = vtanh.pop %v489
    %v709 = vtanh.pop %v494
    %v710 = vtanh.pop %v499
    %v711 = vtanh.pop %v504
    %v712 = vtanh.pop %v509
    %v713 = vtanh.pop %v514
    %v714 = vtanh.pop %v519
    %v715 = vtanh.pop %v524
    %v716 = vtanh.pop %v529
    %v717 = vtanh.pop %v534
    %v718 = vtanh.pop %v539
    %v719 = vtanh.pop %v544
    %v720 = vtanh.pop %v549
    %v721 = vtanh.pop %v554
    %v722 = vtanh.pop %v559
    %v723 = vtanh.pop %v564
    %v724 = vtanh.pop %v569
    %v725 = vtanh.pop %v574
    %v726 = vtanh.pop %v579
    %v727 = vtanh.pop %v584
    %v728 = vtanh.pop %v589
    %v729 = vtanh.pop %v594
    %v730 = vtanh.pop %v599
    %v731 = vtanh.pop %v604
    %v732 = vtanh.pop %v609
    %v733 = vtanh.pop %v614
    %v734 = vtanh.pop %v619
    %v735 = vtanh.pop %v624
    %v736 = vtanh.pop %v629
    %v737 = vtanh.pop %v634
    %v738 = vtanh.pop %v639
    %v739 = vtanh.pop %v644
    %v740 = vtanh.pop %v649
    %v741 = vtanh.pop %v654
    %v742 = vtanh.pop %v659
    %v743 = vtanh.pop %v664
    %v744 = vtanh.pop %v669
    %v745 = vtanh.pop %v674
    %v746 = vtanh.pop %v679
    %v747 = vtanh.pop %v684
    %v748 = vtanh.pop %v689
    %v749 = vtanh.pop %v694
    %v750 = vtanh.pop %v699
    %v751 = vtanh.pop %v704
    %v752 = vld [vmem:[%s4] sm:$0xff]
    %v753 = vld [vmem:[%s4 + $0x8] sm:$0xff]
    %v754 = vld [vmem:[%s5] sm:$0x1]
    %v756 = vlaneseq
    %v757 = vshrl.u32 %v756, 7
    %v758 = vsub.s32 0, %v757
    %v759 = vrot.slane %v754, %v758
    %vm761 = vcmask 130048
    %v763 = vsel %vm761, %v707, 0
    %v766 = vsel %vm761, %v708, 0
    %v769 = vsel %vm761, %v709, 0
    %v772 = vsel %vm761, %v710, 0
    %v775 = vsel %vm761, %v711, 0
    %v778 = vsel %vm761, %v712, 0
    %v781 = vsel %vm761, %v713, 0
    %v784 = vsel %vm761, %v714, 0
    %v787 = vsel %vm761, %v715, 0
    %v790 = vsel %vm761, %v716, 0
    %v793 = vsel %vm761, %v717, 0
    %v796 = vsel %vm761, %v718, 0
    %v799 = vsel %vm761, %v719, 0
    %v802 = vsel %vm761, %v720, 0
    %v805 = vsel %vm761, %v721, 0
    %v808 = vsel %vm761, %v722, 0
    %v811 = vsel %vm761, %v723, 0
    %v814 = vsel %vm761, %v724, 0
    %v817 = vsel %vm761, %v725, 0
    %v820 = vsel %vm761, %v726, 0
    %v823 = vsel %vm761, %v727, 0
    %v826 = vsel %vm761, %v728, 0
    %v829 = vsel %vm761, %v729, 0
    %v832 = vsel %vm761, %v730, 0
    %v835 = vsel %vm761, %v731, 0
    %v838 = vsel %vm761, %v732, 0
    %v841 = vsel %vm761, %v733, 0
    %v844 = vsel %vm761, %v734, 0
    %v847 = vsel %vm761, %v735, 0
    %v850 = vsel %vm761, %v736, 0
    %v853 = vsel %vm761, %v737, 0
    %v856 = vsel %vm761, %v738, 0
    %v859 = vsel %vm761, %v739, 0
    %v862 = vsel %vm761, %v740, 0
    %v865 = vsel %vm761, %v741, 0
    %v868 = vsel %vm761, %v742, 0
    %v871 = vsel %vm761, %v743, 0
    %v874 = vsel %vm761, %v744, 0
    %v877 = vsel %vm761, %v745, 0
    %v880 = vsel %vm761, %v746, 0
    %v883 = vsel %vm761, %v747, 0
    %v886 = vsel %vm761, %v748, 0
    %v889 = vsel %vm761, %v749, 0
    %v892 = vsel %vm761, %v750, 0
    %v895 = vsel %vm761, %v751, 0
    %897 = vmatprep.subr.mxu0 0.0
    %898 = vmatpush1.msra.mxu0 %v752
    %899 = vmatprep.subr.mxu0 0.0
    %900 = vmatpush1.msra.mxu0 %v753
    %901 = vmatprep.subr.mxu0 0.0
    %902 = vmatpush1.msra.mxu0 0.0
    %903 = vmatprep.subr.mxu0 0.0
    %904 = vmatpush1.msra.mxu0 0.0
    %905 = vmatprep.subr.mxu0 0.0
    %906 = vmatpush1.msra.mxu0 0.0
    %907 = vmatprep.subr.mxu0 0.0
    %908 = vmatpush1.msra.mxu0 0.0
    %909 = vmatprep.subr.mxu0 0.0
    %910 = vmatpush1.msra.mxu0 0.0
    %911 = vmatprep.subr.mxu0 0.0
    %912 = vmatpush1.msra.mxu0 0.0
    %913 = vmatprep.subr.mxu0 0.0
    %914 = vmatpush1.msra.mxu0 0.0
    %915 = vmatprep.subr.mxu0 0.0
    %916 = vmatpush1.msra.mxu0 0.0
    %917 = vmatprep.subr.mxu0 0.0
    %918 = vmatpush1.msra.mxu0 0.0
    %919 = vmatprep.subr.mxu0 0.0
    %920 = vmatpush1.msra.mxu0 0.0
    %921 = vmatprep.subr.mxu0 0.0
    %922 = vmatpush1.msra.mxu0 0.0
    %923 = vmatprep.subr.mxu0 0.0
    %924 = vmatpush1.msra.mxu0 0.0
    %925 = vmatprep.subr.mxu0 0.0
    %926 = vmatpush1.msra.mxu0 0.0
    %927 = vmatprep.subr.mxu0 0.0
    %928 = vmatpush1.msra.mxu0 0.0
    %929 = vmatprep.subr.mxu0 0.0
    %930 = vmatpush1.msra.mxu0 0.0
    %931 = vmatprep.subr.mxu0 0.0
    %932 = vmatpush1.msra.mxu0 0.0
    %933 = vmatprep.subr.mxu0 0.0
    %934 = vmatpush1.msra.mxu0 0.0
    %935 = vmatprep.subr.mxu0 0.0
    %936 = vmatpush1.msra.mxu0 0.0
    %937 = vmatprep.subr.mxu0 0.0
    %938 = vmatpush1.msra.mxu0 0.0
    %939 = vmatprep.subr.mxu0 0.0
    %940 = vmatpush1.msra.mxu0 0.0
    %941 = vmatprep.subr.mxu0 0.0
    %942 = vmatpush1.msra.mxu0 0.0
    %943 = vmatprep.subr.mxu0 0.0
    %944 = vmatpush1.msra.mxu0 0.0
    %945 = vmatprep.subr.mxu0 0.0
    %946 = vmatpush1.msra.mxu0 0.0
    %947 = vmatprep.subr.mxu0 0.0
    %948 = vmatpush1.msra.mxu0 0.0
    %949 = vmatprep.subr.mxu0 0.0
    %950 = vmatpush1.msra.mxu0 0.0
    %951 = vmatprep.subr.mxu0 0.0
    %952 = vmatpush1.msra.mxu0 0.0
    %953 = vmatprep.subr.mxu0 0.0
    %954 = vmatpush1.msra.mxu0 0.0
    %955 = vmatprep.subr.mxu0 0.0
    %956 = vmatpush1.msra.mxu0 0.0
    %957 = vmatprep.subr.mxu0 0.0
    %958 = vmatpush1.msra.mxu0 0.0
    %959 = vmatprep.subr.mxu0 0.0
    %960 = vmatpush1.msra.mxu0 0.0
    %961 = vmatprep.mubr.f32.mxu0 0.0
    %962 = vmatmul.mubr.f32.gmra.mrb[0].mxu0 %v763
    %v963 = vpop.f32.mrb[0].mxu0
    %v964 = vadd.f32 %v759, %v963
    %v965 = vpop.f32.mrb[0].mxu0
    %966 = vmatprep.mubr.f32.mxu0 0.0
    %967 = vmatmul.mubr.f32.gmra.mrb[0].mxu0 %v766
    %v968 = vpop.f32.mrb[0].mxu0
    %v969 = vadd.f32 %v759, %v968
    %v970 = vpop.f32.mrb[0].mxu0
    %971 = vmatprep.mubr.f32.mxu0 0.0
    %972 = vmatmul.mubr.f32.gmra.mrb[0].mxu0 %v769
    %v973 = vpop.f32.mrb[0].mxu0
    %v974 = vadd.f32 %v759, %v973
    %v975 = vpop.f32.mrb[0].mxu0
    %976 = vmatprep.mubr.f32.mxu0 0.0
    %977 = vmatmul.mubr.f32.gmra.mrb[0].mxu0 %v772
    %v978 = vpop.f32.mrb[0].mxu0
    %v979 = vadd.f32 %v759, %v978
    %v980 = vpop.f32.mrb[0].mxu0
    %981 = vmatprep.mubr.f32.mxu0 0.0
    %982 = vmatmul.mubr.f32.gmra.mrb[0].mxu0 %v775
    %v983 = vpop.f32.mrb[0].mxu0
    %v984 = vadd.f32 %v759, %v983
    %v985 = vpop.f32.mrb[0].mxu0
    %986 = vmatprep.mubr.f32.mxu0 0.0
    %987 = vmatmul.mubr.f32.gmra.mrb[0].mxu0 %v778
    %v988 = vpop.f32.mrb[0].mxu0
    %v989 = vadd.f32 %v759, %v988
    %v990 = vpop.f32.mrb[0].mxu0
    %991 = vmatprep.mubr.f32.mxu0 0.0
    %992 = vmatmul.mubr.f32.gmra.mrb[0].mxu0 %v781
    %v993 = vpop.f32.mrb[0].mxu0
    %v994 = vadd.f32 %v759, %v993
    %v995 = vpop.f32.mrb[0].mxu0
    %996 = vmatprep.mubr.f32.mxu0 0.0
    %997 = vmatmul.mubr.f32.gmra.mrb[0].mxu0 %v784
    %v998 = vpop.f32.mrb[0].mxu0
    %v999 = vadd.f32 %v759, %v998
    %v1000 = vpop.f32.mrb[0].mxu0
    %1001 = vmatprep.mubr.f32.mxu0 0.0
    %1002 = vmatmul.mubr.f32.gmra.mrb[0].mxu0 %v787
    %v1003 = vpop.f32.mrb[0].mxu0
    %v1004 = vadd.f32 %v759, %v1003
    %v1005 = vpop.f32.mrb[0].mxu0
    %1006 = vmatprep.mubr.f32.mxu0 0.0
    %1007 = vmatmul.mubr.f32.gmra.mrb[0].mxu0 %v790
    %v1008 = vpop.f32.mrb[0].mxu0
    %v1009 = vadd.f32 %v759, %v1008
    %v1010 = vpop.f32.mrb[0].mxu0
    %1011 = vmatprep.mubr.f32.mxu0 0.0
    %1012 = vmatmul.mubr.f32.gmra.mrb[0].mxu0 %v793
    %v1013 = vpop.f32.mrb[0].mxu0
    %v1014 = vadd.f32 %v759, %v1013
    %v1015 = vpop.f32.mrb[0].mxu0
    %1016 = vmatprep.mubr.f32.mxu0 0.0
    %1017 = vmatmul.mubr.f32.gmra.mrb[0].mxu0 %v796
    %v1018 = vpop.f32.mrb[0].mxu0
    %v1019 = vadd.f32 %v759, %v1018
    %v1020 = vpop.f32.mrb[0].mxu0
    %1021 = vmatprep.mubr.f32.mxu0 0.0
    %1022 = vmatmul.mubr.f32.gmra.mrb[0].mxu0 %v799
    %v1023 = vpop.f32.mrb[0].mxu0
    %v1024 = vadd.f32 %v759, %v1023
    %v1025 = vpop.f32.mrb[0].mxu0
    %1026 = vmatprep.mubr.f32.mxu0 0.0
    %1027 = vmatmul.mubr.f32.gmra.mrb[0].mxu0 %v802
    %v1028 = vpop.f32.mrb[0].mxu0
    %v1029 = vadd.f32 %v759, %v1028
    %v1030 = vpop.f32.mrb[0].mxu0
    %1031 = vmatprep.mubr.f32.mxu0 0.0
    %1032 = vmatmul.mubr.f32.gmra.mrb[0].mxu0 %v805
    %v1033 = vpop.f32.mrb[0].mxu0
    %v1034 = vadd.f32 %v759, %v1033
    %v1035 = vpop.f32.mrb[0].mxu0
    %1036 = vmatprep.mubr.f32.mxu0 0.0
    %1037 = vmatmul.mubr.f32.gmra.mrb[0].mxu0 %v808
    %v1038 = vpop.f32.mrb[0].mxu0
    %v1039 = vadd.f32 %v759, %v1038
    %v1040 = vpop.f32.mrb[0].mxu0
    %1041 = vmatprep.mubr.f32.mxu0 0.0
    %1042 = vmatmul.mubr.f32.gmra.mrb[0].mxu0 %v811
    %v1043 = vpop.f32.mrb[0].mxu0
    %v1044 = vadd.f32 %v759, %v1043
    %v1045 = vpop.f32.mrb[0].mxu0
    %1046 = vmatprep.mubr.f32.mxu0 0.0
    %1047 = vmatmul.mubr.f32.gmra.mrb[0].mxu0 %v814
    %v1048 = vpop.f32.mrb[0].mxu0
    %v1049 = vadd.f32 %v759, %v1048
    %v1050 = vpop.f32.mrb[0].mxu0
    %1051 = vmatprep.mubr.f32.mxu0 0.0
    %1052 = vmatmul.mubr.f32.gmra.mrb[0].mxu0 %v817
    %v1053 = vpop.f32.mrb[0].mxu0
    %v1054 = vadd.f32 %v759, %v1053
    %v1055 = vpop.f32.mrb[0].mxu0
    %1056 = vmatprep.mubr.f32.mxu0 0.0
    %1057 = vmatmul.mubr.f32.gmra.mrb[0].mxu0 %v820
    %v1058 = vpop.f32.mrb[0].mxu0
    %v1059 = vadd.f32 %v759, %v1058
    %v1060 = vpop.f32.mrb[0].mxu0
    %1061 = vmatprep.mubr.f32.mxu0 0.0
    %1062 = vmatmul.mubr.f32.gmra.mrb[0].mxu0 %v823
    %v1063 = vpop.f32.mrb[0].mxu0
    %v1064 = vadd.f32 %v759, %v1063
    %v1065 = vpop.f32.mrb[0].mxu0
    %1066 = vmatprep.mubr.f32.mxu0 0.0
    %1067 = vmatmul.mubr.f32.gmra.mrb[0].mxu0 %v826
    %v1068 = vpop.f32.mrb[0].mxu0
    %v1069 = vadd.f32 %v759, %v1068
    %v1070 = vpop.f32.mrb[0].mxu0
    %1071 = vmatprep.mubr.f32.mxu0 0.0
    %1072 = vmatmul.mubr.f32.gmra.mrb[0].mxu0 %v829
    %v1073 = vpop.f32.mrb[0].mxu0
    %v1074 = vadd.f32 %v759, %v1073
    %v1075 = vpop.f32.mrb[0].mxu0
    %1076 = vmatprep.mubr.f32.mxu0 0.0
    %1077 = vmatmul.mubr.f32.gmra.mrb[0].mxu0 %v832
    %v1078 = vpop.f32.mrb[0].mxu0
    %v1079 = vadd.f32 %v759, %v1078
    %v1080 = vpop.f32.mrb[0].mxu0
    %1081 = vmatprep.mubr.f32.mxu0 0.0
    %1082 = vmatmul.mubr.f32.gmra.mrb[0].mxu0 %v835
    %v1083 = vpop.f32.mrb[0].mxu0
    %v1084 = vadd.f32 %v759, %v1083
    %v1085 = vpop.f32.mrb[0].mxu0
    %1086 = vmatprep.mubr.f32.mxu0 0.0
    %1087 = vmatmul.mubr.f32.gmra.mrb[0].mxu0 %v838
    %v1088 = vpop.f32.mrb[0].mxu0
    %v1089 = vadd.f32 %v759, %v1088
    %v1090 = vpop.f32.mrb[0].mxu0
    %1091 = vmatprep.mubr.f32.mxu0 0.0
    %1092 = vmatmul.mubr.f32.gmra.mrb[0].mxu0 %v841
    %v1093 = vpop.f32.mrb[0].mxu0
    %v1094 = vadd.f32 %v759, %v1093
    %v1095 = vpop.f32.mrb[0].mxu0
    %1096 = vmatprep.mubr.f32.mxu0 0.0
    %1097 = vmatmul.mubr.f32.gmra.mrb[0].mxu0 %v844
    %v1098 = vpop.f32.mrb[0].mxu0
    %v1099 = vadd.f32 %v759, %v1098
    %v1100 = vpop.f32.mrb[0].mxu0
    %1101 = vmatprep.mubr.f32.mxu0 0.0
    %1102 = vmatmul.mubr.f32.gmra.mrb[0].mxu0 %v847
    %v1103 = vpop.f32.mrb[0].mxu0
    %v1104 = vadd.f32 %v759, %v1103
    %v1105 = vpop.f32.mrb[0].mxu0
    %1106 = vmatprep.mubr.f32.mxu0 0.0
    %1107 = vmatmul.mubr.f32.gmra.mrb[0].mxu0 %v850
    %v1108 = vpop.f32.mrb[0].mxu0
    %v1109 = vadd.f32 %v759, %v1108
    %v1110 = vpop.f32.mrb[0].mxu0
    %1111 = vmatprep.mubr.f32.mxu0 0.0
    %1112 = vmatmul.mubr.f32.gmra.mrb[0].mxu0 %v853
    %v1113 = vpop.f32.mrb[0].mxu0
    %v1114 = vadd.f32 %v759, %v1113
    %v1115 = vpop.f32.mrb[0].mxu0
    %1116 = vmatprep.mubr.f32.mxu0 0.0
    %1117 = vmatmul.mubr.f32.gmra.mrb[0].mxu0 %v856
    %v1118 = vpop.f32.mrb[0].mxu0
    %v1119 = vadd.f32 %v759, %v1118
    %v1120 = vpop.f32.mrb[0].mxu0
    %1121 = vmatprep.mubr.f32.mxu0 0.0
    %1122 = vmatmul.mubr.f32.gmra.mrb[0].mxu0 %v859
    %v1123 = vpop.f32.mrb[0].mxu0
    %v1124 = vadd.f32 %v759, %v1123
    %v1125 = vpop.f32.mrb[0].mxu0
    %1126 = vmatprep.mubr.f32.mxu0 0.0
    %1127 = vmatmul.mubr.f32.gmra.mrb[0].mxu0 %v862
    %v1128 = vpop.f32.mrb[0].mxu0
    %v1129 = vadd.f32 %v759, %v1128
    %v1130 = vpop.f32.mrb[0].mxu0
    %1131 = vmatprep.mubr.f32.mxu0 0.0
    %1132 = vmatmul.mubr.f32.gmra.mrb[0].mxu0 %v865
    %v1133 = vpop.f32.mrb[0].mxu0
    %v1134 = vadd.f32 %v759, %v1133
    %v1135 = vpop.f32.mrb[0].mxu0
    %1136 = vmatprep.mubr.f32.mxu0 0.0
    %1137 = vmatmul.mubr.f32.gmra.mrb[0].mxu0 %v868
    %v1138 = vpop.f32.mrb[0].mxu0
    %v1139 = vadd.f32 %v759, %v1138
    %v1140 = vpop.f32.mrb[0].mxu0
    %1141 = vmatprep.mubr.f32.mxu0 0.0
    %1142 = vmatmul.mubr.f32.gmra.mrb[0].mxu0 %v871
    %v1143 = vpop.f32.mrb[0].mxu0
    %v1144 = vadd.f32 %v759, %v1143
    %v1145 = vpop.f32.mrb[0].mxu0
    %1146 = vmatprep.mubr.f32.mxu0 0.0
    %1147 = vmatmul.mubr.f32.gmra.mrb[0].mxu0 %v874
    %v1148 = vpop.f32.mrb[0].mxu0
    %v1149 = vadd.f32 %v759, %v1148
    %v1150 = vpop.f32.mrb[0].mxu0
    %1151 = vmatprep.mubr.f32.mxu0 0.0
    %1152 = vmatmul.mubr.f32.gmra.mrb[0].mxu0 %v877
    %v1153 = vpop.f32.mrb[0].mxu0
    %v1154 = vadd.f32 %v759, %v1153
    %v1155 = vpop.f32.mrb[0].mxu0
    %1156 = vmatprep.mubr.f32.mxu0 0.0
    %1157 = vmatmul.mubr.f32.gmra.mrb[0].mxu0 %v880
    %v1158 = vpop.f32.mrb[0].mxu0
    %v1159 = vadd.f32 %v759, %v1158
    %v1160 = vpop.f32.mrb[0].mxu0
    %1161 = vmatprep.mubr.f32.mxu0 0.0
    %1162 = vmatmul.mubr.f32.gmra.mrb[0].mxu0 %v883
    %v1163 = vpop.f32.mrb[0].mxu0
    %v1164 = vadd.f32 %v759, %v1163
    %v1165 = vpop.f32.mrb[0].mxu0
    %1166 = vmatprep.mubr.f32.mxu0 0.0
    %1167 = vmatmul.mubr.f32.gmra.mrb[0].mxu0 %v886
    %v1168 = vpop.f32.mrb[0].mxu0
    %v1169 = vadd.f32 %v759, %v1168
    %v1170 = vpop.f32.mrb[0].mxu0
    %1171 = vmatprep.mubr.f32.mxu0 0.0
    %1172 = vmatmul.mubr.f32.gmra.mrb[0].mxu0 %v889
    %v1173 = vpop.f32.mrb[0].mxu0
    %v1174 = vadd.f32 %v759, %v1173
    %v1175 = vpop.f32.mrb[0].mxu0
    %1176 = vmatprep.mubr.f32.mxu0 0.0
    %1177 = vmatmul.mubr.f32.gmra.mrb[0].mxu0 %v892
    %v1178 = vpop.f32.mrb[0].mxu0
    %v1179 = vadd.f32 %v759, %v1178
    %v1180 = vpop.f32.mrb[0].mxu0
    %1181 = vmatprep.mubr.f32.mxu0 0.0
    %1182 = vmatmul.mubr.f32.gmra.mrb[0].mxu0 %v895
    %v1183 = vpop.f32.mrb[0].mxu0
    %v1184 = vadd.f32 %v759, %v1183
    %v1185 = vpop.f32.mrb[0].mxu0
    %1186 = vdwg.mxu0
    %vm1187 = vcmask 64512
    %v1188 = vsel %vm1187, %v964, -inf
    %v1189 = vsel %vm1187, %v969, -inf
    %v1190 = vsel %vm1187, %v974, -inf
    %v1191 = vsel %vm1187, %v979, -inf
    %v1192 = vsel %vm1187, %v984, -inf
    %v1193 = vmax.f32 %v1188, %v1192
    %v1194 = vsel %vm1187, %v989, -inf
    %v1195 = vmax.f32 %v1189, %v1194
    %v1196 = vsel %vm1187, %v994, -inf
    %v1197 = vmax.f32 %v1190, %v1196
    %v1198 = vsel %vm1187, %v999, -inf
    %v1199 = vmax.f32 %v1191, %v1198
    %v1200 = vsel %vm1187, %v1004, -inf
    %v1201 = vmax.f32 %v1193, %v1200
    %v1202 = vsel %vm1187, %v1009, -inf
    %v1203 = vmax.f32 %v1195, %v1202
    %v1204 = vsel %vm1187, %v1014, -inf
    %v1205 = vmax.f32 %v1197, %v1204
    %v1206 = vsel %vm1187, %v1019, -inf
    %v1207 = vmax.f32 %v1199, %v1206
    %v1208 = vsel %vm1187, %v1024, -inf
    %v1209 = vmax.f32 %v1201, %v1208
    %v1210 = vsel %vm1187, %v1029, -inf
    %v1211 = vmax.f32 %v1203, %v1210
    %v1212 = vsel %vm1187, %v1034, -inf
    %v1213 = vmax.f32 %v1205, %v1212
    %v1214 = vsel %vm1187, %v1039, -inf
    %v1215 = vmax.f32 %v1207, %v1214
    %v1216 = vsel %vm1187, %v1044, -inf
    %v1217 = vmax.f32 %v1209, %v1216
    %v1218 = vsel %vm1187, %v1049, -inf
    %v1219 = vmax.f32 %v1211, %v1218
    %v1220 = vsel %vm1187, %v1054, -inf
    %v1221 = vmax.f32 %v1213, %v1220
    %v1222 = vsel %vm1187, %v1059, -inf
    %v1223 = vmax.f32 %v1215, %v1222
    %v1224 = vsel %vm1187, %v1064, -inf
    %v1225 = vmax.f32 %v1217, %v1224
    %v1226 = vsel %vm1187, %v1069, -inf
    %v1227 = vmax.f32 %v1219, %v1226
    %v1228 = vsel %vm1187, %v1074, -inf
    %v1229 = vmax.f32 %v1221, %v1228
    %v1230 = vsel %vm1187, %v1079, -inf
    %v1231 = vmax.f32 %v1223, %v1230
    %v1232 = vsel %vm1187, %v1084, -inf
    %v1233 = vmax.f32 %v1225, %v1232
    %v1234 = vsel %vm1187, %v1089, -inf
    %v1235 = vmax.f32 %v1227, %v1234
    %v1236 = vsel %vm1187, %v1094, -inf
    %v1237 = vmax.f32 %v1229, %v1236
    %v1238 = vsel %vm1187, %v1099, -inf
    %v1239 = vmax.f32 %v1231, %v1238
    %v1240 = vsel %vm1187, %v1104, -inf
    %v1241 = vmax.f32 %v1233, %v1240
    %v1242 = vsel %vm1187, %v1109, -inf
    %v1243 = vmax.f32 %v1235, %v1242
    %v1244 = vsel %vm1187, %v1114, -inf
    %v1245 = vmax.f32 %v1237, %v1244
    %v1246 = vsel %vm1187, %v1119, -inf
    %v1247 = vmax.f32 %v1239, %v1246
    %v1248 = vsel %vm1187, %v1124, -inf
    %v1249 = vmax.f32 %v1241, %v1248
    %v1250 = vsel %vm1187, %v1129, -inf
    %v1251 = vmax.f32 %v1243, %v1250
    %v1252 = vsel %vm1187, %v1134, -inf
    %v1253 = vmax.f32 %v1245, %v1252
    %v1254 = vsel %vm1187, %v1139, -inf
    %v1255 = vmax.f32 %v1247, %v1254
    %v1256 = vsel %vm1187, %v1144, -inf
    %v1257 = vmax.f32 %v1249, %v1256
    %v1258 = vsel %vm1187, %v1149, -inf
    %v1259 = vmax.f32 %v1251, %v1258
    %v1260 = vsel %vm1187, %v1154, -inf
    %v1261 = vmax.f32 %v1253, %v1260
    %v1262 = vsel %vm1187, %v1159, -inf
    %v1263 = vmax.f32 %v1255, %v1262
    %v1264 = vsel %vm1187, %v1164, -inf
    %v1265 = vmax.f32 %v1257, %v1264
    %v1266 = vsel %vm1187, %v1169, -inf
    %v1267 = vmax.f32 %v1259, %v1266
    %v1268 = vsel %vm1187, %v1174, -inf
    %v1269 = vmax.f32 %v1261, %v1268
    %v1270 = vsel %vm1187, %v1179, -inf
    %v1271 = vmax.f32 %v1263, %v1270
    %vm1272 = vcmask 62464
    %v1273 = vsel %vm1272, %v1184, -inf
    %v1274 = vmax.f32 %v1265, %v1273
    %v1275 = vmax.f32 %v1274, %v1267
    %v1276 = vmax.f32 %v1269, %v1271
    %v1277 = vmax.f32 %v1275, %v1276
    %v1278 = vrot.slane %v1277, 4
    %v1279 = vmax.f32 %v1277, %v1278
    %v1280 = vrot.slane %v1279, 2
    %v1281 = vmax.f32 %v1279, %v1280
    %v1282 = vrot.slane %v1281, 1
    %v1283 = vmax.f32 %v1281, %v1282
    %v1284 = vsub.f32 %v964, %v1283
    %v1285 = vsub.f32 %v969, %v1283
    %v1286 = vsub.f32 %v974, %v1283
    %v1287 = vsub.f32 %v979, %v1283
    %v1288 = vsub.f32 %v984, %v1283
    %v1289 = vsub.f32 %v989, %v1283
    %v1290 = vsub.f32 %v994, %v1283
    %v1291 = vsub.f32 %v999, %v1283
    %v1292 = vsub.f32 %v1004, %v1283
    %v1293 = vsub.f32 %v1009, %v1283
    %v1294 = vsub.f32 %v1014, %v1283
    %v1295 = vsub.f32 %v1019, %v1283
    %v1296 = vsub.f32 %v1024, %v1283
    %v1297 = vsub.f32 %v1029, %v1283
    %v1298 = vsub.f32 %v1034, %v1283
    %v1299 = vsub.f32 %v1039, %v1283
    %v1300 = vsub.f32 %v1044, %v1283
    %v1301 = vsub.f32 %v1049, %v1283
    %v1302 = vsub.f32 %v1054, %v1283
    %v1303 = vsub.f32 %v1059, %v1283
    %v1304 = vsub.f32 %v1064, %v1283
    %v1305 = vsub.f32 %v1069, %v1283
    %v1306 = vsub.f32 %v1074, %v1283
    %v1307 = vsub.f32 %v1079, %v1283
    %v1308 = vsub.f32 %v1084, %v1283
    %v1309 = vsub.f32 %v1089, %v1283
    %v1310 = vsub.f32 %v1094, %v1283
    %v1311 = vsub.f32 %v1099, %v1283
    %v1312 = vsub.f32 %v1104, %v1283
    %v1313 = vsub.f32 %v1109, %v1283
    %v1314 = vsub.f32 %v1114, %v1283
    %v1315 = vsub.f32 %v1119, %v1283
    %v1316 = vsub.f32 %v1124, %v1283
    %v1317 = vsub.f32 %v1129, %v1283
    %v1318 = vsub.f32 %v1134, %v1283
    %v1319 = vsub.f32 %v1139, %v1283
    %v1320 = vsub.f32 %v1144, %v1283
    %v1321 = vsub.f32 %v1149, %v1283
    %v1322 = vsub.f32 %v1154, %v1283
    %v1323 = vsub.f32 %v1159, %v1283
    %v1324 = vsub.f32 %v1164, %v1283
    %v1325 = vsub.f32 %v1169, %v1283
    %v1326 = vsub.f32 %v1174, %v1283
    %v1327 = vsub.f32 %v1179, %v1283
    %v1328 = vsub.f32 %v1184, %v1283
    %v1329 = vmul.f32 %v1284, 1.442695
    %v1330 = vpow.pop %v1329
    %v1331 = vmul.f32 %v1285, 1.442695
    %v1332 = vpow.pop %v1331
    %v1333 = vmul.f32 %v1286, 1.442695
    %v1334 = vpow.pop %v1333
    %v1335 = vmul.f32 %v1287, 1.442695
    %v1336 = vpow.pop %v1335
    %v1337 = vmul.f32 %v1288, 1.442695
    %v1338 = vpow.pop %v1337
    %v1339 = vmul.f32 %v1289, 1.442695
    %v1340 = vpow.pop %v1339
    %v1341 = vmul.f32 %v1290, 1.442695
    %v1342 = vpow.pop %v1341
    %v1343 = vmul.f32 %v1291, 1.442695
    %v1344 = vpow.pop %v1343
    %v1345 = vmul.f32 %v1292, 1.442695
    %v1346 = vpow.pop %v1345
    %v1347 = vmul.f32 %v1293, 1.442695
    %v1348 = vpow.pop %v1347
    %v1349 = vmul.f32 %v1294, 1.442695
    %v1350 = vpow.pop %v1349
    %v1351 = vmul.f32 %v1295, 1.442695
    %v1352 = vpow.pop %v1351
    %v1353 = vmul.f32 %v1296, 1.442695
    %v1354 = vpow.pop %v1353
    %v1355 = vmul.f32 %v1297, 1.442695
    %v1356 = vpow.pop %v1355
    %v1357 = vmul.f32 %v1298, 1.442695
    %v1358 = vpow.pop %v1357
    %v1359 = vmul.f32 %v1299, 1.442695
    %v1360 = vpow.pop %v1359
    %v1361 = vmul.f32 %v1300, 1.442695
    %v1362 = vpow.pop %v1361
    %v1363 = vmul.f32 %v1301, 1.442695
    %v1364 = vpow.pop %v1363
    %v1365 = vmul.f32 %v1302, 1.442695
    %v1366 = vpow.pop %v1365
    %v1367 = vmul.f32 %v1303, 1.442695
    %v1368 = vpow.pop %v1367
    %v1369 = vmul.f32 %v1304, 1.442695
    %v1370 = vpow.pop %v1369
    %v1371 = vmul.f32 %v1305, 1.442695
    %v1372 = vpow.pop %v1371
    %v1373 = vmul.f32 %v1306, 1.442695
    %v1374 = vpow.pop %v1373
    %v1375 = vmul.f32 %v1307, 1.442695
    %v1376 = vpow.pop %v1375
    %v1377 = vmul.f32 %v1308, 1.442695
    %v1378 = vpow.pop %v1377
    %v1379 = vmul.f32 %v1309, 1.442695
    %v1380 = vpow.pop %v1379
    %v1381 = vmul.f32 %v1310, 1.442695
    %v1382 = vpow.pop %v1381
    %v1383 = vmul.f32 %v1311, 1.442695
    %v1384 = vpow.pop %v1383
    %v1385 = vmul.f32 %v1312, 1.442695
    %v1386 = vpow.pop %v1385
    %v1387 = vmul.f32 %v1313, 1.442695
    %v1388 = vpow.pop %v1387
    %v1389 = vmul.f32 %v1314, 1.442695
    %v1390 = vpow.pop %v1389
    %v1391 = vmul.f32 %v1315, 1.442695
    %v1392 = vpow.pop %v1391
    %v1393 = vmul.f32 %v1316, 1.442695
    %v1394 = vpow.pop %v1393
    %v1395 = vmul.f32 %v1317, 1.442695
    %v1396 = vpow.pop %v1395
    %v1397 = vmul.f32 %v1318, 1.442695
    %v1398 = vpow.pop %v1397
    %v1399 = vmul.f32 %v1319, 1.442695
    %v1400 = vpow.pop %v1399
    %v1401 = vmul.f32 %v1320, 1.442695
    %v1402 = vpow.pop %v1401
    %v1403 = vmul.f32 %v1321, 1.442695
    %v1404 = vpow.pop %v1403
    %v1405 = vmul.f32 %v1322, 1.442695
    %v1406 = vpow.pop %v1405
    %v1407 = vmul.f32 %v1323, 1.442695
    %v1408 = vpow.pop %v1407
    %v1409 = vmul.f32 %v1324, 1.442695
    %v1410 = vpow.pop %v1409
    %v1411 = vmul.f32 %v1325, 1.442695
    %v1412 = vpow.pop %v1411
    %v1413 = vmul.f32 %v1326, 1.442695
    %v1414 = vpow.pop %v1413
    %v1415 = vmul.f32 %v1327, 1.442695
    %v1416 = vpow.pop %v1415
    %v1417 = vmul.f32 %v1328, 1.442695
    %v1418 = vpow.pop %v1417
    %v1419 = vsel %vm1187, %v1330, 0.0
    %v1420 = vsel %vm1187, %v1332, 0.0
    %v1421 = vadd.f32 %v1419, %v1420
    %v1422 = vsel %vm1187, %v1334, 0.0
    %v1423 = vadd.f32 %v1421, %v1422
    %v1424 = vsel %vm1187, %v1336, 0.0
    %v1425 = vadd.f32 %v1423, %v1424
    %v1426 = vsel %vm1187, %v1338, 0.0
    %v1427 = vadd.f32 %v1425, %v1426
    %v1428 = vsel %vm1187, %v1340, 0.0
    %v1429 = vadd.f32 %v1427, %v1428
    %v1430 = vsel %vm1187, %v1342, 0.0
    %v1431 = vadd.f32 %v1429, %v1430
    %v1432 = vsel %vm1187, %v1344, 0.0
    %v1433 = vadd.f32 %v1431, %v1432
    %v1434 = vsel %vm1187, %v1346, 0.0
    %v1435 = vadd.f32 %v1433, %v1434
    %v1436 = vsel %vm1187, %v1348, 0.0
    %v1437 = vadd.f32 %v1435, %v1436
    %v1438 = vsel %vm1187, %v1350, 0.0
    %v1439 = vadd.f32 %v1437, %v1438
    %v1440 = vsel %vm1187, %v1352, 0.0
    %v1441 = vadd.f32 %v1439, %v1440
    %v1442 = vsel %vm1187, %v1354, 0.0
    %v1443 = vadd.f32 %v1441, %v1442
    %v1444 = vsel %vm1187, %v1356, 0.0
    %v1445 = vadd.f32 %v1443, %v1444
    %v1446 = vsel %vm1187, %v1358, 0.0
    %v1447 = vadd.f32 %v1445, %v1446
    %v1448 = vsel %vm1187, %v1360, 0.0
    %v1449 = vadd.f32 %v1447, %v1448
    %v1450 = vsel %vm1187, %v1362, 0.0
    %v1451 = vadd.f32 %v1449, %v1450
    %v1452 = vsel %vm1187, %v1364, 0.0
    %v1453 = vadd.f32 %v1451, %v1452
    %v1454 = vsel %vm1187, %v1366, 0.0
    %v1455 = vadd.f32 %v1453, %v1454
    %v1456 = vsel %vm1187, %v1368, 0.0
    %v1457 = vadd.f32 %v1455, %v1456
    %v1458 = vsel %vm1187, %v1370, 0.0
    %v1459 = vadd.f32 %v1457, %v1458
    %v1460 = vsel %vm1187, %v1372, 0.0
    %v1461 = vadd.f32 %v1459, %v1460
    %v1462 = vsel %vm1187, %v1374, 0.0
    %v1463 = vadd.f32 %v1461, %v1462
    %v1464 = vsel %vm1187, %v1376, 0.0
    %v1465 = vadd.f32 %v1463, %v1464
    %v1466 = vsel %vm1187, %v1378, 0.0
    %v1467 = vadd.f32 %v1465, %v1466
    %v1468 = vsel %vm1187, %v1380, 0.0
    %v1469 = vadd.f32 %v1467, %v1468
    %v1470 = vsel %vm1187, %v1382, 0.0
    %v1471 = vadd.f32 %v1469, %v1470
    %v1472 = vsel %vm1187, %v1384, 0.0
    %v1473 = vadd.f32 %v1471, %v1472
    %v1474 = vsel %vm1187, %v1386, 0.0
    %v1475 = vadd.f32 %v1473, %v1474
    %v1476 = vsel %vm1187, %v1388, 0.0
    %v1477 = vadd.f32 %v1475, %v1476
    %v1478 = vsel %vm1187, %v1390, 0.0
    %v1479 = vadd.f32 %v1477, %v1478
    %v1480 = vsel %vm1187, %v1392, 0.0
    %v1481 = vadd.f32 %v1479, %v1480
    %v1482 = vsel %vm1187, %v1394, 0.0
    %v1483 = vadd.f32 %v1481, %v1482
    %v1484 = vsel %vm1187, %v1396, 0.0
    %v1485 = vadd.f32 %v1483, %v1484
    %v1486 = vsel %vm1187, %v1398, 0.0
    %v1487 = vadd.f32 %v1485, %v1486
    %v1488 = vsel %vm1187, %v1400, 0.0
    %v1489 = vadd.f32 %v1487, %v1488
    %v1490 = vsel %vm1187, %v1402, 0.0
    %v1491 = vadd.f32 %v1489, %v1490
    %v1492 = vsel %vm1187, %v1404, 0.0
    %v1493 = vadd.f32 %v1491, %v1492
    %v1494 = vsel %vm1187, %v1406, 0.0
    %v1495 = vadd.f32 %v1493, %v1494
    %v1496 = vsel %vm1187, %v1408, 0.0
    %v1497 = vadd.f32 %v1495, %v1496
    %v1498 = vsel %vm1187, %v1410, 0.0
    %v1499 = vadd.f32 %v1497, %v1498
    %v1500 = vsel %vm1187, %v1412, 0.0
    %v1501 = vadd.f32 %v1499, %v1500
    %v1502 = vsel %vm1187, %v1414, 0.0
    %v1503 = vadd.f32 %v1501, %v1502
    %v1504 = vsel %vm1187, %v1416, 0.0
    %v1505 = vadd.f32 %v1503, %v1504
    %v1506 = vsel %vm1272, %v1418, 0.0
    %v1507 = vadd.f32 %v1505, %v1506
    %v1508 = vrot.slane %v1507, 4
    %v1509 = vadd.f32 %v1507, %v1508
    %v1510 = vrot.slane %v1509, 2
    %v1511 = vadd.f32 %v1509, %v1510
    %v1512 = vrot.slane %v1511, 1
    %v1513 = vadd.f32 %v1511, %v1512
    %v1514 = vrcp.pop %v1513
    %v1515 = vmul.f32 %v1330, %v1514
    %v1516 = vmul.f32 %v1332, %v1514
    %v1517 = vmul.f32 %v1334, %v1514
    %v1518 = vmul.f32 %v1336, %v1514
    %v1519 = vmul.f32 %v1338, %v1514
    %v1520 = vmul.f32 %v1340, %v1514
    %v1521 = vmul.f32 %v1342, %v1514
    %v1522 = vmul.f32 %v1344, %v1514
    %v1523 = vmul.f32 %v1346, %v1514
    %v1524 = vmul.f32 %v1348, %v1514
    %v1525 = vmul.f32 %v1350, %v1514
    %v1526 = vmul.f32 %v1352, %v1514
    %v1527 = vmul.f32 %v1354, %v1514
    %v1528 = vmul.f32 %v1356, %v1514
    %v1529 = vmul.f32 %v1358, %v1514
    %v1530 = vmul.f32 %v1360, %v1514
    %v1531 = vmul.f32 %v1362, %v1514
    %v1532 = vmul.f32 %v1364, %v1514
    %v1533 = vmul.f32 %v1366, %v1514
    %v1534 = vmul.f32 %v1368, %v1514
    %v1535 = vmul.f32 %v1370, %v1514
    %v1536 = vmul.f32 %v1372, %v1514
    %v1537 = vmul.f32 %v1374, %v1514
    %v1538 = vmul.f32 %v1376, %v1514
    %v1539 = vmul.f32 %v1378, %v1514
    %v1540 = vmul.f32 %v1380, %v1514
    %v1541 = vmul.f32 %v1382, %v1514
    %v1542 = vmul.f32 %v1384, %v1514
    %v1543 = vmul.f32 %v1386, %v1514
    %v1544 = vmul.f32 %v1388, %v1514
    %v1545 = vmul.f32 %v1390, %v1514
    %v1546 = vmul.f32 %v1392, %v1514
    %v1547 = vmul.f32 %v1394, %v1514
    %v1548 = vmul.f32 %v1396, %v1514
    %v1549 = vmul.f32 %v1398, %v1514
    %v1550 = vmul.f32 %v1400, %v1514
    %v1551 = vmul.f32 %v1402, %v1514
    %v1552 = vmul.f32 %v1404, %v1514
    %v1553 = vmul.f32 %v1406, %v1514
    %v1554 = vmul.f32 %v1408, %v1514
    %v1555 = vmul.f32 %v1410, %v1514
    %v1556 = vmul.f32 %v1412, %v1514
    %v1557 = vmul.f32 %v1414, %v1514
    %v1558 = vmul.f32 %v1416, %v1514
    %v1559 = vmul.f32 %v1418, %v1514
    %v1560 = vsel %vm281, %v225, 0.0
    %1561 = vadd.xlane.f32.xlu0 %v1560
    %v1562 = vpop.xlane.xlu0 %1561
    %v1563 = vsel %vm281, %v226, 0.0
    %1564 = vadd.xlane.f32.xlu0 %v1563
    %v1565 = vpop.xlane.xlu0 %1564
    %v1566 = vsel %vm281, %v227, 0.0
    %1567 = vadd.xlane.f32.xlu0 %v1566
    %v1568 = vpop.xlane.xlu0 %1567
    %v1569 = vsel %vm281, %v228, 0.0
    %1570 = vadd.xlane.f32.xlu0 %v1569
    %v1571 = vpop.xlane.xlu0 %1570
    %v1572 = vsel %vm281, %v229, 0.0
    %1573 = vadd.xlane.f32.xlu0 %v1572
    %v1574 = vpop.xlane.xlu0 %1573
    %v1575 = vsel %vm281, %v230, 0.0
    %1576 = vadd.xlane.f32.xlu0 %v1575
    %v1577 = vpop.xlane.xlu0 %1576
    %v1578 = vsel %vm281, %v231, 0.0
    %1579 = vadd.xlane.f32.xlu0 %v1578
    %v1580 = vpop.xlane.xlu0 %1579
    %v1581 = vsel %vm281, %v232, 0.0
    %1582 = vadd.xlane.f32.xlu0 %v1581
    %v1583 = vpop.xlane.xlu0 %1582
    %v1584 = vsel %vm281, %v233, 0.0
    %1585 = vadd.xlane.f32.xlu0 %v1584
    %v1586 = vpop.xlane.xlu0 %1585
    %v1587 = vsel %vm281, %v234, 0.0
    %1588 = vadd.xlane.f32.xlu0 %v1587
    %v1589 = vpop.xlane.xlu0 %1588
    %v1590 = vsel %vm281, %v235, 0.0
    %1591 = vadd.xlane.f32.xlu0 %v1590
    %v1592 = vpop.xlane.xlu0 %1591
    %v1593 = vsel %vm281, %v236, 0.0
    %1594 = vadd.xlane.f32.xlu0 %v1593
    %v1595 = vpop.xlane.xlu0 %1594
    %v1596 = vsel %vm281, %v237, 0.0
    %1597 = vadd.xlane.f32.xlu0 %v1596
    %v1598 = vpop.xlane.xlu0 %1597
    %v1599 = vsel %vm281, %v238, 0.0
    %1600 = vadd.xlane.f32.xlu0 %v1599
    %v1601 = vpop.xlane.xlu0 %1600
    %v1602 = vsel %vm281, %v239, 0.0
    %1603 = vadd.xlane.f32.xlu0 %v1602
    %v1604 = vpop.xlane.xlu0 %1603
    %v1605 = vsel %vm281, %v240, 0.0
    %1606 = vadd.xlane.f32.xlu0 %v1605
    %v1607 = vpop.xlane.xlu0 %1606
    %v1608 = vsel %vm281, %v241, 0.0
    %1609 = vadd.xlane.f32.xlu0 %v1608
    %v1610 = vpop.xlane.xlu0 %1609
    %v1611 = vsel %vm281, %v242, 0.0
    %1612 = vadd.xlane.f32.xlu0 %v1611
    %v1613 = vpop.xlane.xlu0 %1612
    %v1614 = vsel %vm281, %v243, 0.0
    %1615 = vadd.xlane.f32.xlu0 %v1614
    %v1616 = vpop.xlane.xlu0 %1615
    %v1617 = vsel %vm281, %v244, 0.0
    %1618 = vadd.xlane.f32.xlu0 %v1617
    %v1619 = vpop.xlane.xlu0 %1618
    %v1620 = vsel %vm281, %v245, 0.0
    %1621 = vadd.xlane.f32.xlu0 %v1620
    %v1622 = vpop.xlane.xlu0 %1621
    %v1623 = vsel %vm281, %v246, 0.0
    %1624 = vadd.xlane.f32.xlu0 %v1623
    %v1625 = vpop.xlane.xlu0 %1624
    %v1626 = vsel %vm281, %v247, 0.0
    %1627 = vadd.xlane.f32.xlu0 %v1626
    %v1628 = vpop.xlane.xlu0 %1627
    %v1629 = vsel %vm281, %v248, 0.0
    %1630 = vadd.xlane.f32.xlu0 %v1629
    %v1631 = vpop.xlane.xlu0 %1630
    %v1632 = vsel %vm281, %v249, 0.0
    %1633 = vadd.xlane.f32.xlu0 %v1632
    %v1634 = vpop.xlane.xlu0 %1633
    %v1635 = vsel %vm281, %v250, 0.0
    %1636 = vadd.xlane.f32.xlu0 %v1635
    %v1637 = vpop.xlane.xlu0 %1636
    %v1638 = vsel %vm281, %v251, 0.0
    %1639 = vadd.xlane.f32.xlu0 %v1638
    %v1640 = vpop.xlane.xlu0 %1639
    %v1641 = vsel %vm281, %v252, 0.0
    %1642 = vadd.xlane.f32.xlu0 %v1641
    %v1643 = vpop.xlane.xlu0 %1642
    %v1644 = vsel %vm281, %v253, 0.0
    %1645 = vadd.xlane.f32.xlu0 %v1644
    %v1646 = vpop.xlane.xlu0 %1645
    %v1647 = vsel %vm281, %v254, 0.0
    %1648 = vadd.xlane.f32.xlu0 %v1647
    %v1649 = vpop.xlane.xlu0 %1648
    %v1650 = vsel %vm281, %v255, 0.0
    %1651 = vadd.xlane.f32.xlu0 %v1650
    %v1652 = vpop.xlane.xlu0 %1651
    %v1653 = vsel %vm281, %v256, 0.0
    %1654 = vadd.xlane.f32.xlu0 %v1653
    %v1655 = vpop.xlane.xlu0 %1654
    %v1656 = vsel %vm281, %v257, 0.0
    %1657 = vadd.xlane.f32.xlu0 %v1656
    %v1658 = vpop.xlane.xlu0 %1657
    %v1659 = vsel %vm281, %v258, 0.0
    %1660 = vadd.xlane.f32.xlu0 %v1659
    %v1661 = vpop.xlane.xlu0 %1660
    %v1662 = vsel %vm281, %v259, 0.0
    %1663 = vadd.xlane.f32.xlu0 %v1662
    %v1664 = vpop.xlane.xlu0 %1663
    %v1665 = vsel %vm281, %v260, 0.0
    %1666 = vadd.xlane.f32.xlu0 %v1665
    %v1667 = vpop.xlane.xlu0 %1666
    %v1668 = vsel %vm281, %v261, 0.0
    %1669 = vadd.xlane.f32.xlu0 %v1668
    %v1670 = vpop.xlane.xlu0 %1669
    %v1671 = vsel %vm281, %v262, 0.0
    %1672 = vadd.xlane.f32.xlu0 %v1671
    %v1673 = vpop.xlane.xlu0 %1672
    %v1674 = vsel %vm281, %v263, 0.0
    %1675 = vadd.xlane.f32.xlu0 %v1674
    %v1676 = vpop.xlane.xlu0 %1675
    %v1677 = vsel %vm281, %v264, 0.0
    %1678 = vadd.xlane.f32.xlu0 %v1677
    %v1679 = vpop.xlane.xlu0 %1678
    %v1680 = vsel %vm281, %v265, 0.0
    %1681 = vadd.xlane.f32.xlu0 %v1680
    %v1682 = vpop.xlane.xlu0 %1681
    %v1683 = vsel %vm281, %v266, 0.0
    %1684 = vadd.xlane.f32.xlu0 %v1683
    %v1685 = vpop.xlane.xlu0 %1684
    %v1686 = vsel %vm281, %v267, 0.0
    %1687 = vadd.xlane.f32.xlu0 %v1686
    %v1688 = vpop.xlane.xlu0 %1687
    %v1689 = vsel %vm281, %v268, 0.0
    %1690 = vadd.xlane.f32.xlu0 %v1689
    %v1691 = vpop.xlane.xlu0 %1690
    %vm1692 = vcmask 259072
    %v1693 = vsel %vm1692, %v269, 0.0
    %1694 = vadd.xlane.f32.xlu0 %v1693
    %v1695 = vpop.xlane.xlu0 %1694
    %v1696 = vmul.f32 %v1515, %v1562
    %v1697 = vmul.f32 %v1516, %v1565
    %v1698 = vmul.f32 %v1517, %v1568
    %v1699 = vmul.f32 %v1518, %v1571
    %v1700 = vmul.f32 %v1519, %v1574
    %v1701 = vmul.f32 %v1520, %v1577
    %v1702 = vmul.f32 %v1521, %v1580
    %v1703 = vmul.f32 %v1522, %v1583
    %v1704 = vmul.f32 %v1523, %v1586
    %v1705 = vmul.f32 %v1524, %v1589
    %v1706 = vmul.f32 %v1525, %v1592
    %v1707 = vmul.f32 %v1526, %v1595
    %v1708 = vmul.f32 %v1527, %v1598
    %v1709 = vmul.f32 %v1528, %v1601
    %v1710 = vmul.f32 %v1529, %v1604
    %v1711 = vmul.f32 %v1530, %v1607
    %v1712 = vmul.f32 %v1531, %v1610
    %v1713 = vmul.f32 %v1532, %v1613
    %v1714 = vmul.f32 %v1533, %v1616
    %v1715 = vmul.f32 %v1534, %v1619
    %v1716 = vmul.f32 %v1535, %v1622
    %v1717 = vmul.f32 %v1536, %v1625
    %v1718 = vmul.f32 %v1537, %v1628
    %v1719 = vmul.f32 %v1538, %v1631
    %v1720 = vmul.f32 %v1539, %v1634
    %v1721 = vmul.f32 %v1540, %v1637
    %v1722 = vmul.f32 %v1541, %v1640
    %v1723 = vmul.f32 %v1542, %v1643
    %v1724 = vmul.f32 %v1543, %v1646
    %v1725 = vmul.f32 %v1544, %v1649
    %v1726 = vmul.f32 %v1545, %v1652
    %v1727 = vmul.f32 %v1546, %v1655
    %v1728 = vmul.f32 %v1547, %v1658
    %v1729 = vmul.f32 %v1548, %v1661
    %v1730 = vmul.f32 %v1549, %v1664
    %v1731 = vmul.f32 %v1550, %v1667
    %v1732 = vmul.f32 %v1551, %v1670
    %v1733 = vmul.f32 %v1552, %v1673
    %v1734 = vmul.f32 %v1553, %v1676
    %v1735 = vmul.f32 %v1554, %v1679
    %v1736 = vmul.f32 %v1555, %v1682
    %v1737 = vmul.f32 %v1556, %v1685
    %v1738 = vmul.f32 %v1557, %v1688
    %v1739 = vmul.f32 %v1558, %v1691
    %v1740 = vmul.f32 %v1559, %v1695
    %v1741 = vsel %vm1187, %v1696, 0.0
    %v1742 = vsel %vm1187, %v1697, 0.0
    %v1743 = vadd.f32 %v1741, %v1742
    %v1744 = vsel %vm1187, %v1698, 0.0
    %v1745 = vadd.f32 %v1743, %v1744
    %v1746 = vsel %vm1187, %v1699, 0.0
    %v1747 = vadd.f32 %v1745, %v1746
    %v1748 = vsel %vm1187, %v1700, 0.0
    %v1749 = vadd.f32 %v1747, %v1748
    %v1750 = vsel %vm1187, %v1701, 0.0
    %v1751 = vadd.f32 %v1749, %v1750
    %v1752 = vsel %vm1187, %v1702, 0.0
    %v1753 = vadd.f32 %v1751, %v1752
    %v1754 = vsel %vm1187, %v1703, 0.0
    %v1755 = vadd.f32 %v1753, %v1754
    %v1756 = vsel %vm1187, %v1704, 0.0
    %v1757 = vadd.f32 %v1755, %v1756
    %v1758 = vsel %vm1187, %v1705, 0.0
    %v1759 = vadd.f32 %v1757, %v1758
    %v1760 = vsel %vm1187, %v1706, 0.0
    %v1761 = vadd.f32 %v1759, %v1760
    %v1762 = vsel %vm1187, %v1707, 0.0
    %v1763 = vadd.f32 %v1761, %v1762
    %v1764 = vsel %vm1187, %v1708, 0.0
    %v1765 = vadd.f32 %v1763, %v1764
    %v1766 = vsel %vm1187, %v1709, 0.0
    %v1767 = vadd.f32 %v1765, %v1766
    %v1768 = vsel %vm1187, %v1710, 0.0
    %v1769 = vadd.f32 %v1767, %v1768
    %v1770 = vsel %vm1187, %v1711, 0.0
    %v1771 = vadd.f32 %v1769, %v1770
    %v1772 = vsel %vm1187, %v1712, 0.0
    %v1773 = vadd.f32 %v1771, %v1772
    %v1774 = vsel %vm1187, %v1713, 0.0
    %v1775 = vadd.f32 %v1773, %v1774
    %v1776 = vsel %vm1187, %v1714, 0.0
    %v1777 = vadd.f32 %v1775, %v1776
    %v1778 = vsel %vm1187, %v1715, 0.0
    %v1779 = vadd.f32 %v1777, %v1778
    %v1780 = vsel %vm1187, %v1716, 0.0
    %v1781 = vadd.f32 %v1779, %v1780
    %v1782 = vsel %vm1187, %v1717, 0.0
    %v1783 = vadd.f32 %v1781, %v1782
    %v1784 = vsel %vm1187, %v1718, 0.0
    %v1785 = vadd.f32 %v1783, %v1784
    %v1786 = vsel %vm1187, %v1719, 0.0
    %v1787 = vadd.f32 %v1785, %v1786
    %v1788 = vsel %vm1187, %v1720, 0.0
    %v1789 = vadd.f32 %v1787, %v1788
    %v1790 = vsel %vm1187, %v1721, 0.0
    %v1791 = vadd.f32 %v1789, %v1790
    %v1792 = vsel %vm1187, %v1722, 0.0
    %v1793 = vadd.f32 %v1791, %v1792
    %v1794 = vsel %vm1187, %v1723, 0.0
    %v1795 = vadd.f32 %v1793, %v1794
    %v1796 = vsel %vm1187, %v1724, 0.0
    %v1797 = vadd.f32 %v1795, %v1796
    %v1798 = vsel %vm1187, %v1725, 0.0
    %v1799 = vadd.f32 %v1797, %v1798
    %v1800 = vsel %vm1187, %v1726, 0.0
    %v1801 = vadd.f32 %v1799, %v1800
    %v1802 = vsel %vm1187, %v1727, 0.0
    %v1803 = vadd.f32 %v1801, %v1802
    %v1804 = vsel %vm1187, %v1728, 0.0
    %v1805 = vadd.f32 %v1803, %v1804
    %v1806 = vsel %vm1187, %v1729, 0.0
    %v1807 = vadd.f32 %v1805, %v1806
    %v1808 = vsel %vm1187, %v1730, 0.0
    %v1809 = vadd.f32 %v1807, %v1808
    %v1810 = vsel %vm1187, %v1731, 0.0
    %v1811 = vadd.f32 %v1809, %v1810
    %v1812 = vsel %vm1187, %v1732, 0.0
    %v1813 = vadd.f32 %v1811, %v1812
    %v1814 = vsel %vm1187, %v1733, 0.0
    %v1815 = vadd.f32 %v1813, %v1814
    %v1816 = vsel %vm1187, %v1734, 0.0
    %v1817 = vadd.f32 %v1815, %v1816
    %v1818 = vsel %vm1187, %v1735, 0.0
    %v1819 = vadd.f32 %v1817, %v1818
    %v1820 = vsel %vm1187, %v1736, 0.0
    %v1821 = vadd.f32 %v1819, %v1820
    %v1822 = vsel %vm1187, %v1737, 0.0
    %v1823 = vadd.f32 %v1821, %v1822
    %v1824 = vsel %vm1187, %v1738, 0.0
    %v1825 = vadd.f32 %v1823, %v1824
    %v1826 = vsel %vm1187, %v1739, 0.0
    %v1827 = vadd.f32 %v1825, %v1826
    %v1828 = vsel %vm1272, %v1740, 0.0
    %v1829 = vadd.f32 %v1827, %v1828
    %v1830 = vrot.slane %v1829, 4
    %v1831 = vadd.f32 %v1829, %v1830
    %v1832 = vrot.slane %v1831, 2
    %v1833 = vadd.f32 %v1831, %v1832
    %v1834 = vrot.slane %v1833, 1
    %v1835 = vadd.f32 %v1833, %v1834
    %s1836 = sld [smem:[#allocation2]]
    %v1837 = vsel %vm1187, %v1835, -inf
    %1838 = vmax.xlane.f32.xlu0 %v1837
    %v1839 = vpop.xlane.xlu0 %1838
    %s1840 = vtos %v1839
    %v1841 = vstv %s1840
    %v1842 = vsub.f32 %v1835, %v1841
    %v1843 = vmul.f32 %v1842, 1.442695
    %v1844 = vpow.pop %v1843
    %vm1845 = vcmask 57344
    %v1846 = vsel %vm1845, %v1844, 0.0
    %1847 = vadd.xlane.f32.xlu0 %v1846
    %v1848 = vpop.xlane.xlu0 %1847
    %v1849 = vrot.slane %v1848, 4
    %v1850 = vadd.f32 %v1848, %v1849
    %v1851 = vrot.slane %v1850, 2
    %v1852 = vadd.f32 %v1850, %v1851
    %v1853 = vrot.slane %v1852, 1
    %v1854 = vadd.f32 %v1852, %v1853
    %s1855 = vtos %v1854
    %v1856 = vstv %s1855
    %v1857 = vlog2.pop %v1856
    %v1858 = vmul.f32 %v1857, 0.6931472
    %s1859 = vtos %v1858
    %s1860 = sadd.f32 %s1859, %s1840
    %v1861 = vstv %s1836
    %vm1862 = vcmp.eq.s32.totalorder %v44, %v1861
    %v1863 = vsel %vm1862, %v1835, 0.0
    %v1864 = vsel %vm1845, %v1863, 0.0
    %1865 = vadd.xlane.f32.xlu0 %v1864
    %v1866 = vpop.xlane.xlu0 %1865
    %v1867 = vrot.slane %v1866, 4
    %v1868 = vadd.f32 %v1866, %v1867
    %v1869 = vrot.slane %v1868, 2
    %v1870 = vadd.f32 %v1868, %v1869
    %v1871 = vrot.slane %v1870, 1
    %v1872 = vadd.f32 %v1870, %v1871
    %s1873 = vtos %v1872
    %s1874 = ssub.f32 %s1860, %s1873
    %s1875 = sadd.f32 %s1874, 0.0
    %vm1876 = vcmp.eq.f32.partialorder %v1835, %v1841
    %v1877 = vsel %vm1876, %v44, 8
    %v1878 = vsel %vm1187, %v1877, 2147483647
    %v1879 = vand.u32 %v1878, 65535
    %v1880 = vshra.s32 %v1878, 16
    %v1881 = vcvt.s32.f32 %v1879
    %v1882 = vcvt.s32.f32 %v1880
    %1883 = vmin.xlane.f32.xlu0 %v1882
    %v1884 = vpop.xlane.xlu0 %1883
    %vm1885 = vcmp.eq.f32.partialorder %v1882, %v1884
    %v1886 = vsel %vm1885, %v1881, inf
    %1887 = vmin.xlane.f32.xlu0 %v1886
    %v1888 = vpop.xlane.xlu0 %1887
    %v1889 = vcvt.f32.s32 %v1888
    %v1890 = vcvt.f32.s32 %v1884
    %v1891 = vshll.u32 %v1890, 16
    %v1892 = vadd.s32 %v1891, %v1889
    %s1893 = vtos %v1892
    %p1894 = scmp.eq.s32.totalorder %s1893, %s1836
    %s1895 = scalar_select %p1894, 1, 0
    %s1896 = scalar_lea.vmem %s0, 90
    %v1897 = vld [vmem:[%s1896] sm:$0x3]
    %v1898 = vld [vmem:[%s1896 + $0x2] sm:$0x3]
    %v1899 = vld [vmem:[%s1896 + $0x4] sm:$0x3]
    %v1900 = vld [vmem:[%s1896 + $0x6] sm:$0x3]
    %v1901 = vld [vmem:[%s1896 + $0x8] sm:$0x3]
    %v1902 = vld [vmem:[%s1896 + $0xa] sm:$0x3]
    %v1903 = vld [vmem:[%s1896 + $0xc] sm:$0x3]
    %v1904 = vld [vmem:[%s1896 + $0xe] sm:$0x3]
    %v1905 = vld [vmem:[%s1896 + $0x10] sm:$0x3]
    %v1906 = vld [vmem:[%s1896 + $0x12] sm:$0x3]
    %v1907 = vld [vmem:[%s1896 + $0x14] sm:$0x3]
    %v1908 = vld [vmem:[%s1896 + $0x16] sm:$0x3]
    %v1909 = vld [vmem:[%s1896 + $0x18] sm:$0x3]
    %v1910 = vld [vmem:[%s1896 + $0x1a] sm:$0x3]
    %v1911 = vld [vmem:[%s1896 + $0x1c] sm:$0x3]
    %v1912 = vld [vmem:[%s1896 + $0x1e] sm:$0x3]
    %v1913 = vld [vmem:[%s1896 + $0x20] sm:$0x3]
    %v1914 = vld [vmem:[%s1896 + $0x22] sm:$0x3]
    %v1915 = vld [vmem:[%s1896 + $0x24] sm:$0x3]
    %v1916 = vld [vmem:[%s1896 + $0x26] sm:$0x3]
    %v1917 = vld [vmem:[%s1896 + $0x28] sm:$0x3]
    %v1918 = vld [vmem:[%s1896 + $0x2a] sm:$0x3]
    %v1919 = vld [vmem:[%s1896 + $0x2c] sm:$0x3]
    %v1920 = vld [vmem:[%s1896 + $0x2e] sm:$0x3]
    %v1921 = vld [vmem:[%s1896 + $0x30] sm:$0x3]
    %v1922 = vld [vmem:[%s1896 + $0x32] sm:$0x3]
    %v1923 = vld [vmem:[%s1896 + $0x34] sm:$0x3]
    %v1924 = vld [vmem:[%s1896 + $0x36] sm:$0x3]
    %v1925 = vld [vmem:[%s1896 + $0x38] sm:$0x3]
    %v1926 = vld [vmem:[%s1896 + $0x3a] sm:$0x3]
    %v1927 = vld [vmem:[%s1896 + $0x3c] sm:$0x3]
    %v1928 = vld [vmem:[%s1896 + $0x3e] sm:$0x3]
    %v1929 = vld [vmem:[%s1896 + $0x40] sm:$0x3]
    %v1930 = vld [vmem:[%s1896 + $0x42] sm:$0x3]
    %v1931 = vld [vmem:[%s1896 + $0x44] sm:$0x3]
    %v1932 = vld [vmem:[%s1896 + $0x46] sm:$0x3]
    %v1933 = vld [vmem:[%s1896 + $0x48] sm:$0x3]
    %v1934 = vld [vmem:[%s1896 + $0x4a] sm:$0x3]
    %v1935 = vld [vmem:[%s1896 + $0x4c] sm:$0x3]
    %v1936 = vld [vmem:[%s1896 + $0x4e] sm:$0x3]
    %v1937 = vld [vmem:[%s1896 + $0x50] sm:$0x3]
    %v1938 = vld [vmem:[%s1896 + $0x52] sm:$0x3]
    %v1939 = vld [vmem:[%s1896 + $0x54] sm:$0x3]
    %v1940 = vld [vmem:[%s1896 + $0x56] sm:$0x3]
    %v1941 = vld [vmem:[%s1896 + $0x58] sm:$0x3]
    %v1942 = vunpack.c.0.s8 %v1897
    %v1943 = vunpack.c.0.s8 %v1898
    %v1944 = vunpack.c.0.s8 %v1899
    %v1945 = vunpack.c.0.s8 %v1900
    %v1946 = vunpack.c.0.s8 %v1901
    %v1947 = vunpack.c.0.s8 %v1902
    %v1948 = vunpack.c.0.s8 %v1903
    %v1949 = vunpack.c.0.s8 %v1904
    %v1950 = vunpack.c.0.s8 %v1905
    %v1951 = vunpack.c.0.s8 %v1906
    %v1952 = vunpack.c.0.s8 %v1907
    %v1953 = vunpack.c.0.s8 %v1908
    %v1954 = vunpack.c.0.s8 %v1909
    %v1955 = vunpack.c.0.s8 %v1910
    %v1956 = vunpack.c.0.s8 %v1911
    %v1957 = vunpack.c.0.s8 %v1912
    %v1958 = vunpack.c.0.s8 %v1913
    %v1959 = vunpack.c.0.s8 %v1914
    %v1960 = vunpack.c.0.s8 %v1915
    %v1961 = vunpack.c.0.s8 %v1916
    %v1962 = vunpack.c.0.s8 %v1917
    %v1963 = vunpack.c.0.s8 %v1918
    %v1964 = vunpack.c.0.s8 %v1919
    %v1965 = vunpack.c.0.s8 %v1920
    %v1966 = vunpack.c.0.s8 %v1921
    %v1967 = vunpack.c.0.s8 %v1922
    %v1968 = vunpack.c.0.s8 %v1923
    %v1969 = vunpack.c.0.s8 %v1924
    %v1970 = vunpack.c.0.s8 %v1925
    %v1971 = vunpack.c.0.s8 %v1926
    %v1972 = vunpack.c.0.s8 %v1927
    %v1973 = vunpack.c.0.s8 %v1928
    %v1974 = vunpack.c.0.s8 %v1929
    %v1975 = vunpack.c.0.s8 %v1930
    %v1976 = vunpack.c.0.s8 %v1931
    %v1977 = vunpack.c.0.s8 %v1932
    %v1978 = vunpack.c.0.s8 %v1933
    %v1979 = vunpack.c.0.s8 %v1934
    %v1980 = vunpack.c.0.s8 %v1935
    %v1981 = vunpack.c.0.s8 %v1936
    %v1982 = vunpack.c.0.s8 %v1937
    %v1983 = vunpack.c.0.s8 %v1938
    %v1984 = vunpack.c.0.s8 %v1939
    %v1985 = vunpack.c.0.s8 %v1940
    %v1986 = vunpack.c.0.s8 %v1941
    %v1987 = vcvt.s32.f32 %v1942
    %v1988 = vcvt.s32.f32 %v1943
    %v1989 = vcvt.s32.f32 %v1944
    %v1990 = vcvt.s32.f32 %v1945
    %v1991 = vcvt.s32.f32 %v1946
    %v1992 = vcvt.s32.f32 %v1947
    %v1993 = vcvt.s32.f32 %v1948
    %v1994 = vcvt.s32.f32 %v1949
    %v1995 = vcvt.s32.f32 %v1950
    %v1996 = vcvt.s32.f32 %v1951
    %v1997 = vcvt.s32.f32 %v1952
    %v1998 = vcvt.s32.f32 %v1953
    %v1999 = vcvt.s32.f32 %v1954
    %v2000 = vcvt.s32.f32 %v1955
    %v2001 = vcvt.s32.f32 %v1956
    %v2002 = vcvt.s32.f32 %v1957
    %v2003 = vcvt.s32.f32 %v1958
    %v2004 = vcvt.s32.f32 %v1959
    %v2005 = vcvt.s32.f32 %v1960
    %v2006 = vcvt.s32.f32 %v1961
    %v2007 = vcvt.s32.f32 %v1962
    %v2008 = vcvt.s32.f32 %v1963
    %v2009 = vcvt.s32.f32 %v1964
    %v2010 = vcvt.s32.f32 %v1965
    %v2011 = vcvt.s32.f32 %v1966
    %v2012 = vcvt.s32.f32 %v1967
    %v2013 = vcvt.s32.f32 %v1968
    %v2014 = vcvt.s32.f32 %v1969
    %v2015 = vcvt.s32.f32 %v1970
    %v2016 = vcvt.s32.f32 %v1971
    %v2017 = vcvt.s32.f32 %v1972
    %v2018 = vcvt.s32.f32 %v1973
    %v2019 = vcvt.s32.f32 %v1974
    %v2020 = vcvt.s32.f32 %v1975
    %v2021 = vcvt.s32.f32 %v1976
    %v2022 = vcvt.s32.f32 %v1977
    %v2023 = vcvt.s32.f32 %v1978
    %v2024 = vcvt.s32.f32 %v1979
    %v2025 = vcvt.s32.f32 %v1980
    %v2026 = vcvt.s32.f32 %v1981
    %v2027 = vcvt.s32.f32 %v1982
    %v2028 = vcvt.s32.f32 %v1983
    %v2029 = vcvt.s32.f32 %v1984
    %v2030 = vcvt.s32.f32 %v1985
    %v2031 = vcvt.s32.f32 %v1986
    %v2032 = vmul.f32 %v1987, %v180
    %v2033 = vmul.f32 %v1988, %v181
    %v2034 = vmul.f32 %v1989, %v182
    %v2035 = vmul.f32 %v1990, %v183
    %v2036 = vmul.f32 %v1991, %v184
    %v2037 = vmul.f32 %v1992, %v185
    %v2038 = vmul.f32 %v1993, %v186
    %v2039 = vmul.f32 %v1994, %v187
    %v2040 = vmul.f32 %v1995, %v188
    %v2041 = vmul.f32 %v1996, %v189
    %v2042 = vmul.f32 %v1997, %v190
    %v2043 = vmul.f32 %v1998, %v191
    %v2044 = vmul.f32 %v1999, %v192
    %v2045 = vmul.f32 %v2000, %v193
    %v2046 = vmul.f32 %v2001, %v194
    %v2047 = vmul.f32 %v2002, %v195
    %v2048 = vmul.f32 %v2003, %v196
    %v2049 = vmul.f32 %v2004, %v197
    %v2050 = vmul.f32 %v2005, %v198
    %v2051 = vmul.f32 %v2006, %v199
    %v2052 = vmul.f32 %v2007, %v200
    %v2053 = vmul.f32 %v2008, %v201
    %v2054 = vmul.f32 %v2009, %v202
    %v2055 = vmul.f32 %v2010, %v203
    %v2056 = vmul.f32 %v2011, %v204
    %v2057 = vmul.f32 %v2012, %v205
    %v2058 = vmul.f32 %v2013, %v206
    %v2059 = vmul.f32 %v2014, %v207
    %v2060 = vmul.f32 %v2015, %v208
    %v2061 = vmul.f32 %v2016, %v209
    %v2062 = vmul.f32 %v2017, %v210
    %v2063 = vmul.f32 %v2018, %v211
    %v2064 = vmul.f32 %v2019, %v212
    %v2065 = vmul.f32 %v2020, %v213
    %v2066 = vmul.f32 %v2021, %v214
    %v2067 = vmul.f32 %v2022, %v215
    %v2068 = vmul.f32 %v2023, %v216
    %v2069 = vmul.f32 %v2024, %v217
    %v2070 = vmul.f32 %v2025, %v218
    %v2071 = vmul.f32 %v2026, %v219
    %v2072 = vmul.f32 %v2027, %v220
    %v2073 = vmul.f32 %v2028, %v221
    %v2074 = vmul.f32 %v2029, %v222
    %v2075 = vmul.f32 %v2030, %v223
    %v2076 = vmul.f32 %v2031, %v224
    %v2078 = vsel %vm281, %v2032, 0
    %v2081 = vsel %vm281, %v2033, 0
    %v2084 = vsel %vm281, %v2034, 0
    %v2087 = vsel %vm281, %v2035, 0
    %v2090 = vsel %vm281, %v2036, 0
    %v2093 = vsel %vm281, %v2037, 0
    %v2096 = vsel %vm281, %v2038, 0
    %v2099 = vsel %vm281, %v2039, 0
    %v2102 = vsel %vm281, %v2040, 0
    %v2105 = vsel %vm281, %v2041, 0
    %v2108 = vsel %vm281, %v2042, 0
    %v2111 = vsel %vm281, %v2043, 0
    %v2114 = vsel %vm281, %v2044, 0
    %v2117 = vsel %vm281, %v2045, 0
    %v2120 = vsel %vm281, %v2046, 0
    %v2123 = vsel %vm281, %v2047, 0
    %v2126 = vsel %vm281, %v2048, 0
    %v2129 = vsel %vm281, %v2049, 0
    %v2132 = vsel %vm281, %v2050, 0
    %v2135 = vsel %vm281, %v2051, 0
    %v2138 = vsel %vm281, %v2052, 0
    %v2141 = vsel %vm281, %v2053, 0
    %v2144 = vsel %vm281, %v2054, 0
    %v2147 = vsel %vm281, %v2055, 0
    %v2150 = vsel %vm281, %v2056, 0
    %v2153 = vsel %vm281, %v2057, 0
    %v2156 = vsel %vm281, %v2058, 0
    %v2159 = vsel %vm281, %v2059, 0
    %v2162 = vsel %vm281, %v2060, 0
    %v2165 = vsel %vm281, %v2061, 0
    %v2168 = vsel %vm281, %v2062, 0
    %v2171 = vsel %vm281, %v2063, 0
    %v2174 = vsel %vm281, %v2064, 0
    %v2177 = vsel %vm281, %v2065, 0
    %v2180 = vsel %vm281, %v2066, 0
    %v2183 = vsel %vm281, %v2067, 0
    %v2186 = vsel %vm281, %v2068, 0
    %v2189 = vsel %vm281, %v2069, 0
    %v2192 = vsel %vm281, %v2070, 0
    %v2195 = vsel %vm281, %v2071, 0
    %v2198 = vsel %vm281, %v2072, 0
    %v2201 = vsel %vm281, %v2073, 0
    %v2204 = vsel %vm281, %v2074, 0
    %v2207 = vsel %vm281, %v2075, 0
    %v2210 = vsel %vm281, %v2076, 0
    %2212 = vmatprep.subr.mxu0 0.0
    %2213 = vmatpush1.msra.mxu0 %v270
    %2214 = vmatprep.subr.mxu0 0.0
    %2215 = vmatpush1.msra.mxu0 %v271
    %2216 = vmatprep.subr.mxu0 0.0
    %2217 = vmatpush1.msra.mxu0 %v272
    %2218 = vmatprep.subr.mxu0 0.0
    %2219 = vmatpush1.msra.mxu0 %v273
    %2220 = vmatprep.subr.mxu0 0.0
    %2221 = vmatpush1.msra.mxu0 0.0
    %2222 = vmatprep.subr.mxu0 0.0
    %2223 = vmatpush1.msra.mxu0 0.0
    %2224 = vmatprep.subr.mxu0 0.0
    %2225 = vmatpush1.msra.mxu0 0.0
    %2226 = vmatprep.subr.mxu0 0.0
    %2227 = vmatpush1.msra.mxu0 0.0
    %2228 = vmatprep.subr.mxu0 0.0
    %2229 = vmatpush1.msra.mxu0 0.0
    %2230 = vmatprep.subr.mxu0 0.0
    %2231 = vmatpush1.msra.mxu0 0.0
    %2232 = vmatprep.subr.mxu0 0.0
    %2233 = vmatpush1.msra.mxu0 0.0
    %2234 = vmatprep.subr.mxu0 0.0
    %2235 = vmatpush1.msra.mxu0 0.0
    %2236 = vmatprep.subr.mxu0 0.0
    %2237 = vmatpush1.msra.mxu0 0.0
    %2238 = vmatprep.subr.mxu0 0.0
    %2239 = vmatpush1.msra.mxu0 0.0
    %2240 = vmatprep.subr.mxu0 0.0
    %2241 = vmatpush1.msra.mxu0 0.0
    %2242 = vmatprep.subr.mxu0 0.0
    %2243 = vmatpush1.msra.mxu0 0.0
    %2244 = vmatprep.subr.mxu0 0.0
    %2245 = vmatpush1.msra.mxu0 0.0
    %2246 = vmatprep.subr.mxu0 0.0
    %2247 = vmatpush1.msra.mxu0 0.0
    %2248 = vmatprep.subr.mxu0 0.0
    %2249 = vmatpush1.msra.mxu0 0.0
    %2250 = vmatprep.subr.mxu0 0.0
    %2251 = vmatpush1.msra.mxu0 0.0
    %2252 = vmatprep.subr.mxu0 0.0
    %2253 = vmatpush1.msra.mxu0 0.0
    %2254 = vmatprep.subr.mxu0 0.0
    %2255 = vmatpush1.msra.mxu0 0.0
    %2256 = vmatprep.subr.mxu0 0.0
    %2257 = vmatpush1.msra.mxu0 0.0
    %2258 = vmatprep.subr.mxu0 0.0
    %2259 = vmatpush1.msra.mxu0 0.0
    %2260 = vmatprep.subr.mxu0 0.0
    %2261 = vmatpush1.msra.mxu0 0.0
    %2262 = vmatprep.subr.mxu0 0.0
    %2263 = vmatpush1.msra.mxu0 0.0
    %2264 = vmatprep.subr.mxu0 0.0
    %2265 = vmatpush1.msra.mxu0 0.0
    %2266 = vmatprep.subr.mxu0 0.0
    %2267 = vmatpush1.msra.mxu0 0.0
    %2268 = vmatprep.subr.mxu0 0.0
    %2269 = vmatpush1.msra.mxu0 0.0
    %2270 = vmatprep.subr.mxu0 0.0
    %2271 = vmatpush1.msra.mxu0 0.0
    %2272 = vmatprep.subr.mxu0 0.0
    %2273 = vmatpush1.msra.mxu0 0.0
    %2274 = vmatprep.subr.mxu0 0.0
    %2275 = vmatpush1.msra.mxu0 0.0
    %2276 = vmatprep.mubr.f32.mxu0 0.0
    %2277 = vmatmul.mubr.f32.gmra.mrb[0].mxu0 %v2078
    %v2278 = vpop.f32.mrb[0].mxu0
    %v2279 = vadd.f32 %v279, %v2278
    %v2280 = vpop.f32.mrb[0].mxu0
    %2281 = vmatprep.mubr.f32.mxu0 0.0
    %2282 = vmatmul.mubr.f32.gmra.mrb[0].mxu0 %v2081
    %v2283 = vpop.f32.mrb[0].mxu0
    %v2284 = vadd.f32 %v279, %v2283
    %v2285 = vpop.f32.mrb[0].mxu0
    %2286 = vmatprep.mubr.f32.mxu0 0.0
    %2287 = vmatmul.mubr.f32.gmra.mrb[0].mxu0 %v2084
    %v2288 = vpop.f32.mrb[0].mxu0
    %v2289 = vadd.f32 %v279, %v2288
    %v2290 = vpop.f32.mrb[0].mxu0
    %2291 = vmatprep.mubr.f32.mxu0 0.0
    %2292 = vmatmul.mubr.f32.gmra.mrb[0].mxu0 %v2087
    %v2293 = vpop.f32.mrb[0].mxu0
    %v2294 = vadd.f32 %v279, %v2293
    %v2295 = vpop.f32.mrb[0].mxu0
    %2296 = vmatprep.mubr.f32.mxu0 0.0
    %2297 = vmatmul.mubr.f32.gmra.mrb[0].mxu0 %v2090
    %v2298 = vpop.f32.mrb[0].mxu0
    %v2299 = vadd.f32 %v279, %v2298
    %v2300 = vpop.f32.mrb[0].mxu0
    %2301 = vmatprep.mubr.f32.mxu0 0.0
    %2302 = vmatmul.mubr.f32.gmra.mrb[0].mxu0 %v2093
    %v2303 = vpop.f32.mrb[0].mxu0
    %v2304 = vadd.f32 %v279, %v2303
    %v2305 = vpop.f32.mrb[0].mxu0
    %2306 = vmatprep.mubr.f32.mxu0 0.0
    %2307 = vmatmul.mubr.f32.gmra.mrb[0].mxu0 %v2096
    %v2308 = vpop.f32.mrb[0].mxu0
    %v2309 = vadd.f32 %v279, %v2308
    %v2310 = vpop.f32.mrb[0].mxu0
    %2311 = vmatprep.mubr.f32.mxu0 0.0
    %2312 = vmatmul.mubr.f32.gmra.mrb[0].mxu0 %v2099
    %v2313 = vpop.f32.mrb[0].mxu0
    %v2314 = vadd.f32 %v279, %v2313
    %v2315 = vpop.f32.mrb[0].mxu0
    %2316 = vmatprep.mubr.f32.mxu0 0.0
    %2317 = vmatmul.mubr.f32.gmra.mrb[0].mxu0 %v2102
    %v2318 = vpop.f32.mrb[0].mxu0
    %v2319 = vadd.f32 %v279, %v2318
    %v2320 = vpop.f32.mrb[0].mxu0
    %2321 = vmatprep.mubr.f32.mxu0 0.0
    %2322 = vmatmul.mubr.f32.gmra.mrb[0].mxu0 %v2105
    %v2323 = vpop.f32.mrb[0].mxu0
    %v2324 = vadd.f32 %v279, %v2323
    %v2325 = vpop.f32.mrb[0].mxu0
    %2326 = vmatprep.mubr.f32.mxu0 0.0
    %2327 = vmatmul.mubr.f32.gmra.mrb[0].mxu0 %v2108
    %v2328 = vpop.f32.mrb[0].mxu0
    %v2329 = vadd.f32 %v279, %v2328
    %v2330 = vpop.f32.mrb[0].mxu0
    %2331 = vmatprep.mubr.f32.mxu0 0.0
    %2332 = vmatmul.mubr.f32.gmra.mrb[0].mxu0 %v2111
    %v2333 = vpop.f32.mrb[0].mxu0
    %v2334 = vadd.f32 %v279, %v2333
    %v2335 = vpop.f32.mrb[0].mxu0
    %2336 = vmatprep.mubr.f32.mxu0 0.0
    %2337 = vmatmul.mubr.f32.gmra.mrb[0].mxu0 %v2114
    %v2338 = vpop.f32.mrb[0].mxu0
    %v2339 = vadd.f32 %v279, %v2338
    %v2340 = vpop.f32.mrb[0].mxu0
    %2341 = vmatprep.mubr.f32.mxu0 0.0
    %2342 = vmatmul.mubr.f32.gmra.mrb[0].mxu0 %v2117
    %v2343 = vpop.f32.mrb[0].mxu0
    %v2344 = vadd.f32 %v279, %v2343
    %v2345 = vpop.f32.mrb[0].mxu0
    %2346 = vmatprep.mubr.f32.mxu0 0.0
    %2347 = vmatmul.mubr.f32.gmra.mrb[0].mxu0 %v2120
    %v2348 = vpop.f32.mrb[0].mxu0
    %v2349 = vadd.f32 %v279, %v2348
    %v2350 = vpop.f32.mrb[0].mxu0
    %2351 = vmatprep.mubr.f32.mxu0 0.0
    %2352 = vmatmul.mubr.f32.gmra.mrb[0].mxu0 %v2123
    %v2353 = vpop.f32.mrb[0].mxu0
    %v2354 = vadd.f32 %v279, %v2353
    %v2355 = vpop.f32.mrb[0].mxu0
    %2356 = vmatprep.mubr.f32.mxu0 0.0
    %2357 = vmatmul.mubr.f32.gmra.mrb[0].mxu0 %v2126
    %v2358 = vpop.f32.mrb[0].mxu0
    %v2359 = vadd.f32 %v279, %v2358
    %v2360 = vpop.f32.mrb[0].mxu0
    %2361 = vmatprep.mubr.f32.mxu0 0.0
    %2362 = vmatmul.mubr.f32.gmra.mrb[0].mxu0 %v2129
    %v2363 = vpop.f32.mrb[0].mxu0
    %v2364 = vadd.f32 %v279, %v2363
    %v2365 = vpop.f32.mrb[0].mxu0
    %2366 = vmatprep.mubr.f32.mxu0 0.0
    %2367 = vmatmul.mubr.f32.gmra.mrb[0].mxu0 %v2132
    %v2368 = vpop.f32.mrb[0].mxu0
    %v2369 = vadd.f32 %v279, %v2368
    %v2370 = vpop.f32.mrb[0].mxu0
    %2371 = vmatprep.mubr.f32.mxu0 0.0
    %2372 = vmatmul.mubr.f32.gmra.mrb[0].mxu0 %v2135
    %v2373 = vpop.f32.mrb[0].mxu0
    %v2374 = vadd.f32 %v279, %v2373
    %v2375 = vpop.f32.mrb[0].mxu0
    %2376 = vmatprep.mubr.f32.mxu0 0.0
    %2377 = vmatmul.mubr.f32.gmra.mrb[0].mxu0 %v2138
    %v2378 = vpop.f32.mrb[0].mxu0
    %v2379 = vadd.f32 %v279, %v2378
    %v2380 = vpop.f32.mrb[0].mxu0
    %2381 = vmatprep.mubr.f32.mxu0 0.0
    %2382 = vmatmul.mubr.f32.gmra.mrb[0].mxu0 %v2141
    %v2383 = vpop.f32.mrb[0].mxu0
    %v2384 = vadd.f32 %v279, %v2383
    %v2385 = vpop.f32.mrb[0].mxu0
    %2386 = vmatprep.mubr.f32.mxu0 0.0
    %2387 = vmatmul.mubr.f32.gmra.mrb[0].mxu0 %v2144
    %v2388 = vpop.f32.mrb[0].mxu0
    %v2389 = vadd.f32 %v279, %v2388
    %v2390 = vpop.f32.mrb[0].mxu0
    %2391 = vmatprep.mubr.f32.mxu0 0.0
    %2392 = vmatmul.mubr.f32.gmra.mrb[0].mxu0 %v2147
    %v2393 = vpop.f32.mrb[0].mxu0
    %v2394 = vadd.f32 %v279, %v2393
    %v2395 = vpop.f32.mrb[0].mxu0
    %2396 = vmatprep.mubr.f32.mxu0 0.0
    %2397 = vmatmul.mubr.f32.gmra.mrb[0].mxu0 %v2150
    %v2398 = vpop.f32.mrb[0].mxu0
    %v2399 = vadd.f32 %v279, %v2398
    %v2400 = vpop.f32.mrb[0].mxu0
    %2401 = vmatprep.mubr.f32.mxu0 0.0
    %2402 = vmatmul.mubr.f32.gmra.mrb[0].mxu0 %v2153
    %v2403 = vpop.f32.mrb[0].mxu0
    %v2404 = vadd.f32 %v279, %v2403
    %v2405 = vpop.f32.mrb[0].mxu0
    %2406 = vmatprep.mubr.f32.mxu0 0.0
    %2407 = vmatmul.mubr.f32.gmra.mrb[0].mxu0 %v2156
    %v2408 = vpop.f32.mrb[0].mxu0
    %v2409 = vadd.f32 %v279, %v2408
    %v2410 = vpop.f32.mrb[0].mxu0
    %2411 = vmatprep.mubr.f32.mxu0 0.0
    %2412 = vmatmul.mubr.f32.gmra.mrb[0].mxu0 %v2159
    %v2413 = vpop.f32.mrb[0].mxu0
    %v2414 = vadd.f32 %v279, %v2413
    %v2415 = vpop.f32.mrb[0].mxu0
    %2416 = vmatprep.mubr.f32.mxu0 0.0
    %2417 = vmatmul.mubr.f32.gmra.mrb[0].mxu0 %v2162
    %v2418 = vpop.f32.mrb[0].mxu0
    %v2419 = vadd.f32 %v279, %v2418
    %v2420 = vpop.f32.mrb[0].mxu0
    %2421 = vmatprep.mubr.f32.mxu0 0.0
    %2422 = vmatmul.mubr.f32.gmra.mrb[0].mxu0 %v2165
    %v2423 = vpop.f32.mrb[0].mxu0
    %v2424 = vadd.f32 %v279, %v2423
    %v2425 = vpop.f32.mrb[0].mxu0
    %2426 = vmatprep.mubr.f32.mxu0 0.0
    %2427 = vmatmul.mubr.f32.gmra.mrb[0].mxu0 %v2168
    %v2428 = vpop.f32.mrb[0].mxu0
    %v2429 = vadd.f32 %v279, %v2428
    %v2430 = vpop.f32.mrb[0].mxu0
    %2431 = vmatprep.mubr.f32.mxu0 0.0
    %2432 = vmatmul.mubr.f32.gmra.mrb[0].mxu0 %v2171
    %v2433 = vpop.f32.mrb[0].mxu0
    %v2434 = vadd.f32 %v279, %v2433
    %v2435 = vpop.f32.mrb[0].mxu0
    %2436 = vmatprep.mubr.f32.mxu0 0.0
    %2437 = vmatmul.mubr.f32.gmra.mrb[0].mxu0 %v2174
    %v2438 = vpop.f32.mrb[0].mxu0
    %v2439 = vadd.f32 %v279, %v2438
    %v2440 = vpop.f32.mrb[0].mxu0
    %2441 = vmatprep.mubr.f32.mxu0 0.0
    %2442 = vmatmul.mubr.f32.gmra.mrb[0].mxu0 %v2177
    %v2443 = vpop.f32.mrb[0].mxu0
    %v2444 = vadd.f32 %v279, %v2443
    %v2445 = vpop.f32.mrb[0].mxu0
    %2446 = vmatprep.mubr.f32.mxu0 0.0
    %2447 = vmatmul.mubr.f32.gmra.mrb[0].mxu0 %v2180
    %v2448 = vpop.f32.mrb[0].mxu0
    %v2449 = vadd.f32 %v279, %v2448
    %v2450 = vpop.f32.mrb[0].mxu0
    %2451 = vmatprep.mubr.f32.mxu0 0.0
    %2452 = vmatmul.mubr.f32.gmra.mrb[0].mxu0 %v2183
    %v2453 = vpop.f32.mrb[0].mxu0
    %v2454 = vadd.f32 %v279, %v2453
    %v2455 = vpop.f32.mrb[0].mxu0
    %2456 = vmatprep.mubr.f32.mxu0 0.0
    %2457 = vmatmul.mubr.f32.gmra.mrb[0].mxu0 %v2186
    %v2458 = vpop.f32.mrb[0].mxu0
    %v2459 = vadd.f32 %v279, %v2458
    %v2460 = vpop.f32.mrb[0].mxu0
    %2461 = vmatprep.mubr.f32.mxu0 0.0
    %2462 = vmatmul.mubr.f32.gmra.mrb[0].mxu0 %v2189
    %v2463 = vpop.f32.mrb[0].mxu0
    %v2464 = vadd.f32 %v279, %v2463
    %v2465 = vpop.f32.mrb[0].mxu0
    %2466 = vmatprep.mubr.f32.mxu0 0.0
    %2467 = vmatmul.mubr.f32.gmra.mrb[0].mxu0 %v2192
    %v2468 = vpop.f32.mrb[0].mxu0
    %v2469 = vadd.f32 %v279, %v2468
    %v2470 = vpop.f32.mrb[0].mxu0
    %2471 = vmatprep.mubr.f32.mxu0 0.0
    %2472 = vmatmul.mubr.f32.gmra.mrb[0].mxu0 %v2195
    %v2473 = vpop.f32.mrb[0].mxu0
    %v2474 = vadd.f32 %v279, %v2473
    %v2475 = vpop.f32.mrb[0].mxu0
    %2476 = vmatprep.mubr.f32.mxu0 0.0
    %2477 = vmatmul.mubr.f32.gmra.mrb[0].mxu0 %v2198
    %v2478 = vpop.f32.mrb[0].mxu0
    %v2479 = vadd.f32 %v279, %v2478
    %v2480 = vpop.f32.mrb[0].mxu0
    %2481 = vmatprep.mubr.f32.mxu0 0.0
    %2482 = vmatmul.mubr.f32.gmra.mrb[0].mxu0 %v2201
    %v2483 = vpop.f32.mrb[0].mxu0
    %v2484 = vadd.f32 %v279, %v2483
    %v2485 = vpop.f32.mrb[0].mxu0
    %2486 = vmatprep.mubr.f32.mxu0 0.0
    %2487 = vmatmul.mubr.f32.gmra.mrb[0].mxu0 %v2204
    %v2488 = vpop.f32.mrb[0].mxu0
    %v2489 = vadd.f32 %v279, %v2488
    %v2490 = vpop.f32.mrb[0].mxu0
    %2491 = vmatprep.mubr.f32.mxu0 0.0
    %2492 = vmatmul.mubr.f32.gmra.mrb[0].mxu0 %v2207
    %v2493 = vpop.f32.mrb[0].mxu0
    %v2494 = vadd.f32 %v279, %v2493
    %v2495 = vpop.f32.mrb[0].mxu0
    %2496 = vmatprep.mubr.f32.mxu0 0.0
    %2497 = vmatmul.mubr.f32.gmra.mrb[0].mxu0 %v2210
    %v2498 = vpop.f32.mrb[0].mxu0
    %v2499 = vadd.f32 %v279, %v2498
    %v2500 = vpop.f32.mrb[0].mxu0
    %2501 = vdwg.mxu0
    %v2502 = vtanh.pop %v2279
    %v2503 = vtanh.pop %v2284
    %v2504 = vtanh.pop %v2289
    %v2505 = vtanh.pop %v2294
    %v2506 = vtanh.pop %v2299
    %v2507 = vtanh.pop %v2304
    %v2508 = vtanh.pop %v2309
    %v2509 = vtanh.pop %v2314
    %v2510 = vtanh.pop %v2319
    %v2511 = vtanh.pop %v2324
    %v2512 = vtanh.pop %v2329
    %v2513 = vtanh.pop %v2334
    %v2514 = vtanh.pop %v2339
    %v2515 = vtanh.pop %v2344
    %v2516 = vtanh.pop %v2349
    %v2517 = vtanh.pop %v2354
    %v2518 = vtanh.pop %v2359
    %v2519 = vtanh.pop %v2364
    %v2520 = vtanh.pop %v2369
    %v2521 = vtanh.pop %v2374
    %v2522 = vtanh.pop %v2379
    %v2523 = vtanh.pop %v2384
    %v2524 = vtanh.pop %v2389
    %v2525 = vtanh.pop %v2394
    %v2526 = vtanh.pop %v2399
    %v2527 = vtanh.pop %v2404
    %v2528 = vtanh.pop %v2409
    %v2529 = vtanh.pop %v2414
    %v2530 = vtanh.pop %v2419
    %v2531 = vtanh.pop %v2424
    %v2532 = vtanh.pop %v2429
    %v2533 = vtanh.pop %v2434
    %v2534 = vtanh.pop %v2439
    %v2535 = vtanh.pop %v2444
    %v2536 = vtanh.pop %v2449
    %v2537 = vtanh.pop %v2454
    %v2538 = vtanh.pop %v2459
    %v2539 = vtanh.pop %v2464
    %v2540 = vtanh.pop %v2469
    %v2541 = vtanh.pop %v2474
    %v2542 = vtanh.pop %v2479
    %v2543 = vtanh.pop %v2484
    %v2544 = vtanh.pop %v2489
    %v2545 = vtanh.pop %v2494
    %v2546 = vtanh.pop %v2499
    %v2548 = vsel %vm761, %v2502, 0
    %v2551 = vsel %vm761, %v2503, 0
    %v2554 = vsel %vm761, %v2504, 0
    %v2557 = vsel %vm761, %v2505, 0
    %v2560 = vsel %vm761, %v2506, 0
    %v2563 = vsel %vm761, %v2507, 0
    %v2566 = vsel %vm761, %v2508, 0
    %v2569 = vsel %vm761, %v2509, 0
    %v2572 = vsel %vm761, %v2510, 0
    %v2575 = vsel %vm761, %v2511, 0
    %v2578 = vsel %vm761, %v2512, 0
    %v2581 = vsel %vm761, %v2513, 0
    %v2584 = vsel %vm761, %v2514, 0
    %v2587 = vsel %vm761, %v2515, 0
    %v2590 = vsel %vm761, %v2516, 0
    %v2593 = vsel %vm761, %v2517, 0
    %v2596 = vsel %vm761, %v2518, 0
    %v2599 = vsel %vm761, %v2519, 0
    %v2602 = vsel %vm761, %v2520, 0
    %v2605 = vsel %vm761, %v2521, 0
    %v2608 = vsel %vm761, %v2522, 0
    %v2611 = vsel %vm761, %v2523, 0
    %v2614 = vsel %vm761, %v2524, 0
    %v2617 = vsel %vm761, %v2525, 0
    %v2620 = vsel %vm761, %v2526, 0
    %v2623 = vsel %vm761, %v2527, 0
    %v2626 = vsel %vm761, %v2528, 0
    %v2629 = vsel %vm761, %v2529, 0
    %v2632 = vsel %vm761, %v2530, 0
    %v2635 = vsel %vm761, %v2531, 0
    %v2638 = vsel %vm761, %v2532, 0
    %v2641 = vsel %vm761, %v2533, 0
    %v2644 = vsel %vm761, %v2534, 0
    %v2647 = vsel %vm761, %v2535, 0
    %v2650 = vsel %vm761, %v2536, 0
    %v2653 = vsel %vm761, %v2537, 0
    %v2656 = vsel %vm761, %v2538, 0
    %v2659 = vsel %vm761, %v2539, 0
    %v2662 = vsel %vm761, %v2540, 0
    %v2665 = vsel %vm761, %v2541, 0
    %v2668 = vsel %vm761, %v2542, 0
    %v2671 = vsel %vm761, %v2543, 0
    %v2674 = vsel %vm761, %v2544, 0
    %v2677 = vsel %vm761, %v2545, 0
    %v2680 = vsel %vm761, %v2546, 0
    %2682 = vmatprep.subr.mxu0 0.0
    %2683 = vmatpush1.msra.mxu0 %v752
    %2684 = vmatprep.subr.mxu0 0.0
    %2685 = vmatpush1.msra.mxu0 %v753
    %2686 = vmatprep.subr.mxu0 0.0
    %2687 = vmatpush1.msra.mxu0 0.0
    %2688 = vmatprep.subr.mxu0 0.0
    %2689 = vmatpush1.msra.mxu0 0.0
    %2690 = vmatprep.subr.mxu0 0.0
    %2691 = vmatpush1.msra.mxu0 0.0
    %2692 = vmatprep.subr.mxu0 0.0
    %2693 = vmatpush1.msra.mxu0 0.0
    %2694 = vmatprep.subr.mxu0 0.0
    %2695 = vmatpush1.msra.mxu0 0.0
    %2696 = vmatprep.subr.mxu0 0.0
    %2697 = vmatpush1.msra.mxu0 0.0
    %2698 = vmatprep.subr.mxu0 0.0
    %2699 = vmatpush1.msra.mxu0 0.0
    %2700 = vmatprep.subr.mxu0 0.0
    %2701 = vmatpush1.msra.mxu0 0.0
    %2702 = vmatprep.subr.mxu0 0.0
    %2703 = vmatpush1.msra.mxu0 0.0
    %2704 = vmatprep.subr.mxu0 0.0
    %2705 = vmatpush1.msra.mxu0 0.0
    %2706 = vmatprep.subr.mxu0 0.0
    %2707 = vmatpush1.msra.mxu0 0.0
    %2708 = vmatprep.subr.mxu0 0.0
    %2709 = vmatpush1.msra.mxu0 0.0
    %2710 = vmatprep.subr.mxu0 0.0
    %2711 = vmatpush1.msra.mxu0 0.0
    %2712 = vmatprep.subr.mxu0 0.0
    %2713 = vmatpush1.msra.mxu0 0.0
    %2714 = vmatprep.subr.mxu0 0.0
    %2715 = vmatpush1.msra.mxu0 0.0
    %2716 = vmatprep.subr.mxu0 0.0
    %2717 = vmatpush1.msra.mxu0 0.0
    %2718 = vmatprep.subr.mxu0 0.0
    %2719 = vmatpush1.msra.mxu0 0.0
    %2720 = vmatprep.subr.mxu0 0.0
    %2721 = vmatpush1.msra.mxu0 0.0
    %2722 = vmatprep.subr.mxu0 0.0
    %2723 = vmatpush1.msra.mxu0 0.0
    %2724 = vmatprep.subr.mxu0 0.0
    %2725 = vmatpush1.msra.mxu0 0.0
    %2726 = vmatprep.subr.mxu0 0.0
    %2727 = vmatpush1.msra.mxu0 0.0
    %2728 = vmatprep.subr.mxu0 0.0
    %2729 = vmatpush1.msra.mxu0 0.0
    %2730 = vmatprep.subr.mxu0 0.0
    %2731 = vmatpush1.msra.mxu0 0.0
    %2732 = vmatprep.subr.mxu0 0.0
    %2733 = vmatpush1.msra.mxu0 0.0
    %2734 = vmatprep.subr.mxu0 0.0
    %2735 = vmatpush1.msra.mxu0 0.0
    %2736 = vmatprep.subr.mxu0 0.0
    %2737 = vmatpush1.msra.mxu0 0.0
    %2738 = vmatprep.subr.mxu0 0.0
    %2739 = vmatpush1.msra.mxu0 0.0
    %2740 = vmatprep.subr.mxu0 0.0
    %2741 = vmatpush1.msra.mxu0 0.0
    %2742 = vmatprep.subr.mxu0 0.0
    %2743 = vmatpush1.msra.mxu0 0.0
    %2744 = vmatprep.subr.mxu0 0.0
    %2745 = vmatpush1.msra.mxu0 0.0
    %2746 = vmatprep.mubr.f32.mxu0 0.0
    %2747 = vmatmul.mubr.f32.gmra.mrb[0].mxu0 %v2548
    %v2748 = vpop.f32.mrb[0].mxu0
    %v2749 = vadd.f32 %v759, %v2748
    %v2750 = vpop.f32.mrb[0].mxu0
    %2751 = vmatprep.mubr.f32.mxu0 0.0
    %2752 = vmatmul.mubr.f32.gmra.mrb[0].mxu0 %v2551
    %v2753 = vpop.f32.mrb[0].mxu0
    %v2754 = vadd.f32 %v759, %v2753
    %v2755 = vpop.f32.mrb[0].mxu0
    %2756 = vmatprep.mubr.f32.mxu0 0.0
    %2757 = vmatmul.mubr.f32.gmra.mrb[0].mxu0 %v2554
    %v2758 = vpop.f32.mrb[0].mxu0
    %v2759 = vadd.f32 %v759, %v2758
    %v2760 = vpop.f32.mrb[0].mxu0
    %2761 = vmatprep.mubr.f32.mxu0 0.0
    %2762 = vmatmul.mubr.f32.gmra.mrb[0].mxu0 %v2557
    %v2763 = vpop.f32.mrb[0].mxu0
    %v2764 = vadd.f32 %v759, %v2763
    %v2765 = vpop.f32.mrb[0].mxu0
    %2766 = vmatprep.mubr.f32.mxu0 0.0
    %2767 = vmatmul.mubr.f32.gmra.mrb[0].mxu0 %v2560
    %v2768 = vpop.f32.mrb[0].mxu0
    %v2769 = vadd.f32 %v759, %v2768
    %v2770 = vpop.f32.mrb[0].mxu0
    %2771 = vmatprep.mubr.f32.mxu0 0.0
    %2772 = vmatmul.mubr.f32.gmra.mrb[0].mxu0 %v2563
    %v2773 = vpop.f32.mrb[0].mxu0
    %v2774 = vadd.f32 %v759, %v2773
    %v2775 = vpop.f32.mrb[0].mxu0
    %2776 = vmatprep.mubr.f32.mxu0 0.0
    %2777 = vmatmul.mubr.f32.gmra.mrb[0].mxu0 %v2566
    %v2778 = vpop.f32.mrb[0].mxu0
    %v2779 = vadd.f32 %v759, %v2778
    %v2780 = vpop.f32.mrb[0].mxu0
    %2781 = vmatprep.mubr.f32.mxu0 0.0
    %2782 = vmatmul.mubr.f32.gmra.mrb[0].mxu0 %v2569
    %v2783 = vpop.f32.mrb[0].mxu0
    %v2784 = vadd.f32 %v759, %v2783
    %v2785 = vpop.f32.mrb[0].mxu0
    %2786 = vmatprep.mubr.f32.mxu0 0.0
    %2787 = vmatmul.mubr.f32.gmra.mrb[0].mxu0 %v2572
    %v2788 = vpop.f32.mrb[0].mxu0
    %v2789 = vadd.f32 %v759, %v2788
    %v2790 = vpop.f32.mrb[0].mxu0
    %2791 = vmatprep.mubr.f32.mxu0 0.0
    %2792 = vmatmul.mubr.f32.gmra.mrb[0].mxu0 %v2575
    %v2793 = vpop.f32.mrb[0].mxu0
    %v2794 = vadd.f32 %v759, %v2793
    %v2795 = vpop.f32.mrb[0].mxu0
    %2796 = vmatprep.mubr.f32.mxu0 0.0
    %2797 = vmatmul.mubr.f32.gmra.mrb[0].mxu0 %v2578
    %v2798 = vpop.f32.mrb[0].mxu0
    %v2799 = vadd.f32 %v759, %v2798
    %v2800 = vpop.f32.mrb[0].mxu0
    %2801 = vmatprep.mubr.f32.mxu0 0.0
    %2802 = vmatmul.mubr.f32.gmra.mrb[0].mxu0 %v2581
    %v2803 = vpop.f32.mrb[0].mxu0
    %v2804 = vadd.f32 %v759, %v2803
    %v2805 = vpop.f32.mrb[0].mxu0
    %2806 = vmatprep.mubr.f32.mxu0 0.0
    %2807 = vmatmul.mubr.f32.gmra.mrb[0].mxu0 %v2584
    %v2808 = vpop.f32.mrb[0].mxu0
    %v2809 = vadd.f32 %v759, %v2808
    %v2810 = vpop.f32.mrb[0].mxu0
    %2811 = vmatprep.mubr.f32.mxu0 0.0
    %2812 = vmatmul.mubr.f32.gmra.mrb[0].mxu0 %v2587
    %v2813 = vpop.f32.mrb[0].mxu0
    %v2814 = vadd.f32 %v759, %v2813
    %v2815 = vpop.f32.mrb[0].mxu0
    %2816 = vmatprep.mubr.f32.mxu0 0.0
    %2817 = vmatmul.mubr.f32.gmra.mrb[0].mxu0 %v2590
    %v2818 = vpop.f32.mrb[0].mxu0
    %v2819 = vadd.f32 %v759, %v2818
    %v2820 = vpop.f32.mrb[0].mxu0
    %2821 = vmatprep.mubr.f32.mxu0 0.0
    %2822 = vmatmul.mubr.f32.gmra.mrb[0].mxu0 %v2593
    %v2823 = vpop.f32.mrb[0].mxu0
    %v2824 = vadd.f32 %v759, %v2823
    %v2825 = vpop.f32.mrb[0].mxu0
    %2826 = vmatprep.mubr.f32.mxu0 0.0
    %2827 = vmatmul.mubr.f32.gmra.mrb[0].mxu0 %v2596
    %v2828 = vpop.f32.mrb[0].mxu0
    %v2829 = vadd.f32 %v759, %v2828
    %v2830 = vpop.f32.mrb[0].mxu0
    %2831 = vmatprep.mubr.f32.mxu0 0.0
    %2832 = vmatmul.mubr.f32.gmra.mrb[0].mxu0 %v2599
    %v2833 = vpop.f32.mrb[0].mxu0
    %v2834 = vadd.f32 %v759, %v2833
    %v2835 = vpop.f32.mrb[0].mxu0
    %2836 = vmatprep.mubr.f32.mxu0 0.0
    %2837 = vmatmul.mubr.f32.gmra.mrb[0].mxu0 %v2602
    %v2838 = vpop.f32.mrb[0].mxu0
    %v2839 = vadd.f32 %v759, %v2838
    %v2840 = vpop.f32.mrb[0].mxu0
    %2841 = vmatprep.mubr.f32.mxu0 0.0
    %2842 = vmatmul.mubr.f32.gmra.mrb[0].mxu0 %v2605
    %v2843 = vpop.f32.mrb[0].mxu0
    %v2844 = vadd.f32 %v759, %v2843
    %v2845 = vpop.f32.mrb[0].mxu0
    %2846 = vmatprep.mubr.f32.mxu0 0.0
    %2847 = vmatmul.mubr.f32.gmra.mrb[0].mxu0 %v2608
    %v2848 = vpop.f32.mrb[0].mxu0
    %v2849 = vadd.f32 %v759, %v2848
    %v2850 = vpop.f32.mrb[0].mxu0
    %2851 = vmatprep.mubr.f32.mxu0 0.0
    %2852 = vmatmul.mubr.f32.gmra.mrb[0].mxu0 %v2611
    %v2853 = vpop.f32.mrb[0].mxu0
    %v2854 = vadd.f32 %v759, %v2853
    %v2855 = vpop.f32.mrb[0].mxu0
    %2856 = vmatprep.mubr.f32.mxu0 0.0
    %2857 = vmatmul.mubr.f32.gmra.mrb[0].mxu0 %v2614
    %v2858 = vpop.f32.mrb[0].mxu0
    %v2859 = vadd.f32 %v759, %v2858
    %v2860 = vpop.f32.mrb[0].mxu0
    %2861 = vmatprep.mubr.f32.mxu0 0.0
    %2862 = vmatmul.mubr.f32.gmra.mrb[0].mxu0 %v2617
    %v2863 = vpop.f32.mrb[0].mxu0
    %v2864 = vadd.f32 %v759, %v2863
    %v2865 = vpop.f32.mrb[0].mxu0
    %2866 = vmatprep.mubr.f32.mxu0 0.0
    %2867 = vmatmul.mubr.f32.gmra.mrb[0].mxu0 %v2620
    %v2868 = vpop.f32.mrb[0].mxu0
    %v2869 = vadd.f32 %v759, %v2868
    %v2870 = vpop.f32.mrb[0].mxu0
    %2871 = vmatprep.mubr.f32.mxu0 0.0
    %2872 = vmatmul.mubr.f32.gmra.mrb[0].mxu0 %v2623
    %v2873 = vpop.f32.mrb[0].mxu0
    %v2874 = vadd.f32 %v759, %v2873
    %v2875 = vpop.f32.mrb[0].mxu0
    %2876 = vmatprep.mubr.f32.mxu0 0.0
    %2877 = vmatmul.mubr.f32.gmra.mrb[0].mxu0 %v2626
    %v2878 = vpop.f32.mrb[0].mxu0
    %v2879 = vadd.f32 %v759, %v2878
    %v2880 = vpop.f32.mrb[0].mxu0
    %2881 = vmatprep.mubr.f32.mxu0 0.0
    %2882 = vmatmul.mubr.f32.gmra.mrb[0].mxu0 %v2629
    %v2883 = vpop.f32.mrb[0].mxu0
    %v2884 = vadd.f32 %v759, %v2883
    %v2885 = vpop.f32.mrb[0].mxu0
    %2886 = vmatprep.mubr.f32.mxu0 0.0
    %2887 = vmatmul.mubr.f32.gmra.mrb[0].mxu0 %v2632
    %v2888 = vpop.f32.mrb[0].mxu0
    %v2889 = vadd.f32 %v759, %v2888
    %v2890 = vpop.f32.mrb[0].mxu0
    %2891 = vmatprep.mubr.f32.mxu0 0.0
    %2892 = vmatmul.mubr.f32.gmra.mrb[0].mxu0 %v2635
    %v2893 = vpop.f32.mrb[0].mxu0
    %v2894 = vadd.f32 %v759, %v2893
    %v2895 = vpop.f32.mrb[0].mxu0
    %2896 = vmatprep.mubr.f32.mxu0 0.0
    %2897 = vmatmul.mubr.f32.gmra.mrb[0].mxu0 %v2638
    %v2898 = vpop.f32.mrb[0].mxu0
    %v2899 = vadd.f32 %v759, %v2898
    %v2900 = vpop.f32.mrb[0].mxu0
    %2901 = vmatprep.mubr.f32.mxu0 0.0
    %2902 = vmatmul.mubr.f32.gmra.mrb[0].mxu0 %v2641
    %v2903 = vpop.f32.mrb[0].mxu0
    %v2904 = vadd.f32 %v759, %v2903
    %v2905 = vpop.f32.mrb[0].mxu0
    %2906 = vmatprep.mubr.f32.mxu0 0.0
    %2907 = vmatmul.mubr.f32.gmra.mrb[0].mxu0 %v2644
    %v2908 = vpop.f32.mrb[0].mxu0
    %v2909 = vadd.f32 %v759, %v2908
    %v2910 = vpop.f32.mrb[0].mxu0
    %2911 = vmatprep.mubr.f32.mxu0 0.0
    %2912 = vmatmul.mubr.f32.gmra.mrb[0].mxu0 %v2647
    %v2913 = vpop.f32.mrb[0].mxu0
    %v2914 = vadd.f32 %v759, %v2913
    %v2915 = vpop.f32.mrb[0].mxu0
    %2916 = vmatprep.mubr.f32.mxu0 0.0
    %2917 = vmatmul.mubr.f32.gmra.mrb[0].mxu0 %v2650
    %v2918 = vpop.f32.mrb[0].mxu0
    %v2919 = vadd.f32 %v759, %v2918
    %v2920 = vpop.f32.mrb[0].mxu0
    %2921 = vmatprep.mubr.f32.mxu0 0.0
    %2922 = vmatmul.mubr.f32.gmra.mrb[0].mxu0 %v2653
    %v2923 = vpop.f32.mrb[0].mxu0
    %v2924 = vadd.f32 %v759, %v2923
    %v2925 = vpop.f32.mrb[0].mxu0
    %2926 = vmatprep.mubr.f32.mxu0 0.0
    %2927 = vmatmul.mubr.f32.gmra.mrb[0].mxu0 %v2656
    %v2928 = vpop.f32.mrb[0].mxu0
    %v2929 = vadd.f32 %v759, %v2928
    %v2930 = vpop.f32.mrb[0].mxu0
    %2931 = vmatprep.mubr.f32.mxu0 0.0
    %2932 = vmatmul.mubr.f32.gmra.mrb[0].mxu0 %v2659
    %v2933 = vpop.f32.mrb[0].mxu0
    %v2934 = vadd.f32 %v759, %v2933
    %v2935 = vpop.f32.mrb[0].mxu0
    %2936 = vmatprep.mubr.f32.mxu0 0.0
    %2937 = vmatmul.mubr.f32.gmra.mrb[0].mxu0 %v2662
    %v2938 = vpop.f32.mrb[0].mxu0
    %v2939 = vadd.f32 %v759, %v2938
    %v2940 = vpop.f32.mrb[0].mxu0
    %2941 = vmatprep.mubr.f32.mxu0 0.0
    %2942 = vmatmul.mubr.f32.gmra.mrb[0].mxu0 %v2665
    %v2943 = vpop.f32.mrb[0].mxu0
    %v2944 = vadd.f32 %v759, %v2943
    %v2945 = vpop.f32.mrb[0].mxu0
    %2946 = vmatprep.mubr.f32.mxu0 0.0
    %2947 = vmatmul.mubr.f32.gmra.mrb[0].mxu0 %v2668
    %v2948 = vpop.f32.mrb[0].mxu0
    %v2949 = vadd.f32 %v759, %v2948
    %v2950 = vpop.f32.mrb[0].mxu0
    %2951 = vmatprep.mubr.f32.mxu0 0.0
    %2952 = vmatmul.mubr.f32.gmra.mrb[0].mxu0 %v2671
    %v2953 = vpop.f32.mrb[0].mxu0
    %v2954 = vadd.f32 %v759, %v2953
    %v2955 = vpop.f32.mrb[0].mxu0
    %2956 = vmatprep.mubr.f32.mxu0 0.0
    %2957 = vmatmul.mubr.f32.gmra.mrb[0].mxu0 %v2674
    %v2958 = vpop.f32.mrb[0].mxu0
    %v2959 = vadd.f32 %v759, %v2958
    %v2960 = vpop.f32.mrb[0].mxu0
    %2961 = vmatprep.mubr.f32.mxu0 0.0
    %2962 = vmatmul.mubr.f32.gmra.mrb[0].mxu0 %v2677
    %v2963 = vpop.f32.mrb[0].mxu0
    %v2964 = vadd.f32 %v759, %v2963
    %v2965 = vpop.f32.mrb[0].mxu0
    %2966 = vmatprep.mubr.f32.mxu0 0.0
    %2967 = vmatmul.mubr.f32.gmra.mrb[0].mxu0 %v2680
    %v2968 = vpop.f32.mrb[0].mxu0
    %v2969 = vadd.f32 %v759, %v2968
    %v2970 = vpop.f32.mrb[0].mxu0
    %2971 = vdwg.mxu0
    %v2972 = vsel %vm1187, %v2749, -inf
    %v2973 = vsel %vm1187, %v2754, -inf
    %v2974 = vsel %vm1187, %v2759, -inf
    %v2975 = vsel %vm1187, %v2764, -inf
    %v2976 = vsel %vm1187, %v2769, -inf
    %v2977 = vmax.f32 %v2972, %v2976
    %v2978 = vsel %vm1187, %v2774, -inf
    %v2979 = vmax.f32 %v2973, %v2978
    %v2980 = vsel %vm1187, %v2779, -inf
    %v2981 = vmax.f32 %v2974, %v2980
    %v2982 = vsel %vm1187, %v2784, -inf
    %v2983 = vmax.f32 %v2975, %v2982
    %v2984 = vsel %vm1187, %v2789, -inf
    %v2985 = vmax.f32 %v2977, %v2984
    %v2986 = vsel %vm1187, %v2794, -inf
    %v2987 = vmax.f32 %v2979, %v2986
    %v2988 = vsel %vm1187, %v2799, -inf
    %v2989 = vmax.f32 %v2981, %v2988
    %v2990 = vsel %vm1187, %v2804, -inf
    %v2991 = vmax.f32 %v2983, %v2990
    %v2992 = vsel %vm1187, %v2809, -inf
    %v2993 = vmax.f32 %v2985, %v2992
    %v2994 = vsel %vm1187, %v2814, -inf
    %v2995 = vmax.f32 %v2987, %v2994
    %v2996 = vsel %vm1187, %v2819, -inf
    %v2997 = vmax.f32 %v2989, %v2996
    %v2998 = vsel %vm1187, %v2824, -inf
    %v2999 = vmax.f32 %v2991, %v2998
    %v3000 = vsel %vm1187, %v2829, -inf
    %v3001 = vmax.f32 %v2993, %v3000
    %v3002 = vsel %vm1187, %v2834, -inf
    %v3003 = vmax.f32 %v2995, %v3002
    %v3004 = vsel %vm1187, %v2839, -inf
    %v3005 = vmax.f32 %v2997, %v3004
    %v3006 = vsel %vm1187, %v2844, -inf
    %v3007 = vmax.f32 %v2999, %v3006
    %v3008 = vsel %vm1187, %v2849, -inf
    %v3009 = vmax.f32 %v3001, %v3008
    %v3010 = vsel %vm1187, %v2854, -inf
    %v3011 = vmax.f32 %v3003, %v3010
    %v3012 = vsel %vm1187, %v2859, -inf
    %v3013 = vmax.f32 %v3005, %v3012
    %v3014 = vsel %vm1187, %v2864, -inf
    %v3015 = vmax.f32 %v3007, %v3014
    %v3016 = vsel %vm1187, %v2869, -inf
    %v3017 = vmax.f32 %v3009, %v3016
    %v3018 = vsel %vm1187, %v2874, -inf
    %v3019 = vmax.f32 %v3011, %v3018
    %v3020 = vsel %vm1187, %v2879, -inf
    %v3021 = vmax.f32 %v3013, %v3020
    %v3022 = vsel %vm1187, %v2884, -inf
    %v3023 = vmax.f32 %v3015, %v3022
    %v3024 = vsel %vm1187, %v2889, -inf
    %v3025 = vmax.f32 %v3017, %v3024
    %v3026 = vsel %vm1187, %v2894, -inf
    %v3027 = vmax.f32 %v3019, %v3026
    %v3028 = vsel %vm1187, %v2899, -inf
    %v3029 = vmax.f32 %v3021, %v3028
    %v3030 = vsel %vm1187, %v2904, -inf
    %v3031 = vmax.f32 %v3023, %v3030
    %v3032 = vsel %vm1187, %v2909, -inf
    %v3033 = vmax.f32 %v3025, %v3032
    %v3034 = vsel %vm1187, %v2914, -inf
    %v3035 = vmax.f32 %v3027, %v3034
    %v3036 = vsel %vm1187, %v2919, -inf
    %v3037 = vmax.f32 %v3029, %v3036
    %v3038 = vsel %vm1187, %v2924, -inf
    %v3039 = vmax.f32 %v3031, %v3038
    %v3040 = vsel %vm1187, %v2929, -inf
    %v3041 = vmax.f32 %v3033, %v3040
    %v3042 = vsel %vm1187, %v2934, -inf
    %v3043 = vmax.f32 %v3035, %v3042
    %v3044 = vsel %vm1187, %v2939, -inf
    %v3045 = vmax.f32 %v3037, %v3044
    %v3046 = vsel %vm1187, %v2944, -inf
    %v3047 = vmax.f32 %v3039, %v3046
    %v3048 = vsel %vm1187, %v2949, -inf
    %v3049 = vmax.f32 %v3041, %v3048
    %v3050 = vsel %vm1187, %v2954, -inf
    %v3051 = vmax.f32 %v3043, %v3050
    %v3052 = vsel %vm1187, %v2959, -inf
    %v3053 = vmax.f32 %v3045, %v3052
    %v3054 = vsel %vm1187, %v2964, -inf
    %v3055 = vmax.f32 %v3047, %v3054
    %v3056 = vsel %vm1272, %v2969, -inf
    %v3057 = vmax.f32 %v3049, %v3056
    %v3058 = vmax.f32 %v3057, %v3051
    %v3059 = vmax.f32 %v3053, %v3055
    %v3060 = vmax.f32 %v3058, %v3059
    %v3061 = vrot.slane %v3060, 4
    %v3062 = vmax.f32 %v3060, %v3061
    %v3063 = vrot.slane %v3062, 2
    %v3064 = vmax.f32 %v3062, %v3063
    %v3065 = vrot.slane %v3064, 1
    %v3066 = vmax.f32 %v3064, %v3065
    %v3067 = vsub.f32 %v2749, %v3066
    %v3068 = vsub.f32 %v2754, %v3066
    %v3069 = vsub.f32 %v2759, %v3066
    %v3070 = vsub.f32 %v2764, %v3066
    %v3071 = vsub.f32 %v2769, %v3066
    %v3072 = vsub.f32 %v2774, %v3066
    %v3073 = vsub.f32 %v2779, %v3066
    %v3074 = vsub.f32 %v2784, %v3066
    %v3075 = vsub.f32 %v2789, %v3066
    %v3076 = vsub.f32 %v2794, %v3066
    %v3077 = vsub.f32 %v2799, %v3066
    %v3078 = vsub.f32 %v2804, %v3066
    %v3079 = vsub.f32 %v2809, %v3066
    %v3080 = vsub.f32 %v2814, %v3066
    %v3081 = vsub.f32 %v2819, %v3066
    %v3082 = vsub.f32 %v2824, %v3066
    %v3083 = vsub.f32 %v2829, %v3066
    %v3084 = vsub.f32 %v2834, %v3066
    %v3085 = vsub.f32 %v2839, %v3066
    %v3086 = vsub.f32 %v2844, %v3066
    %v3087 = vsub.f32 %v2849, %v3066
    %v3088 = vsub.f32 %v2854, %v3066
    %v3089 = vsub.f32 %v2859, %v3066
    %v3090 = vsub.f32 %v2864, %v3066
    %v3091 = vsub.f32 %v2869, %v3066
    %v3092 = vsub.f32 %v2874, %v3066
    %v3093 = vsub.f32 %v2879, %v3066
    %v3094 = vsub.f32 %v2884, %v3066
    %v3095 = vsub.f32 %v2889, %v3066
    %v3096 = vsub.f32 %v2894, %v3066
    %v3097 = vsub.f32 %v2899, %v3066
    %v3098 = vsub.f32 %v2904, %v3066
    %v3099 = vsub.f32 %v2909, %v3066
    %v3100 = vsub.f32 %v2914, %v3066
    %v3101 = vsub.f32 %v2919, %v3066
    %v3102 = vsub.f32 %v2924, %v3066
    %v3103 = vsub.f32 %v2929, %v3066
    %v3104 = vsub.f32 %v2934, %v3066
    %v3105 = vsub.f32 %v2939, %v3066
    %v3106 = vsub.f32 %v2944, %v3066
    %v3107 = vsub.f32 %v2949, %v3066
    %v3108 = vsub.f32 %v2954, %v3066
    %v3109 = vsub.f32 %v2959, %v3066
    %v3110 = vsub.f32 %v2964, %v3066
    %v3111 = vsub.f32 %v2969, %v3066
    %v3112 = vmul.f32 %v3067, 1.442695
    %v3113 = vpow.pop %v3112
    %v3114 = vmul.f32 %v3068, 1.442695
    %v3115 = vpow.pop %v3114
    %v3116 = vmul.f32 %v3069, 1.442695
    %v3117 = vpow.pop %v3116
    %v3118 = vmul.f32 %v3070, 1.442695
    %v3119 = vpow.pop %v3118
    %v3120 = vmul.f32 %v3071, 1.442695
    %v3121 = vpow.pop %v3120
    %v3122 = vmul.f32 %v3072, 1.442695
    %v3123 = vpow.pop %v3122
    %v3124 = vmul.f32 %v3073, 1.442695
    %v3125 = vpow.pop %v3124
    %v3126 = vmul.f32 %v3074, 1.442695
    %v3127 = vpow.pop %v3126
    %v3128 = vmul.f32 %v3075, 1.442695
    %v3129 = vpow.pop %v3128
    %v3130 = vmul.f32 %v3076, 1.442695
    %v3131 = vpow.pop %v3130
    %v3132 = vmul.f32 %v3077, 1.442695
    %v3133 = vpow.pop %v3132
    %v3134 = vmul.f32 %v3078, 1.442695
    %v3135 = vpow.pop %v3134
    %v3136 = vmul.f32 %v3079, 1.442695
    %v3137 = vpow.pop %v3136
    %v3138 = vmul.f32 %v3080, 1.442695
    %v3139 = vpow.pop %v3138
    %v3140 = vmul.f32 %v3081, 1.442695
    %v3141 = vpow.pop %v3140
    %v3142 = vmul.f32 %v3082, 1.442695
    %v3143 = vpow.pop %v3142
    %v3144 = vmul.f32 %v3083, 1.442695
    %v3145 = vpow.pop %v3144
    %v3146 = vmul.f32 %v3084, 1.442695
    %v3147 = vpow.pop %v3146
    %v3148 = vmul.f32 %v3085, 1.442695
    %v3149 = vpow.pop %v3148
    %v3150 = vmul.f32 %v3086, 1.442695
    %v3151 = vpow.pop %v3150
    %v3152 = vmul.f32 %v3087, 1.442695
    %v3153 = vpow.pop %v3152
    %v3154 = vmul.f32 %v3088, 1.442695
    %v3155 = vpow.pop %v3154
    %v3156 = vmul.f32 %v3089, 1.442695
    %v3157 = vpow.pop %v3156
    %v3158 = vmul.f32 %v3090, 1.442695
    %v3159 = vpow.pop %v3158
    %v3160 = vmul.f32 %v3091, 1.442695
    %v3161 = vpow.pop %v3160
    %v3162 = vmul.f32 %v3092, 1.442695
    %v3163 = vpow.pop %v3162
    %v3164 = vmul.f32 %v3093, 1.442695
    %v3165 = vpow.pop %v3164
    %v3166 = vmul.f32 %v3094, 1.442695
    %v3167 = vpow.pop %v3166
    %v3168 = vmul.f32 %v3095, 1.442695
    %v3169 = vpow.pop %v3168
    %v3170 = vmul.f32 %v3096, 1.442695
    %v3171 = vpow.pop %v3170
    %v3172 = vmul.f32 %v3097, 1.442695
    %v3173 = vpow.pop %v3172
    %v3174 = vmul.f32 %v3098, 1.442695
    %v3175 = vpow.pop %v3174
    %v3176 = vmul.f32 %v3099, 1.442695
    %v3177 = vpow.pop %v3176
    %v3178 = vmul.f32 %v3100, 1.442695
    %v3179 = vpow.pop %v3178
    %v3180 = vmul.f32 %v3101, 1.442695
    %v3181 = vpow.pop %v3180
    %v3182 = vmul.f32 %v3102, 1.442695
    %v3183 = vpow.pop %v3182
    %v3184 = vmul.f32 %v3103, 1.442695
    %v3185 = vpow.pop %v3184
    %v3186 = vmul.f32 %v3104, 1.442695
    %v3187 = vpow.pop %v3186
    %v3188 = vmul.f32 %v3105, 1.442695
    %v3189 = vpow.pop %v3188
    %v3190 = vmul.f32 %v3106, 1.442695
    %v3191 = vpow.pop %v3190
    %v3192 = vmul.f32 %v3107, 1.442695
    %v3193 = vpow.pop %v3192
    %v3194 = vmul.f32 %v3108, 1.442695
    %v3195 = vpow.pop %v3194
    %v3196 = vmul.f32 %v3109, 1.442695
    %v3197 = vpow.pop %v3196
    %v3198 = vmul.f32 %v3110, 1.442695
    %v3199 = vpow.pop %v3198
    %v3200 = vmul.f32 %v3111, 1.442695
    %v3201 = vpow.pop %v3200
    %v3202 = vsel %vm1187, %v3113, 0.0
    %v3203 = vsel %vm1187, %v3115, 0.0
    %v3204 = vadd.f32 %v3202, %v3203
    %v3205 = vsel %vm1187, %v3117, 0.0
    %v3206 = vadd.f32 %v3204, %v3205
    %v3207 = vsel %vm1187, %v3119, 0.0
    %v3208 = vadd.f32 %v3206, %v3207
    %v3209 = vsel %vm1187, %v3121, 0.0
    %v3210 = vadd.f32 %v3208, %v3209
    %v3211 = vsel %vm1187, %v3123, 0.0
    %v3212 = vadd.f32 %v3210, %v3211
    %v3213 = vsel %vm1187, %v3125, 0.0
    %v3214 = vadd.f32 %v3212, %v3213
    %v3215 = vsel %vm1187, %v3127, 0.0
    %v3216 = vadd.f32 %v3214, %v3215
    %v3217 = vsel %vm1187, %v3129, 0.0
    %v3218 = vadd.f32 %v3216, %v3217
    %v3219 = vsel %vm1187, %v3131, 0.0
    %v3220 = vadd.f32 %v3218, %v3219
    %v3221 = vsel %vm1187, %v3133, 0.0
    %v3222 = vadd.f32 %v3220, %v3221
    %v3223 = vsel %vm1187, %v3135, 0.0
    %v3224 = vadd.f32 %v3222, %v3223
    %v3225 = vsel %vm1187, %v3137, 0.0
    %v3226 = vadd.f32 %v3224, %v3225
    %v3227 = vsel %vm1187, %v3139, 0.0
    %v3228 = vadd.f32 %v3226, %v3227
    %v3229 = vsel %vm1187, %v3141, 0.0
    %v3230 = vadd.f32 %v3228, %v3229
    %v3231 = vsel %vm1187, %v3143, 0.0
    %v3232 = vadd.f32 %v3230, %v3231
    %v3233 = vsel %vm1187, %v3145, 0.0
    %v3234 = vadd.f32 %v3232, %v3233
    %v3235 = vsel %vm1187, %v3147, 0.0
    %v3236 = vadd.f32 %v3234, %v3235
    %v3237 = vsel %vm1187, %v3149, 0.0
    %v3238 = vadd.f32 %v3236, %v3237
    %v3239 = vsel %vm1187, %v3151, 0.0
    %v3240 = vadd.f32 %v3238, %v3239
    %v3241 = vsel %vm1187, %v3153, 0.0
    %v3242 = vadd.f32 %v3240, %v3241
    %v3243 = vsel %vm1187, %v3155, 0.0
    %v3244 = vadd.f32 %v3242, %v3243
    %v3245 = vsel %vm1187, %v3157, 0.0
    %v3246 = vadd.f32 %v3244, %v3245
    %v3247 = vsel %vm1187, %v3159, 0.0
    %v3248 = vadd.f32 %v3246, %v3247
    %v3249 = vsel %vm1187, %v3161, 0.0
    %v3250 = vadd.f32 %v3248, %v3249
    %v3251 = vsel %vm1187, %v3163, 0.0
    %v3252 = vadd.f32 %v3250, %v3251
    %v3253 = vsel %vm1187, %v3165, 0.0
    %v3254 = vadd.f32 %v3252, %v3253
    %v3255 = vsel %vm1187, %v3167, 0.0
    %v3256 = vadd.f32 %v3254, %v3255
    %v3257 = vsel %vm1187, %v3169, 0.0
    %v3258 = vadd.f32 %v3256, %v3257
    %v3259 = vsel %vm1187, %v3171, 0.0
    %v3260 = vadd.f32 %v3258, %v3259
    %v3261 = vsel %vm1187, %v3173, 0.0
    %v3262 = vadd.f32 %v3260, %v3261
    %v3263 = vsel %vm1187, %v3175, 0.0
    %v3264 = vadd.f32 %v3262, %v3263
    %v3265 = vsel %vm1187, %v3177, 0.0
    %v3266 = vadd.f32 %v3264, %v3265
    %v3267 = vsel %vm1187, %v3179, 0.0
    %v3268 = vadd.f32 %v3266, %v3267
    %v3269 = vsel %vm1187, %v3181, 0.0
    %v3270 = vadd.f32 %v3268, %v3269
    %v3271 = vsel %vm1187, %v3183, 0.0
    %v3272 = vadd.f32 %v3270, %v3271
    %v3273 = vsel %vm1187, %v3185, 0.0
    %v3274 = vadd.f32 %v3272, %v3273
    %v3275 = vsel %vm1187, %v3187, 0.0
    %v3276 = vadd.f32 %v3274, %v3275
    %v3277 = vsel %vm1187, %v3189, 0.0
    %v3278 = vadd.f32 %v3276, %v3277
    %v3279 = vsel %vm1187, %v3191, 0.0
    %v3280 = vadd.f32 %v3278, %v3279
    %v3281 = vsel %vm1187, %v3193, 0.0
    %v3282 = vadd.f32 %v3280, %v3281
    %v3283 = vsel %vm1187, %v3195, 0.0
    %v3284 = vadd.f32 %v3282, %v3283
    %v3285 = vsel %vm1187, %v3197, 0.0
    %v3286 = vadd.f32 %v3284, %v3285
    %v3287 = vsel %vm1187, %v3199, 0.0
    %v3288 = vadd.f32 %v3286, %v3287
    %v3289 = vsel %vm1272, %v3201, 0.0
    %v3290 = vadd.f32 %v3288, %v3289
    %v3291 = vrot.slane %v3290, 4
    %v3292 = vadd.f32 %v3290, %v3291
    %v3293 = vrot.slane %v3292, 2
    %v3294 = vadd.f32 %v3292, %v3293
    %v3295 = vrot.slane %v3294, 1
    %v3296 = vadd.f32 %v3294, %v3295
    %v3297 = vrcp.pop %v3296
    %v3298 = vmul.f32 %v3113, %v3297
    %v3299 = vmul.f32 %v3115, %v3297
    %v3300 = vmul.f32 %v3117, %v3297
    %v3301 = vmul.f32 %v3119, %v3297
    %v3302 = vmul.f32 %v3121, %v3297
    %v3303 = vmul.f32 %v3123, %v3297
    %v3304 = vmul.f32 %v3125, %v3297
    %v3305 = vmul.f32 %v3127, %v3297
    %v3306 = vmul.f32 %v3129, %v3297
    %v3307 = vmul.f32 %v3131, %v3297
    %v3308 = vmul.f32 %v3133, %v3297
    %v3309 = vmul.f32 %v3135, %v3297
    %v3310 = vmul.f32 %v3137, %v3297
    %v3311 = vmul.f32 %v3139, %v3297
    %v3312 = vmul.f32 %v3141, %v3297
    %v3313 = vmul.f32 %v3143, %v3297
    %v3314 = vmul.f32 %v3145, %v3297
    %v3315 = vmul.f32 %v3147, %v3297
    %v3316 = vmul.f32 %v3149, %v3297
    %v3317 = vmul.f32 %v3151, %v3297
    %v3318 = vmul.f32 %v3153, %v3297
    %v3319 = vmul.f32 %v3155, %v3297
    %v3320 = vmul.f32 %v3157, %v3297
    %v3321 = vmul.f32 %v3159, %v3297
    %v3322 = vmul.f32 %v3161, %v3297
    %v3323 = vmul.f32 %v3163, %v3297
    %v3324 = vmul.f32 %v3165, %v3297
    %v3325 = vmul.f32 %v3167, %v3297
    %v3326 = vmul.f32 %v3169, %v3297
    %v3327 = vmul.f32 %v3171, %v3297
    %v3328 = vmul.f32 %v3173, %v3297
    %v3329 = vmul.f32 %v3175, %v3297
    %v3330 = vmul.f32 %v3177, %v3297
    %v3331 = vmul.f32 %v3179, %v3297
    %v3332 = vmul.f32 %v3181, %v3297
    %v3333 = vmul.f32 %v3183, %v3297
    %v3334 = vmul.f32 %v3185, %v3297
    %v3335 = vmul.f32 %v3187, %v3297
    %v3336 = vmul.f32 %v3189, %v3297
    %v3337 = vmul.f32 %v3191, %v3297
    %v3338 = vmul.f32 %v3193, %v3297
    %v3339 = vmul.f32 %v3195, %v3297
    %v3340 = vmul.f32 %v3197, %v3297
    %v3341 = vmul.f32 %v3199, %v3297
    %v3342 = vmul.f32 %v3201, %v3297
    %v3343 = vsel %vm281, %v2032, 0.0
    %3344 = vadd.xlane.f32.xlu0 %v3343
    %v3345 = vpop.xlane.xlu0 %3344
    %v3346 = vsel %vm281, %v2033, 0.0
    %3347 = vadd.xlane.f32.xlu0 %v3346
    %v3348 = vpop.xlane.xlu0 %3347
    %v3349 = vsel %vm281, %v2034, 0.0
    %3350 = vadd.xlane.f32.xlu0 %v3349
    %v3351 = vpop.xlane.xlu0 %3350
    %v3352 = vsel %vm281, %v2035, 0.0
    %3353 = vadd.xlane.f32.xlu0 %v3352
    %v3354 = vpop.xlane.xlu0 %3353
    %v3355 = vsel %vm281, %v2036, 0.0
    %3356 = vadd.xlane.f32.xlu0 %v3355
    %v3357 = vpop.xlane.xlu0 %3356
    %v3358 = vsel %vm281, %v2037, 0.0
    %3359 = vadd.xlane.f32.xlu0 %v3358
    %v3360 = vpop.xlane.xlu0 %3359
    %v3361 = vsel %vm281, %v2038, 0.0
    %3362 = vadd.xlane.f32.xlu0 %v3361
    %v3363 = vpop.xlane.xlu0 %3362
    %v3364 = vsel %vm281, %v2039, 0.0
    %3365 = vadd.xlane.f32.xlu0 %v3364
    %v3366 = vpop.xlane.xlu0 %3365
    %v3367 = vsel %vm281, %v2040, 0.0
    %3368 = vadd.xlane.f32.xlu0 %v3367
    %v3369 = vpop.xlane.xlu0 %3368
    %v3370 = vsel %vm281, %v2041, 0.0
    %3371 = vadd.xlane.f32.xlu0 %v3370
    %v3372 = vpop.xlane.xlu0 %3371
    %v3373 = vsel %vm281, %v2042, 0.0
    %3374 = vadd.xlane.f32.xlu0 %v3373
    %v3375 = vpop.xlane.xlu0 %3374
    %v3376 = vsel %vm281, %v2043, 0.0
    %3377 = vadd.xlane.f32.xlu0 %v3376
    %v3378 = vpop.xlane.xlu0 %3377
    %v3379 = vsel %vm281, %v2044, 0.0
    %3380 = vadd.xlane.f32.xlu0 %v3379
    %v3381 = vpop.xlane.xlu0 %3380
    %v3382 = vsel %vm281, %v2045, 0.0
    %3383 = vadd.xlane.f32.xlu0 %v3382
    %v3384 = vpop.xlane.xlu0 %3383
    %v3385 = vsel %vm281, %v2046, 0.0
    %3386 = vadd.xlane.f32.xlu0 %v3385
    %v3387 = vpop.xlane.xlu0 %3386
    %v3388 = vsel %vm281, %v2047, 0.0
    %3389 = vadd.xlane.f32.xlu0 %v3388
    %v3390 = vpop.xlane.xlu0 %3389
    %v3391 = vsel %vm281, %v2048, 0.0
    %3392 = vadd.xlane.f32.xlu0 %v3391
    %v3393 = vpop.xlane.xlu0 %3392
    %v3394 = vsel %vm281, %v2049, 0.0
    %3395 = vadd.xlane.f32.xlu0 %v3394
    %v3396 = vpop.xlane.xlu0 %3395
    %v3397 = vsel %vm281, %v2050, 0.0
    %3398 = vadd.xlane.f32.xlu0 %v3397
    %v3399 = vpop.xlane.xlu0 %3398
    %v3400 = vsel %vm281, %v2051, 0.0
    %3401 = vadd.xlane.f32.xlu0 %v3400
    %v3402 = vpop.xlane.xlu0 %3401
    %v3403 = vsel %vm281, %v2052, 0.0
    %3404 = vadd.xlane.f32.xlu0 %v3403
    %v3405 = vpop.xlane.xlu0 %3404
    %v3406 = vsel %vm281, %v2053, 0.0
    %3407 = vadd.xlane.f32.xlu0 %v3406
    %v3408 = vpop.xlane.xlu0 %3407
    %v3409 = vsel %vm281, %v2054, 0.0
    %3410 = vadd.xlane.f32.xlu0 %v3409
    %v3411 = vpop.xlane.xlu0 %3410
    %v3412 = vsel %vm281, %v2055, 0.0
    %3413 = vadd.xlane.f32.xlu0 %v3412
    %v3414 = vpop.xlane.xlu0 %3413
    %v3415 = vsel %vm281, %v2056, 0.0
    %3416 = vadd.xlane.f32.xlu0 %v3415
    %v3417 = vpop.xlane.xlu0 %3416
    %v3418 = vsel %vm281, %v2057, 0.0
    %3419 = vadd.xlane.f32.xlu0 %v3418
    %v3420 = vpop.xlane.xlu0 %3419
    %v3421 = vsel %vm281, %v2058, 0.0
    %3422 = vadd.xlane.f32.xlu0 %v3421
    %v3423 = vpop.xlane.xlu0 %3422
    %v3424 = vsel %vm281, %v2059, 0.0
    %3425 = vadd.xlane.f32.xlu0 %v3424
    %v3426 = vpop.xlane.xlu0 %3425
    %v3427 = vsel %vm281, %v2060, 0.0
    %3428 = vadd.xlane.f32.xlu0 %v3427
    %v3429 = vpop.xlane.xlu0 %3428
    %v3430 = vsel %vm281, %v2061, 0.0
    %3431 = vadd.xlane.f32.xlu0 %v3430
    %v3432 = vpop.xlane.xlu0 %3431
    %v3433 = vsel %vm281, %v2062, 0.0
    %3434 = vadd.xlane.f32.xlu0 %v3433
    %v3435 = vpop.xlane.xlu0 %3434
    %v3436 = vsel %vm281, %v2063, 0.0
    %3437 = vadd.xlane.f32.xlu0 %v3436
    %v3438 = vpop.xlane.xlu0 %3437
    %v3439 = vsel %vm281, %v2064, 0.0
    %3440 = vadd.xlane.f32.xlu0 %v3439
    %v3441 = vpop.xlane.xlu0 %3440
    %v3442 = vsel %vm281, %v2065, 0.0
    %3443 = vadd.xlane.f32.xlu0 %v3442
    %v3444 = vpop.xlane.xlu0 %3443
    %v3445 = vsel %vm281, %v2066, 0.0
    %3446 = vadd.xlane.f32.xlu0 %v3445
    %v3447 = vpop.xlane.xlu0 %3446
    %v3448 = vsel %vm281, %v2067, 0.0
    %3449 = vadd.xlane.f32.xlu0 %v3448
    %v3450 = vpop.xlane.xlu0 %3449
    %v3451 = vsel %vm281, %v2068, 0.0
    %3452 = vadd.xlane.f32.xlu0 %v3451
    %v3453 = vpop.xlane.xlu0 %3452
    %v3454 = vsel %vm281, %v2069, 0.0
    %3455 = vadd.xlane.f32.xlu0 %v3454
    %v3456 = vpop.xlane.xlu0 %3455
    %v3457 = vsel %vm281, %v2070, 0.0
    %3458 = vadd.xlane.f32.xlu0 %v3457
    %v3459 = vpop.xlane.xlu0 %3458
    %v3460 = vsel %vm281, %v2071, 0.0
    %3461 = vadd.xlane.f32.xlu0 %v3460
    %v3462 = vpop.xlane.xlu0 %3461
    %v3463 = vsel %vm281, %v2072, 0.0
    %3464 = vadd.xlane.f32.xlu0 %v3463
    %v3465 = vpop.xlane.xlu0 %3464
    %v3466 = vsel %vm281, %v2073, 0.0
    %3467 = vadd.xlane.f32.xlu0 %v3466
    %v3468 = vpop.xlane.xlu0 %3467
    %v3469 = vsel %vm281, %v2074, 0.0
    %3470 = vadd.xlane.f32.xlu0 %v3469
    %v3471 = vpop.xlane.xlu0 %3470
    %v3472 = vsel %vm281, %v2075, 0.0
    %3473 = vadd.xlane.f32.xlu0 %v3472
    %v3474 = vpop.xlane.xlu0 %3473
    %v3475 = vsel %vm1692, %v2076, 0.0
    %3476 = vadd.xlane.f32.xlu0 %v3475
    %v3477 = vpop.xlane.xlu0 %3476
    %v3478 = vmul.f32 %v3298, %v3345
    %v3479 = vmul.f32 %v3299, %v3348
    %v3480 = vmul.f32 %v3300, %v3351
    %v3481 = vmul.f32 %v3301, %v3354
    %v3482 = vmul.f32 %v3302, %v3357
    %v3483 = vmul.f32 %v3303, %v3360
    %v3484 = vmul.f32 %v3304, %v3363
    %v3485 = vmul.f32 %v3305, %v3366
    %v3486 = vmul.f32 %v3306, %v3369
    %v3487 = vmul.f32 %v3307, %v3372
    %v3488 = vmul.f32 %v3308, %v3375
    %v3489 = vmul.f32 %v3309, %v3378
    %v3490 = vmul.f32 %v3310, %v3381
    %v3491 = vmul.f32 %v3311, %v3384
    %v3492 = vmul.f32 %v3312, %v3387
    %v3493 = vmul.f32 %v3313, %v3390
    %v3494 = vmul.f32 %v3314, %v3393
    %v3495 = vmul.f32 %v3315, %v3396
    %v3496 = vmul.f32 %v3316, %v3399
    %v3497 = vmul.f32 %v3317, %v3402
    %v3498 = vmul.f32 %v3318, %v3405
    %v3499 = vmul.f32 %v3319, %v3408
    %v3500 = vmul.f32 %v3320, %v3411
    %v3501 = vmul.f32 %v3321, %v3414
    %v3502 = vmul.f32 %v3322, %v3417
    %v3503 = vmul.f32 %v3323, %v3420
    %v3504 = vmul.f32 %v3324, %v3423
    %v3505 = vmul.f32 %v3325, %v3426
    %v3506 = vmul.f32 %v3326, %v3429
    %v3507 = vmul.f32 %v3327, %v3432
    %v3508 = vmul.f32 %v3328, %v3435
    %v3509 = vmul.f32 %v3329, %v3438
    %v3510 = vmul.f32 %v3330, %v3441
    %v3511 = vmul.f32 %v3331, %v3444
    %v3512 = vmul.f32 %v3332, %v3447
    %v3513 = vmul.f32 %v3333, %v3450
    %v3514 = vmul.f32 %v3334, %v3453
    %v3515 = vmul.f32 %v3335, %v3456
    %v3516 = vmul.f32 %v3336, %v3459
    %v3517 = vmul.f32 %v3337, %v3462
    %v3518 = vmul.f32 %v3338, %v3465
    %v3519 = vmul.f32 %v3339, %v3468
    %v3520 = vmul.f32 %v3340, %v3471
    %v3521 = vmul.f32 %v3341, %v3474
    %v3522 = vmul.f32 %v3342, %v3477
    %v3523 = vsel %vm1187, %v3478, 0.0
    %v3524 = vsel %vm1187, %v3479, 0.0
    %v3525 = vadd.f32 %v3523, %v3524
    %v3526 = vsel %vm1187, %v3480, 0.0
    %v3527 = vadd.f32 %v3525, %v3526
    %v3528 = vsel %vm1187, %v3481, 0.0
    %v3529 = vadd.f32 %v3527, %v3528
    %v3530 = vsel %vm1187, %v3482, 0.0
    %v3531 = vadd.f32 %v3529, %v3530
    %v3532 = vsel %vm1187, %v3483, 0.0
    %v3533 = vadd.f32 %v3531, %v3532
    %v3534 = vsel %vm1187, %v3484, 0.0
    %v3535 = vadd.f32 %v3533, %v3534
    %v3536 = vsel %vm1187, %v3485, 0.0
    %v3537 = vadd.f32 %v3535, %v3536
    %v3538 = vsel %vm1187, %v3486, 0.0
    %v3539 = vadd.f32 %v3537, %v3538
    %v3540 = vsel %vm1187, %v3487, 0.0
    %v3541 = vadd.f32 %v3539, %v3540
    %v3542 = vsel %vm1187, %v3488, 0.0
    %v3543 = vadd.f32 %v3541, %v3542
    %v3544 = vsel %vm1187, %v3489, 0.0
    %v3545 = vadd.f32 %v3543, %v3544
    %v3546 = vsel %vm1187, %v3490, 0.0
    %v3547 = vadd.f32 %v3545, %v3546
    %v3548 = vsel %vm1187, %v3491, 0.0
    %v3549 = vadd.f32 %v3547, %v3548
    %v3550 = vsel %vm1187, %v3492, 0.0
    %v3551 = vadd.f32 %v3549, %v3550
    %v3552 = vsel %vm1187, %v3493, 0.0
    %v3553 = vadd.f32 %v3551, %v3552
    %v3554 = vsel %vm1187, %v3494, 0.0
    %v3555 = vadd.f32 %v3553, %v3554
    %v3556 = vsel %vm1187, %v3495, 0.0
    %v3557 = vadd.f32 %v3555, %v3556
    %v3558 = vsel %vm1187, %v3496, 0.0
    %v3559 = vadd.f32 %v3557, %v3558
    %v3560 = vsel %vm1187, %v3497, 0.0
    %v3561 = vadd.f32 %v3559, %v3560
    %v3562 = vsel %vm1187, %v3498, 0.0
    %v3563 = vadd.f32 %v3561, %v3562
    %v3564 = vsel %vm1187, %v3499, 0.0
    %v3565 = vadd.f32 %v3563, %v3564
    %v3566 = vsel %vm1187, %v3500, 0.0
    %v3567 = vadd.f32 %v3565, %v3566
    %v3568 = vsel %vm1187, %v3501, 0.0
    %v3569 = vadd.f32 %v3567, %v3568
    %v3570 = vsel %vm1187, %v3502, 0.0
    %v3571 = vadd.f32 %v3569, %v3570
    %v3572 = vsel %vm1187, %v3503, 0.0
    %v3573 = vadd.f32 %v3571, %v3572
    %v3574 = vsel %vm1187, %v3504, 0.0
    %v3575 = vadd.f32 %v3573, %v3574
    %v3576 = vsel %vm1187, %v3505, 0.0
    %v3577 = vadd.f32 %v3575, %v3576
    %v3578 = vsel %vm1187, %v3506, 0.0
    %v3579 = vadd.f32 %v3577, %v3578
    %v3580 = vsel %vm1187, %v3507, 0.0
    %v3581 = vadd.f32 %v3579, %v3580
    %v3582 = vsel %vm1187, %v3508, 0.0
    %v3583 = vadd.f32 %v3581, %v3582
    %v3584 = vsel %vm1187, %v3509, 0.0
    %v3585 = vadd.f32 %v3583, %v3584
    %v3586 = vsel %vm1187, %v3510, 0.0
    %v3587 = vadd.f32 %v3585, %v3586
    %v3588 = vsel %vm1187, %v3511, 0.0
    %v3589 = vadd.f32 %v3587, %v3588
    %v3590 = vsel %vm1187, %v3512, 0.0
    %v3591 = vadd.f32 %v3589, %v3590
    %v3592 = vsel %vm1187, %v3513, 0.0
    %v3593 = vadd.f32 %v3591, %v3592
    %v3594 = vsel %vm1187, %v3514, 0.0
    %v3595 = vadd.f32 %v3593, %v3594
    %v3596 = vsel %vm1187, %v3515, 0.0
    %v3597 = vadd.f32 %v3595, %v3596
    %v3598 = vsel %vm1187, %v3516, 0.0
    %v3599 = vadd.f32 %v3597, %v3598
    %v3600 = vsel %vm1187, %v3517, 0.0
    %v3601 = vadd.f32 %v3599, %v3600
    %v3602 = vsel %vm1187, %v3518, 0.0
    %v3603 = vadd.f32 %v3601, %v3602
    %v3604 = vsel %vm1187, %v3519, 0.0
    %v3605 = vadd.f32 %v3603, %v3604
    %v3606 = vsel %vm1187, %v3520, 0.0
    %v3607 = vadd.f32 %v3605, %v3606
    %v3608 = vsel %vm1187, %v3521, 0.0
    %v3609 = vadd.f32 %v3607, %v3608
    %v3610 = vsel %vm1272, %v3522, 0.0
    %v3611 = vadd.f32 %v3609, %v3610
    %v3612 = vrot.slane %v3611, 4
    %v3613 = vadd.f32 %v3611, %v3612
    %v3614 = vrot.slane %v3613, 2
    %v3615 = vadd.f32 %v3613, %v3614
    %v3616 = vrot.slane %v3615, 1
    %v3617 = vadd.f32 %v3615, %v3616
    %s3618 = sld [smem:[#allocation2 + $0x1]]
    %v3619 = vsel %vm1187, %v3617, -inf
    %3620 = vmax.xlane.f32.xlu0 %v3619
    %v3621 = vpop.xlane.xlu0 %3620
    %s3622 = vtos %v3621
    %v3623 = vstv %s3622
    %v3624 = vsub.f32 %v3617, %v3623
    %v3625 = vmul.f32 %v3624, 1.442695
    %v3626 = vpow.pop %v3625
    %v3627 = vsel %vm1845, %v3626, 0.0
    %3628 = vadd.xlane.f32.xlu0 %v3627
    %v3629 = vpop.xlane.xlu0 %3628
    %v3630 = vrot.slane %v3629, 4
    %v3631 = vadd.f32 %v3629, %v3630
    %v3632 = vrot.slane %v3631, 2
    %v3633 = vadd.f32 %v3631, %v3632
    %v3634 = vrot.slane %v3633, 1
    %v3635 = vadd.f32 %v3633, %v3634
    %s3636 = vtos %v3635
    %v3637 = vstv %s3636
    %v3638 = vlog2.pop %v3637
    %v3639 = vmul.f32 %v3638, 0.6931472
    %s3640 = vtos %v3639
    %s3641 = sadd.f32 %s3640, %s3622
    %v3642 = vstv %s3618
    %vm3643 = vcmp.eq.s32.totalorder %v44, %v3642
    %v3644 = vsel %vm3643, %v3617, 0.0
    %v3645 = vsel %vm1845, %v3644, 0.0
    %3646 = vadd.xlane.f32.xlu0 %v3645
    %v3647 = vpop.xlane.xlu0 %3646
    %v3648 = vrot.slane %v3647, 4
    %v3649 = vadd.f32 %v3647, %v3648
    %v3650 = vrot.slane %v3649, 2
    %v3651 = vadd.f32 %v3649, %v3650
    %v3652 = vrot.slane %v3651, 1
    %v3653 = vadd.f32 %v3651, %v3652
    %s3654 = vtos %v3653
    %s3655 = ssub.f32 %s3641, %s3654
    %s3656 = sadd.f32 %s1875, %s3655
    %vm3657 = vcmp.eq.f32.partialorder %v3617, %v3623
    %v3658 = vsel %vm3657, %v44, 8
    %v3659 = vsel %vm1187, %v3658, 2147483647
    %v3660 = vand.u32 %v3659, 65535
    %v3661 = vshra.s32 %v3659, 16
    %v3662 = vcvt.s32.f32 %v3660
    %v3663 = vcvt.s32.f32 %v3661
    %3664 = vmin.xlane.f32.xlu0 %v3663
    %v3665 = vpop.xlane.xlu0 %3664
    %vm3666 = vcmp.eq.f32.partialorder %v3663, %v3665
    %v3667 = vsel %vm3666, %v3662, inf
    %3668 = vmin.xlane.f32.xlu0 %v3667
    %v3669 = vpop.xlane.xlu0 %3668
    %v3670 = vcvt.f32.s32 %v3669
    %v3671 = vcvt.f32.s32 %v3665
    %v3672 = vshll.u32 %v3671, 16
    %v3673 = vadd.s32 %v3672, %v3670
    %s3674 = vtos %v3673
    %p3675 = scmp.eq.s32.totalorder %s3674, %s3618
    %s3676 = scalar_select %p3675, 1, 0
    %s3677 = sadd.s32 %s1895, %s3676
    %v3678 = vstv %s3677
    %vm3679 = vcmask 0
    %3680 = vst.msk [vmem:[#allocation5] sm:$0x1] %vm3679, %v3678
    %v3681 = vrcp.pop 2.0
    %s3682 = vtos %v3681
    %s3683 = smul.f32 %s3656, %s3682
    %v3684 = vstv %s3683
    %3685 = vst.msk [vmem:[#allocation6] sm:$0x1] %vm3679, %v3684
    // Predicated region
    $region34: #{disease_inference_forward.1} parent=1 // pred_check
      _
    $region35: #{disease_inference_forward.1} parent=1 // pred_check_branch
      %3687 = sbr.rel (0) target = $region37
    $region36: #{disease_inference_forward.1} parent=1 // pred_region
      %s3689 = ssub.s32 16, 16
      %3690 = vsyncadd [#allocation3], %s3689
      %s3692 = sshll.u32 [#allocation5], 4
      %s3693 = int_to_ptr.vmem [resolvable:$true] %s3692
      %3695 = dma.vmem_to_hbm [thread:$0]  %s3693, 16, %s7, [#allocation3]
    $region37: #{disease_inference_forward.1} parent=1 // pred_fallthru
      _
    // Predicated region
    $region38: #{disease_inference_forward.1} parent=1 // pred_check
      _
    $region39: #{disease_inference_forward.1} parent=1 // pred_check_branch
      %3697 = sbr.rel (0) target = $region41
    $region40: #{disease_inference_forward.1} parent=1 // pred_region
      %s3699 = ssub.s32 16, 16
      %3700 = vsyncadd [#allocation7], %s3699
      %s3702 = sshll.u32 [#allocation6], 4
      %s3703 = int_to_ptr.vmem [resolvable:$true] %s3702
      %3705 = dma.vmem_to_hbm [thread:$0]  %s3703, 16, %s8, [#allocation7]
    $region41: #{disease_inference_forward.1} parent=1 // pred_fallthru
      _
    // Predicated region
    $region42: #{disease_inference_forward.1} parent=1 // pred_check
      _
    $region43: #{disease_inference_forward.1} parent=1 // pred_check_branch
      %3707 = sbr.rel (0) target = $region45
    $region44: #{disease_inference_forward.1} parent=1 // pred_region
      %3708 = dma.done [#allocation3], 16
    $region45: #{disease_inference_forward.1} parent=1 // pred_fallthru
      _
    // Predicated region
    $region46: #{disease_inference_forward.1} parent=1 // pred_check
      _
    $region47: #{disease_inference_forward.1} parent=1 // pred_check_branch
      %3710 = sbr.rel (0) target = $region49
    $region48: #{disease_inference_forward.1} parent=1 // pred_region
      %3711 = dma.done [#allocation7], 16
    $region49: #{disease_inference_forward.1} parent=1 // pred_fallthru
      _
    %3712 = vsyncpa [#allocation3], 1
    %3713 = vsyncpa [#allocation7], 1
    %3714 = vsyncpa [#allocation4], 1

</llo_original>
